<compile_context>
chip_gen: v7x
topology: tpu7x:2x2x1
jax: 0.10.0
libtpu: 0.0.40
codegen_flags: <defaults>
</compile_context>

<pallas_src>
import functools

import jax
import jax.numpy as jnp
from jax.experimental import pallas as pl
from jax.experimental.pallas import tpu as pltpu


def scale_selection_kernel(xpad_ref, wf_ref, wb_ref, bb_ref, out_ref, *, mxu_dtype):
    # xpad_ref: (1, H+6, W+6, C)   pad-3 input (resident across H tiles)
    # wf_ref  : (27*C, 3*C)        block-diagonal fused im2col conv weight
    # wb_ref  : (4*C, OutF)        1x1 bottleneck weight (cat order: s0,s1,s2,feats)
    # bb_ref  : (1, OutF)          bottleneck bias
    # out_ref : (1, THW, OutF)     one H tile of the output, rows flattened
    THW = out_ref.shape[1]
    C = xpad_ref.shape[3]
    W = xpad_ref.shape[2] - 6
    TH = THW // W

    h = pl.program_id(1)
    row0 = pl.multiple_of(h * TH, TH)
    # One dynamic-start load of the halo window (TH + 2*3 rows) for this tile.
    win = xpad_ref[0, pl.ds(row0, TH + 6), :, :]            # (TH+6, W+6, C) f32

    # Center (unpadded) activations: shared center tap of all 3 scales + feats.
    center = win[3:3 + TH, 3:3 + W, :]                      # (TH, W, C)
    x2d = center.reshape(THW, C)                            # (THW, C) f32

    # --- fused im2col slab for the three dilated 3x3 convolutions ---
    taps = []
    for s in range(3):
        d = s + 1                                           # dilation == padding
        for ky in range(3):
            oy = 3 + (ky - 1) * d
            for kx in range(3):
                ox = 3 + (kx - 1) * d
                if ky == 1 and kx == 1:
                    taps.append(center)                     # reuse center slice
                else:
                    taps.append(win[oy:oy + TH, ox:ox + W, :])
    slab = jnp.concatenate(taps, axis=-1).reshape(THW, 27 * C)   # (THW, 27C)

    # One MXU matmul against the block-diagonal weight -> all three scales.
    ms3 = jnp.dot(slab.astype(mxu_dtype), wf_ref[...],
                  preferred_element_type=jnp.float32)       # (THW, 3C) f32

    # --- softmax over the real 3C channel axis (one max, one sum) ---
    x3 = jnp.concatenate([x2d, x2d, x2d], axis=-1)          # (THW, 3C)
    w = x3 * ms3
    m_max = jnp.max(w, axis=-1, keepdims=True)
    e = jnp.exp(w - m_max)
    inv = pl.reciprocal(jnp.sum(e, axis=-1, keepdims=True), approx=True)  # EUP
    out_feats = ms3 * (e * inv)                             # (THW, 3C)

    # --- single fused bottleneck 1x1 conv on cat(out_feats, feats) + bias, ReLU ---
    lhs = jnp.concatenate([out_feats, x2d], axis=-1)        # (THW, 4C)
    acc = jnp.dot(lhs.astype(mxu_dtype), wb_ref[...],
                  preferred_element_type=jnp.float32)       # (THW, OutF)
    acc = acc + bb_ref[...]
    out_ref[0] = jnp.maximum(acc, 0.0).astype(out_ref.dtype)


def _vmem_budget_bytes():
    # Generation-appropriate scoped-VMEM budget with headroom:
    #   v7x (64 MiB)  -> 48 MiB;  v5e/v6e (128 MiB) -> 96 MiB (capped at 100 MiB).
    try:
        cap = pltpu.get_tpu_info().vmem_capacity_bytes
    except Exception:
        cap = 64 * 1024 * 1024
    return int(min(cap * 3 // 4, 100 * 1024 * 1024))


def scale_selection(feats_nhwc, w_scales, w_bottle, b_bottle, *,
                    tile_h=None, mxu_dtype=jnp.bfloat16):
    """feats_nhwc: (N, H, W, C) float32.
    w_scales: (3, 3, 3, C, C) [scale, ky, kx, Cin, Cout] dilated-conv weights.
    w_bottle: (4C, OutF) (channel order: scale0, scale1, scale2, feats), b_bottle: (1, OutF).
    """
    N, H, W, C = feats_nhwc.shape
    OutF = w_bottle.shape[-1]

    # Pick tile_h: divisor of H, lane-tiling friendly (tile_h*W % 8 == 0),
    # THW ~ 512-1024 rows per step, and keep >= 2 grid steps when possible
    # so both TensorCores of a v7x chip get work.
    if tile_h is None:
        target = max(1, 1024 // W)
        divs = [d for d in range(1, H + 1) if H % d == 0 and (d * W) % 8 == 0]
        if not divs:
            divs = [H]
        cand = [d for d in divs if d <= target]
        tile_h = max(cand) if cand else min(divs)
        if N == 1 and H // tile_h == 1:
            smaller = [d for d in divs if d < tile_h]
            if smaller:
                tile_h = max(smaller)
    assert H % tile_h == 0
    n_h = H // tile_h

    feats_pad = jnp.pad(feats_nhwc, ((0, 0), (3, 3), (3, 3), (0, 0)))

    # Fused block-diagonal im2col weight: (27C, 3C).
    wsc = w_scales.reshape(3, 9 * C, C)
    zeros = jnp.zeros((9 * C, C), w_scales.dtype)
    cols = []
    for s in range(3):
        cols.append(jnp.concatenate(
            [wsc[s] if t == s else zeros for t in range(3)], axis=0))
    wf = jnp.concatenate(cols, axis=1).astype(mxu_dtype)       # (27C, 3C)
    wb = w_bottle.astype(mxu_dtype)                            # (4C, OutF)
    bb = b_bottle.astype(jnp.float32)

    # NOTE: the weight/bias inputs are grid-invariant; pipeline_mode=pl.Buffered(1)
    # would drop their second pipeline buffer, but their footprint is negligible
    # here and the default buffering stays far under the explicit VMEM budget.
    out3d = pl.pallas_call(
        functools.partial(scale_selection_kernel, mxu_dtype=mxu_dtype),
        out_shape=jax.ShapeDtypeStruct((N, H * W, OutF), jnp.float32),
        grid_spec=pltpu.PrefetchScalarGridSpec(
            num_scalar_prefetch=0,
            grid=(N, n_h),
            in_specs=[
                # full padded image stays resident across the H-tile axis
                pl.BlockSpec((1, H + 6, W + 6, C), lambda n, h: (n, 0, 0, 0)),
                pl.BlockSpec((27 * C, 3 * C), lambda n, h: (0, 0)),
                pl.BlockSpec((4 * C, OutF), lambda n, h: (0, 0)),
                pl.BlockSpec((1, OutF), lambda n, h: (0, 0)),
            ],
            out_specs=pl.BlockSpec((1, tile_h * W, OutF),
                                   lambda n, h: (n, h, 0)),
        ),
        compiler_params=pltpu.CompilerParams(
            dimension_semantics=("parallel", "parallel"),
            vmem_limit_bytes=_vmem_budget_bytes()),
    )(feats_pad, wf, wb, bb)
    return out3d.reshape(N, H, W, OutF)


# ---------------- pure-JAX reference (for correctness check) ----------------
def reference(feats, w_scales, w_bottle, b_bottle):
    ms = []
    for s in range(3):
        d = s + 1
        out = jax.lax.conv_general_dilated(
            feats, w_scales[s], window_strides=(1, 1),
            padding=((d, d), (d, d)), rhs_dilation=(d, d),
            dimension_numbers=("NHWC", "HWIO", "NHWC"))
        ms.append(out)
    overall = jnp.concatenate(ms, axis=-1)
    w = jax.nn.softmax(jnp.concatenate([feats * m for m in ms], axis=-1), axis=-1)
    outf = overall * w
    cat4 = jnp.concatenate([outf, feats], axis=-1)
    bott = jnp.einsum("nhwc,cd->nhwd", cat4, w_bottle) + b_bottle[0]
    return jnp.maximum(bott, 0.0)


if __name__ == "__main__":
    N, C, H, W = 2, 8, 16, 16      # features = 8 channels (NCHW conceptually)
    OutF = 128                     # out_features; multiple of 128 -> lane-dense store

    key = jax.random.PRNGKey(0)
    k1, k2, k3, k4 = jax.random.split(key, 4)
    feats = jax.random.normal(k1, (N, H, W, C), jnp.float32)               # NHWC
    w_scales = 0.1 * jax.random.normal(k2, (3, 3, 3, C, C), jnp.float32)   # [scale, kh, kw, Cin, Cout]
    w_bottle = 0.1 * jax.random.normal(k3, (4 * C, OutF), jnp.float32)
    b_bottle = 0.1 * jax.random.normal(k4, (1, OutF), jnp.float32)

    ref = reference(feats, w_scales, w_bottle, b_bottle)

    # Strict-precision check: f32 MXU operands.
    out_f32 = scale_selection(feats, w_scales, w_bottle, b_bottle,
                              mxu_dtype=jnp.float32)
    jax.block_until_ready(out_f32)
    err_f32 = float(jnp.max(jnp.abs(out_f32 - ref)))
    assert err_f32 < 2e-3, f"f32 max abs error {err_f32}"

    # Default perf path: bf16 MXU operands, f32 accumulation.
    out_bf16 = scale_selection(feats, w_scales, w_bottle, b_bottle)
    jax.block_until_ready(out_bf16)
    err_bf16 = float(jnp.max(jnp.abs(out_bf16 - ref)))
    assert err_bf16 < 5e-2, f"bf16 max abs error {err_bf16}"

    print("KERNEL_OK")
</pallas_src>

<mosaic_0001>
module attributes {stable_mosaic.version = 11 : i64} {
  func.func @scale_selection_kernel(%arg0: i32, %arg1: i32, %arg2: memref<1x22x22x8xf32, #tpu.memory_space<vmem>>, %arg3: memref<216x24xf32, #tpu.memory_space<vmem>>, %arg4: memref<32x128xf32, #tpu.memory_space<vmem>>, %arg5: memref<1x128xf32, #tpu.memory_space<vmem>>, %arg6: memref<1x256x128xf32, #tpu.memory_space<vmem>>) attributes {dimension_semantics = [#tpu.dimension_semantics<parallel>, #tpu.dimension_semantics<parallel>], iteration_bounds = array<i64: 2, 1>, scalar_prefetch = 0 : i64, scratch_operands = 0 : i64, tpu.core_type = #tpu.core_type<tc>, window_params = [{transform_indices = @transform_0, window_bounds = array<i64: 1, 22, 22, 8>}, {pipeline_mode = #tpu.pipeline_mode<synchronous>, transform_indices = @transform_1, window_bounds = array<i64: 216, 24>}, {pipeline_mode = #tpu.pipeline_mode<synchronous>, transform_indices = @transform_2, window_bounds = array<i64: 32, 128>}, {pipeline_mode = #tpu.pipeline_mode<synchronous>, transform_indices = @transform_3, window_bounds = array<i64: 1, 128>}, {transform_indices = @transform_4, window_bounds = array<i64: 1, 256, 128>}]} {
    %c16_i32 = arith.constant 16 : i32
    %0 = arith.muli %arg1, %c16_i32 : i32
    %1 = tpu.assume_multiple %0, 16 : i32
    %c0 = arith.constant 0 : index
    %2 = arith.index_cast %1 : i32 to index
    %c0_0 = arith.constant 0 : index
    %c0_1 = arith.constant 0 : index
    %3 = vector.load %arg2[%c0, %2, %c0_0, %c0_1] : memref<1x22x22x8xf32, #tpu.memory_space<vmem>>, vector<1x22x22x8xf32>
    %4 = vector.shape_cast %3 : vector<1x22x22x8xf32> to vector<22x22x8xf32>
    %5 = vector.extract_strided_slice %4 {offsets = [3, 3, 0], sizes = [16, 16, 8], strides = [1, 1, 1]} : vector<22x22x8xf32> to vector<16x16x8xf32>
    %6 = vector.shape_cast %5 : vector<16x16x8xf32> to vector<256x8xf32>
    %7 = vector.extract_strided_slice %4 {offsets = [2, 2, 0], sizes = [16, 16, 8], strides = [1, 1, 1]} : vector<22x22x8xf32> to vector<16x16x8xf32>
    %8 = vector.extract_strided_slice %4 {offsets = [2, 3, 0], sizes = [16, 16, 8], strides = [1, 1, 1]} : vector<22x22x8xf32> to vector<16x16x8xf32>
    %9 = vector.extract_strided_slice %4 {offsets = [2, 4, 0], sizes = [16, 16, 8], strides = [1, 1, 1]} : vector<22x22x8xf32> to vector<16x16x8xf32>
    %10 = vector.extract_strided_slice %4 {offsets = [3, 2, 0], sizes = [16, 16, 8], strides = [1, 1, 1]} : vector<22x22x8xf32> to vector<16x16x8xf32>
    %11 = vector.extract_strided_slice %4 {offsets = [3, 4, 0], sizes = [16, 16, 8], strides = [1, 1, 1]} : vector<22x22x8xf32> to vector<16x16x8xf32>
    %12 = vector.extract_strided_slice %4 {offsets = [4, 2, 0], sizes = [16, 16, 8], strides = [1, 1, 1]} : vector<22x22x8xf32> to vector<16x16x8xf32>
    %13 = vector.extract_strided_slice %4 {offsets = [4, 3, 0], sizes = [16, 16, 8], strides = [1, 1, 1]} : vector<22x22x8xf32> to vector<16x16x8xf32>
    %14 = vector.extract_strided_slice %4 {offsets = [4, 4, 0], sizes = [16, 16, 8], strides = [1, 1, 1]} : vector<22x22x8xf32> to vector<16x16x8xf32>
    %15 = vector.extract_strided_slice %4 {offsets = [1, 1, 0], sizes = [16, 16, 8], strides = [1, 1, 1]} : vector<22x22x8xf32> to vector<16x16x8xf32>
    %16 = vector.extract_strided_slice %4 {offsets = [1, 3, 0], sizes = [16, 16, 8], strides = [1, 1, 1]} : vector<22x22x8xf32> to vector<16x16x8xf32>
    %17 = vector.extract_strided_slice %4 {offsets = [1, 5, 0], sizes = [16, 16, 8], strides = [1, 1, 1]} : vector<22x22x8xf32> to vector<16x16x8xf32>
    %18 = vector.extract_strided_slice %4 {offsets = [3, 1, 0], sizes = [16, 16, 8], strides = [1, 1, 1]} : vector<22x22x8xf32> to vector<16x16x8xf32>
    %19 = vector.extract_strided_slice %4 {offsets = [3, 5, 0], sizes = [16, 16, 8], strides = [1, 1, 1]} : vector<22x22x8xf32> to vector<16x16x8xf32>
    %20 = vector.extract_strided_slice %4 {offsets = [5, 1, 0], sizes = [16, 16, 8], strides = [1, 1, 1]} : vector<22x22x8xf32> to vector<16x16x8xf32>
    %21 = vector.extract_strided_slice %4 {offsets = [5, 3, 0], sizes = [16, 16, 8], strides = [1, 1, 1]} : vector<22x22x8xf32> to vector<16x16x8xf32>
    %22 = vector.extract_strided_slice %4 {offsets = [5, 5, 0], sizes = [16, 16, 8], strides = [1, 1, 1]} : vector<22x22x8xf32> to vector<16x16x8xf32>
    %23 = vector.extract_strided_slice %4 {offsets = [0, 0, 0], sizes = [16, 16, 8], strides = [1, 1, 1]} : vector<22x22x8xf32> to vector<16x16x8xf32>
    %24 = vector.extract_strided_slice %4 {offsets = [0, 3, 0], sizes = [16, 16, 8], strides = [1, 1, 1]} : vector<22x22x8xf32> to vector<16x16x8xf32>
    %25 = vector.extract_strided_slice %4 {offsets = [0, 6, 0], sizes = [16, 16, 8], strides = [1, 1, 1]} : vector<22x22x8xf32> to vector<16x16x8xf32>
    %26 = vector.extract_strided_slice %4 {offsets = [3, 0, 0], sizes = [16, 16, 8], strides = [1, 1, 1]} : vector<22x22x8xf32> to vector<16x16x8xf32>
    %27 = vector.extract_strided_slice %4 {offsets = [3, 6, 0], sizes = [16, 16, 8], strides = [1, 1, 1]} : vector<22x22x8xf32> to vector<16x16x8xf32>
    %28 = vector.extract_strided_slice %4 {offsets = [6, 0, 0], sizes = [16, 16, 8], strides = [1, 1, 1]} : vector<22x22x8xf32> to vector<16x16x8xf32>
    %29 = vector.extract_strided_slice %4 {offsets = [6, 3, 0], sizes = [16, 16, 8], strides = [1, 1, 1]} : vector<22x22x8xf32> to vector<16x16x8xf32>
    %30 = vector.extract_strided_slice %4 {offsets = [6, 6, 0], sizes = [16, 16, 8], strides = [1, 1, 1]} : vector<22x22x8xf32> to vector<16x16x8xf32>
    %31 = tpu.concatenate %7, %8, %9, %10, %5, %11, %12, %13, %14, %15, %16, %17, %18, %5, %19, %20 in 2 : vector<16x16x8xf32>, vector<16x16x8xf32>, vector<16x16x8xf32>, vector<16x16x8xf32>, vector<16x16x8xf32>, vector<16x16x8xf32>, vector<16x16x8xf32>, vector<16x16x8xf32>, vector<16x16x8xf32>, vector<16x16x8xf32>, vector<16x16x8xf32>, vector<16x16x8xf32>, vector<16x16x8xf32>, vector<16x16x8xf32>, vector<16x16x8xf32>, vector<16x16x8xf32> -> vector<16x16x128xf32>
    %32 = tpu.concatenate %21, %22, %23, %24, %25, %26, %5, %27, %28, %29, %30 in 2 : vector<16x16x8xf32>, vector<16x16x8xf32>, vector<16x16x8xf32>, vector<16x16x8xf32>, vector<16x16x8xf32>, vector<16x16x8xf32>, vector<16x16x8xf32>, vector<16x16x8xf32>, vector<16x16x8xf32>, vector<16x16x8xf32>, vector<16x16x8xf32> -> vector<16x16x88xf32>
    %33 = tpu.concatenate %31, %32 in 2 : vector<16x16x128xf32>, vector<16x16x88xf32> -> vector<16x16x216xf32>
    %34 = vector.shape_cast %33 : vector<16x16x216xf32> to vector<256x216xf32>
    %c0_2 = arith.constant 0 : index
    %c0_3 = arith.constant 0 : index
    %35 = vector.load %arg3[%c0_2, %c0_3] : memref<216x24xf32, #tpu.memory_space<vmem>>, vector<216x24xf32>
    %cst = arith.constant dense<0.000000e+00> : vector<256x24xf32>
    %36 = tpu.matmul %34, %35, %cst {dimension_numbers = #tpu.dot_dimension_numbers<[1], [0], [0], [1], [0, 0, 1, 1], [], []>} : vector<256x216xf32>, vector<216x24xf32>, vector<256x24xf32> -> vector<256x24xf32>
    %37 = tpu.concatenate %6, %6, %6 in 1 : vector<256x8xf32>, vector<256x8xf32>, vector<256x8xf32> -> vector<256x24xf32>
    %38 = arith.mulf %37, %36 : vector<256x24xf32>
    %cst_4 = arith.constant dense<0xFF800000> : vector<256xf32>
    %39 = vector.multi_reduction <maximumf>, %38, %cst_4 [1] : vector<256x24xf32> to vector<256xf32>
    %40 = vector.shape_cast %39 : vector<256xf32> to vector<256x1xf32>
    %41 = vector.broadcast %40 : vector<256x1xf32> to vector<256x24xf32>
    %42 = arith.subf %38, %41 : vector<256x24xf32>
    %43 = math.exp %42 : vector<256x24xf32>
    %cst_5 = arith.constant dense<0.000000e+00> : vector<256xf32>
    %44 = vector.multi_reduction <add>, %43, %cst_5 [1] : vector<256x24xf32> to vector<256xf32>
    %45 = vector.shape_cast %44 : vector<256xf32> to vector<256x1xf32>
    %46 = tpu.reciprocal %45 {approx = true} : vector<256x1xf32> -> vector<256x1xf32>
    %47 = vector.broadcast %46 : vector<256x1xf32> to vector<256x24xf32>
    %48 = arith.mulf %43, %47 : vector<256x24xf32>
    %49 = arith.mulf %36, %48 : vector<256x24xf32>
    %50 = tpu.concatenate %49, %6 in 1 : vector<256x24xf32>, vector<256x8xf32> -> vector<256x32xf32>
    %c0_6 = arith.constant 0 : index
    %c0_7 = arith.constant 0 : index
    %51 = vector.load %arg4[%c0_6, %c0_7] : memref<32x128xf32, #tpu.memory_space<vmem>>, vector<32x128xf32>
    %cst_8 = arith.constant dense<0.000000e+00> : vector<256x128xf32>
    %52 = tpu.matmul %50, %51, %cst_8 {dimension_numbers = #tpu.dot_dimension_numbers<[1], [0], [0], [1], [0, 0, 1, 1], [], []>} : vector<256x32xf32>, vector<32x128xf32>, vector<256x128xf32> -> vector<256x128xf32>
    %c0_9 = arith.constant 0 : index
    %c0_10 = arith.constant 0 : index
    %53 = vector.load %arg5[%c0_9, %c0_10] : memref<1x128xf32, #tpu.memory_space<vmem>>, vector<1x128xf32>
    %54 = vector.broadcast %53 : vector<1x128xf32> to vector<256x128xf32>
    %55 = arith.addf %52, %54 : vector<256x128xf32>
    %cst_11 = arith.constant 0.000000e+00 : f32
    %56 = vector.broadcast %cst_11 : f32 to vector<256x128xf32>
    %57 = arith.maximumf %55, %56 : vector<256x128xf32>
    %c0_12 = arith.constant 0 : index
    %c0_13 = arith.constant 0 : index
    %c0_14 = arith.constant 0 : index
    %58 = vector.load %arg6[%c0_12, %c0_13, %c0_14] : memref<1x256x128xf32, #tpu.memory_space<vmem>>, vector<1x256x128xf32>
    %59 = vector.shape_cast %58 : vector<1x256x128xf32> to vector<256x128xf32>
    %60 = vector.shape_cast %57 : vector<256x128xf32> to vector<1x256x128xf32>
    tpu.vector_store %arg6[%c0_12, %c0_13, %c0_14], %60 {strides = array<i32>} : memref<1x256x128xf32, #tpu.memory_space<vmem>>, vector<1x256x128xf32>,
    return
  }
  func.func @transform_0(%arg0: i32, %arg1: i32) -> (i32, i32, i32, i32) {
    %c0_i32 = arith.constant 0 : i32
    %c0_i32_0 = arith.constant 0 : i32
    %c0_i32_1 = arith.constant 0 : i32
    %c0_i32_2 = arith.constant 0 : i32
    return %arg0, %c0_i32, %c0_i32_0, %c0_i32_1 : i32, i32, i32, i32
  }
  func.func @transform_1(%arg0: i32, %arg1: i32) -> (i32, i32) {
    %c0_i32 = arith.constant 0 : i32
    %c0_i32_0 = arith.constant 0 : i32
    %c0_i32_1 = arith.constant 0 : i32
    return %c0_i32, %c0_i32_0 : i32, i32
  }
  func.func @transform_2(%arg0: i32, %arg1: i32) -> (i32, i32) {
    %c0_i32 = arith.constant 0 : i32
    %c0_i32_0 = arith.constant 0 : i32
    %c0_i32_1 = arith.constant 0 : i32
    return %c0_i32, %c0_i32_0 : i32, i32
  }
  func.func @transform_3(%arg0: i32, %arg1: i32) -> (i32, i32) {
    %c0_i32 = arith.constant 0 : i32
    %c0_i32_0 = arith.constant 0 : i32
    %c0_i32_1 = arith.constant 0 : i32
    return %c0_i32, %c0_i32_0 : i32, i32
  }
  func.func @transform_4(%arg0: i32, %arg1: i32) -> (i32, i32, i32) {
    %c0_i32 = arith.constant 0 : i32
    %c0_i32_0 = arith.constant 0 : i32
    return %arg0, %arg1, %c0_i32 : i32, i32, i32
  }
}

</mosaic_0001>

<llo_original>
// kernel: tpu_custom_call.1
$region0: #{tpu_custom_call.1}
  #allocation0 [shape = 'u32[]', space=smem, size = 0x4, offset = 0x4, fixed_abs, tag = 'smem constant byte address 0x4 - core index']
  #allocation1 [shape = 'u32[144,128]{1,0:T(1,128)}', space=vmem, size = 0x12000, scoped, tag = 'internal scratch']
  %s0 = inlined_call_operand.vmem [shape: f32[2,22,22,8], index: 0, kind: input, shape index: {}]
  %s1 = inlined_call_operand.vmem [shape: f32[216,24], index: 1, kind: input, shape index: {}]
  %s2 = inlined_call_operand.vmem [shape: f32[32,128], index: 2, kind: input, shape index: {}]
  %s3 = inlined_call_operand.vmem [shape: f32[1,128], index: 3, kind: input, shape index: {}]
  %s4 = inlined_call_operand.hbm [shape: f32[2,256,128], index: 4, kind: output, shape index: {}]
  %s5 = sld [smem:[#allocation0]]
  $region49: #{tpu_custom_call.1} parent=0
    _
  %s7 = ssub.s32 1, %s5
  %s8 = scalar_select 0, %s7, %s5
  $region1: #{tpu_custom_call.1} parent=0
    #allocation2 [shape = 'u8[262144]{0}', space=vmem, size = 0x40000, scoped, tag = 'output window, operand 0']
    #allocation3 [shape = 's32[2]{0}', space=sflag, size = 0x8, scoped, tag = 'scoped memory for tpu_custom_call.1']
    %9 = vsyncpa [#allocation3], 0
    %s10 = scalar_lea.sflag [#allocation3], 1
    %11 = vsyncpa %s10, 0
    loop: start=0, step=1, limit=4
    $region2: #{tpu_custom_call.1} parent=1 // loop_pre_header
      _
    $region3: #{tpu_custom_call.1} parent=1 // loop_header
      %s13 = sphi 0, %s17
      %p14 = scmp.ge.s32.totalorder %s13, 4
      %s20 = sphi 0, %s32
      %s21 = sphi 0, %s28
      %s22 = sphi 0, %s20
      %s23 = sphi 0, %s21
      %s24 = sphi 0, %s22
      %s25 = sphi 0, %s23
      %s35 = sphi 0, %s37
      %s38 = sphi 0, %s35
      %s39 = sphi 0, %s38
      %s55 = sphi 0, %s39
      %s59 = sphi 0, %s59
      %s61 = sphi 0, %s59
      %s62 = sphi 0, %s61
      %s76 = sphi 0, %s62
      %s80 = sphi 0, %s80
      %s82 = sphi 0, %s80
      %s83 = sphi 0, %s82
      %s97 = sphi 0, %s83
      %s101 = sphi 0, %s101
      %s103 = sphi 0, %s101
      %s104 = sphi 0, %s103
      %s118 = sphi 0, %s104
      %s126 = sphi 0, %s128
      %s129 = sphi 0, %s126
      %s130 = sphi 0, %s129
      %s146 = sphi 0, %s130
    $region4: #{tpu_custom_call.1} parent=1 // loop_header_branch
      %16 = sbr.rel (%p14) target = $region8
    $region5: #{tpu_custom_call.1} parent=1 // loop_body
      %s18 = ssub.s32 %s13, 1
      %s19 = ssub.s32 %s13, 2
      %s26 = sadd.s32 1, %s21
      %p27 = scmp.ge.s32.totalorder %s26, 1
      %s28 = scalar_select %p27, 0, %s26
      %s29 = sadd.s32 1, %s20
      %s30 = scalar_select %p27, %s29, %s20
      %p31 = scmp.ge.s32.totalorder %s30, 2
      %s32 = scalar_select %p31, 0, %s30
      %s33 = ssub.s32 %s20, %s32
      %p34 = scmp.eq.s32.totalorder %s33, 0
      %s36 = sadd.s32 %s35, 1
      %s37 = scalar_select %p34, %s35, %s36
      %p40 = pneg %p34
      %p41 = scmp.eq.s32.totalorder %s13, 1
      %p42 = por %p40, %p41
      %p43 = scmp.ne.s32.totalorder %s35, %s38
      %p44 = scmp.eq.s32.totalorder %s13, 0
      %p45 = por %p43, %p44
      %p46 = scmp.ne.s32.totalorder %s35, %s38
      %p47 = scmp.eq.s32.totalorder %s18, 1
      %p48 = por %p46, %p47
      %p49 = scmp.ne.s32.totalorder %s38, %s39
      %p50 = scmp.eq.s32.totalorder %s18, 0
      %p51 = por %p49, %p50
      %p52 = scmp.ne.s32.totalorder %s38, %s39
      %p53 = scmp.eq.s32.totalorder %s19, 1
      %p54 = por %p52, %p53
      %p56 = scmp.ne.s32.totalorder %s39, %s55
      %p57 = scmp.eq.s32.totalorder %s19, 0
      %p58 = por %p56, %p57
      %s60 = sadd.s32 %s59, 1
      %p63 = scmp.eq.s32.totalorder %s13, 1
      %p64 = scmp.ne.s32.totalorder %s59, %s61
      %p65 = scmp.eq.s32.totalorder %s13, 0
      %p66 = por %p64, %p65
      %p67 = scmp.ne.s32.totalorder %s59, %s61
      %p68 = scmp.eq.s32.totalorder %s18, 1
      %p69 = por %p67, %p68
      %p70 = scmp.ne.s32.totalorder %s61, %s62
      %p71 = scmp.eq.s32.totalorder %s18, 0
      %p72 = por %p70, %p71
      %p73 = scmp.ne.s32.totalorder %s61, %s62
      %p74 = scmp.eq.s32.totalorder %s19, 1
      %p75 = por %p73, %p74
      %p77 = scmp.ne.s32.totalorder %s62, %s76
      %p78 = scmp.eq.s32.totalorder %s19, 0
      %p79 = por %p77, %p78
      %s81 = sadd.s32 %s80, 1
      %p84 = scmp.eq.s32.totalorder %s13, 1
      %p85 = scmp.ne.s32.totalorder %s80, %s82
      %p86 = scmp.eq.s32.totalorder %s13, 0
      %p87 = por %p85, %p86
      %p88 = scmp.ne.s32.totalorder %s80, %s82
      %p89 = scmp.eq.s32.totalorder %s18, 1
      %p90 = por %p88, %p89
      %p91 = scmp.ne.s32.totalorder %s82, %s83
      %p92 = scmp.eq.s32.totalorder %s18, 0
      %p93 = por %p91, %p92
      %p94 = scmp.ne.s32.totalorder %s82, %s83
      %p95 = scmp.eq.s32.totalorder %s19, 1
      %p96 = por %p94, %p95
      %p98 = scmp.ne.s32.totalorder %s83, %s97
      %p99 = scmp.eq.s32.totalorder %s19, 0
      %p100 = por %p98, %p99
      %s102 = sadd.s32 %s101, 1
      %p105 = scmp.eq.s32.totalorder %s13, 1
      %p106 = scmp.ne.s32.totalorder %s101, %s103
      %p107 = scmp.eq.s32.totalorder %s13, 0
      %p108 = por %p106, %p107
      %p109 = scmp.ne.s32.totalorder %s101, %s103
      %p110 = scmp.eq.s32.totalorder %s18, 1
      %p111 = por %p109, %p110
      %p112 = scmp.ne.s32.totalorder %s103, %s104
      %p113 = scmp.eq.s32.totalorder %s18, 0
      %p114 = por %p112, %p113
      %p115 = scmp.ne.s32.totalorder %s103, %s104
      %p116 = scmp.eq.s32.totalorder %s19, 1
      %p117 = por %p115, %p116
      %p119 = scmp.ne.s32.totalorder %s104, %s118
      %p120 = scmp.eq.s32.totalorder %s19, 0
      %p121 = por %p119, %p120
      %s122 = ssub.s32 %s20, %s32
      %s123 = ssub.s32 %s21, %s28
      %s124 = sor.u32 %s122, %s123
      %p125 = scmp.eq.s32.totalorder %s124, 0
      %s127 = sadd.s32 %s126, 1
      %s128 = scalar_select %p125, %s126, %s127
      %p131 = pneg %p125
      %p132 = scmp.eq.s32.totalorder %s13, 1
      %p133 = por %p131, %p132
      %p134 = scmp.ne.s32.totalorder %s126, %s129
      %p135 = scmp.eq.s32.totalorder %s13, 0
      %p136 = por %p134, %p135
      %p137 = scmp.ne.s32.totalorder %s126, %s129
      %p138 = scmp.eq.s32.totalorder %s18, 1
      %p139 = por %p137, %p138
      %p140 = scmp.ne.s32.totalorder %s129, %s130
      %p141 = scmp.eq.s32.totalorder %s18, 0
      %p142 = por %p140, %p141
      %p143 = scmp.ne.s32.totalorder %s129, %s130
      %p144 = scmp.eq.s32.totalorder %s19, 1
      %p145 = por %p143, %p144
      %p147 = scmp.ne.s32.totalorder %s130, %s146
      %p148 = scmp.eq.s32.totalorder %s19, 0
      %p149 = por %p147, %p148
      %p150 = scmp.le.s32.totalorder 1, %s13
      %p151 = scmp.lt.s32.totalorder %s13, 3
      %p152 = pnand %p150, %p151
      %p153 = pneg %p152
      // Predicated region
      $region9: #{tpu_custom_call.1} parent=5 // pred_check
        _
      $region10: #{tpu_custom_call.1} parent=5 // pred_check_branch
        %155 = sbr.rel (%p152) target = $region12
      $region11: #{tpu_custom_call.1} parent=5 // pred_region
        %s156 = ssub.s32 %s13, 1
        // Predicated region
        $region13: #{tpu_custom_call.1} parent=11 // pred_check
          %p157 = pneg %p72
        $region14: #{tpu_custom_call.1} parent=11 // pred_check_branch
          %159 = sbr.rel (%p157) target = $region16
        $region15: #{tpu_custom_call.1} parent=11 // pred_region
          _
        $region16: #{tpu_custom_call.1} parent=11 // pred_fallthru
          _
        // Predicated region
        $region17: #{tpu_custom_call.1} parent=11 // pred_check
          %p160 = pneg %p93
        $region18: #{tpu_custom_call.1} parent=11 // pred_check_branch
          %162 = sbr.rel (%p160) target = $region20
        $region19: #{tpu_custom_call.1} parent=11 // pred_region
          _
        $region20: #{tpu_custom_call.1} parent=11 // pred_fallthru
          _
        // Predicated region
        $region21: #{tpu_custom_call.1} parent=11 // pred_check
          %p163 = pneg %p114
        $region22: #{tpu_custom_call.1} parent=11 // pred_check_branch
          %165 = sbr.rel (%p163) target = $region24
        $region23: #{tpu_custom_call.1} parent=11 // pred_region
          _
        $region24: #{tpu_custom_call.1} parent=11 // pred_fallthru
          _
      $region12: #{tpu_custom_call.1} parent=5 // pred_fallthru
        _
      %p166 = scmp.lt.s32.totalorder %s13, 2
      // Predicated region
      $region25: #{tpu_custom_call.1} parent=5 // pred_check
        %p167 = pneg %p166
      $region26: #{tpu_custom_call.1} parent=5 // pred_check_branch
        %169 = sbr.rel (%p167) target = $region28
      $region27: #{tpu_custom_call.1} parent=5 // pred_region
        // Predicated region
        $region29: #{tpu_custom_call.1} parent=27 // pred_check
          %p170 = pneg %p45
        $region30: #{tpu_custom_call.1} parent=27 // pred_check_branch
          %172 = sbr.rel (%p170) target = $region32
        $region31: #{tpu_custom_call.1} parent=27 // pred_region
          %p173 = scmp.lt.s32.totalorder %s20, 1
          %s174 = scalar_select %p173, %s20, 1
          %s175 = smul.addr %s174, 66
          %s176 = smul.addr %s175, 8
          %s177 = scalar_lea.vmem %s0, %s176
        $region32: #{tpu_custom_call.1} parent=27 // pred_fallthru
          _
      $region28: #{tpu_custom_call.1} parent=5 // pred_fallthru
        _
      %p178 = scmp.le.s32.totalorder 1, %s13
      %p179 = scmp.lt.s32.totalorder %s13, 3
      %p180 = pnand %p178, %p179
      %p181 = pneg %p180
      // Predicated region
      $region33: #{tpu_custom_call.1} parent=5 // pred_check
        _
      $region34: #{tpu_custom_call.1} parent=5 // pred_check_branch
        %183 = sbr.rel (%p180) target = $region36
      $region35: #{tpu_custom_call.1} parent=5 // pred_region
        %s184 = ssub.s32 %s13, 1
        %p185 = scmp.lt.s32.totalorder %s22, 1
        %s186 = scalar_select %p185, %s22, 1
        %s187 = smul.addr %s186, 66
        %s188 = smul.addr %s187, 8
        %s189 = scalar_lea.vmem %s0, %s188
        %p190 = pneg %p51
        %p191 = pneg %p48
        %p192 = pneg %p72
        %p193 = pneg %p69
        %p194 = pneg %p93
        %p195 = pneg %p90
        %p196 = pneg %p114
        %p197 = pneg %p111
        %p198 = pneg %p142
        %p199 = pneg %p139
        %s200 = sand.u32 %s129, 1
        %s201 = scalar_lea.sflag [#allocation3], %s200
        %s202 = sand.u32 %s129, 1
        %s203 = smul.addr %s202, 256
        %s204 = scalar_lea.vmem [#allocation2], %s203
        %p205 = scmp.lt.s32.totalorder %s22, 1
        %s206 = scalar_select %p205, %s22, 1
        %s207 = smul.addr %s206, 66
        %s208 = smul.addr %s207, 8
        %s209 = scalar_lea.vmem %s0, %s208
        %s210 = smul.u32 32, %s23
        %s211 = smul.u32 %s23, 16
        %s212 = smul.u32 %s211, 24
        %s213 = scalar_lea.vmem %s209, %s212
        %v214 = vld [vmem:[%s213] sm:$0xff]
        %v215 = vld [vmem:[%s213 + $0x8] sm:$0xff]
        %v216 = vld [vmem:[%s213 + $0x10] sm:$0x3f]
        %v217 = vld [vmem:[%s213 + $0x18] sm:$0xff]
        %v218 = vld [vmem:[%s213 + $0x20] sm:$0xff]
        %v219 = vld [vmem:[%s213 + $0x28] sm:$0x3f]
        %v220 = vld [vmem:[%s213 + $0x30] sm:$0xff]
        %v221 = vld [vmem:[%s213 + $0x38] sm:$0xff]
        %v222 = vld [vmem:[%s213 + $0x40] sm:$0x3f]
        %v223 = vld [vmem:[%s213 + $0x48] sm:$0xff]
        %v224 = vld [vmem:[%s213 + $0x50] sm:$0xff]
        %v225 = vld [vmem:[%s213 + $0x58] sm:$0x3f]
        %v226 = vld [vmem:[%s213 + $0x60] sm:$0xff]
        %v227 = vld [vmem:[%s213 + $0x68] sm:$0xff]
        %v228 = vld [vmem:[%s213 + $0x70] sm:$0x3f]
        %v229 = vld [vmem:[%s213 + $0x78] sm:$0xff]
        %v230 = vld [vmem:[%s213 + $0x80] sm:$0xff]
        %v231 = vld [vmem:[%s213 + $0x88] sm:$0x3f]
        %v232 = vld [vmem:[%s213 + $0x90] sm:$0xff]
        %v233 = vld [vmem:[%s213 + $0x98] sm:$0xff]
        %v234 = vld [vmem:[%s213 + $0xa0] sm:$0x3f]
        %v235 = vld [vmem:[%s213 + $0xa8] sm:$0xff]
        %v236 = vld [vmem:[%s213 + $0xb0] sm:$0xff]
        %v237 = vld [vmem:[%s213 + $0xb8] sm:$0x3f]
        %v238 = vld [vmem:[%s213 + $0xc0] sm:$0xff]
        %v239 = vld [vmem:[%s213 + $0xc8] sm:$0xff]
        %v240 = vld [vmem:[%s213 + $0xd0] sm:$0x3f]
        %v241 = vld [vmem:[%s213 + $0xd8] sm:$0xff]
        %v242 = vld [vmem:[%s213 + $0xe0] sm:$0xff]
        %v243 = vld [vmem:[%s213 + $0xe8] sm:$0x3f]
        %v244 = vld [vmem:[%s213 + $0xf0] sm:$0xff]
        %v245 = vld [vmem:[%s213 + $0xf8] sm:$0xff]
        %v246 = vld [vmem:[%s213 + $0x100] sm:$0x3f]
        %v247 = vld [vmem:[%s213 + $0x108] sm:$0xff]
        %v248 = vld [vmem:[%s213 + $0x110] sm:$0xff]
        %v249 = vld [vmem:[%s213 + $0x118] sm:$0x3f]
        %v250 = vld [vmem:[%s213 + $0x120] sm:$0xff]
        %v251 = vld [vmem:[%s213 + $0x128] sm:$0xff]
        %v252 = vld [vmem:[%s213 + $0x130] sm:$0x3f]
        %v253 = vld [vmem:[%s213 + $0x138] sm:$0xff]
        %v254 = vld [vmem:[%s213 + $0x140] sm:$0xff]
        %v255 = vld [vmem:[%s213 + $0x148] sm:$0x3f]
        %v256 = vld [vmem:[%s213 + $0x150] sm:$0xff]
        %v257 = vld [vmem:[%s213 + $0x158] sm:$0xff]
        %v258 = vld [vmem:[%s213 + $0x160] sm:$0x3f]
        %v259 = vld [vmem:[%s213 + $0x168] sm:$0xff]
        %v260 = vld [vmem:[%s213 + $0x170] sm:$0xff]
        %v261 = vld [vmem:[%s213 + $0x178] sm:$0x3f]
        %v262 = vld [vmem:[%s213 + $0x180] sm:$0xff]
        %v263 = vld [vmem:[%s213 + $0x188] sm:$0xff]
        %v264 = vld [vmem:[%s213 + $0x190] sm:$0x3f]
        %v265 = vld [vmem:[%s213 + $0x198] sm:$0xff]
        %v266 = vld [vmem:[%s213 + $0x1a0] sm:$0xff]
        %v267 = vld [vmem:[%s213 + $0x1a8] sm:$0x3f]
        %v268 = vld [vmem:[%s213 + $0x1b0] sm:$0xff]
        %v269 = vld [vmem:[%s213 + $0x1b8] sm:$0xff]
        %v270 = vld [vmem:[%s213 + $0x1c0] sm:$0x3f]
        %v271 = vld [vmem:[%s213 + $0x1c8] sm:$0xff]
        %v272 = vld [vmem:[%s213 + $0x1d0] sm:$0xff]
        %v273 = vld [vmem:[%s213 + $0x1d8] sm:$0x3f]
        %v274 = vld [vmem:[%s213 + $0x1e0] sm:$0xff]
        %v275 = vld [vmem:[%s213 + $0x1e8] sm:$0xff]
        %v276 = vld [vmem:[%s213 + $0x1f0] sm:$0x3f]
        %v277 = vld [vmem:[%s213 + $0x1f8] sm:$0xff]
        %v278 = vld [vmem:[%s213 + $0x200] sm:$0xff]
        %v279 = vld [vmem:[%s213 + $0x208] sm:$0x3f]
        %vm328 = vcmask 1044480
        %v329 = vrot.slane %v223, 3
        %v330 = vrot.slane %v224, 3
        %v331 = vsel %vm328, %v329, %v330
        %v332 = vrot.slane %v225, 3
        %v333 = vsel %vm328, %v330, %v332
        %v334 = vrot.slane %v226, 3
        %v335 = vrot.slane %v227, 3
        %v336 = vsel %vm328, %v334, %v335
        %v337 = vrot.slane %v228, 3
        %v338 = vsel %vm328, %v335, %v337
        %v339 = vrot.slane %v229, 3
        %v340 = vrot.slane %v230, 3
        %v341 = vsel %vm328, %v339, %v340
        %v342 = vrot.slane %v231, 3
        %v343 = vsel %vm328, %v340, %v342
        %v344 = vrot.slane %v232, 3
        %v345 = vrot.slane %v233, 3
        %v346 = vsel %vm328, %v344, %v345
        %v347 = vrot.slane %v234, 3
        %v348 = vsel %vm328, %v345, %v347
        %v349 = vrot.slane %v235, 3
        %v350 = vrot.slane %v236, 3
        %v351 = vsel %vm328, %v349, %v350
        %v352 = vrot.slane %v237, 3
        %v353 = vsel %vm328, %v350, %v352
        %v354 = vrot.slane %v238, 3
        %v355 = vrot.slane %v239, 3
        %v356 = vsel %vm328, %v354, %v355
        %v357 = vrot.slane %v240, 3
        %v358 = vsel %vm328, %v355, %v357
        %v359 = vrot.slane %v241, 3
        %v360 = vrot.slane %v242, 3
        %v361 = vsel %vm328, %v359, %v360
        %v362 = vrot.slane %v243, 3
        %v363 = vsel %vm328, %v360, %v362
        %v364 = vrot.slane %v244, 3
        %v365 = vrot.slane %v245, 3
        %v366 = vsel %vm328, %v364, %v365
        %v367 = vrot.slane %v246, 3
        %v368 = vsel %vm328, %v365, %v367
        %v369 = vrot.slane %v247, 3
        %v370 = vrot.slane %v248, 3
        %v371 = vsel %vm328, %v369, %v370
        %v372 = vrot.slane %v249, 3
        %v373 = vsel %vm328, %v370, %v372
        %v374 = vrot.slane %v250, 3
        %v375 = vrot.slane %v251, 3
        %v376 = vsel %vm328, %v374, %v375
        %v377 = vrot.slane %v252, 3
        %v378 = vsel %vm328, %v375, %v377
        %v379 = vrot.slane %v253, 3
        %v380 = vrot.slane %v254, 3
        %v381 = vsel %vm328, %v379, %v380
        %v382 = vrot.slane %v255, 3
        %v383 = vsel %vm328, %v380, %v382
        %v384 = vrot.slane %v256, 3
        %v385 = vrot.slane %v257, 3
        %v386 = vsel %vm328, %v384, %v385
        %v387 = vrot.slane %v258, 3
        %v388 = vsel %vm328, %v385, %v387
        %v389 = vrot.slane %v259, 3
        %v390 = vrot.slane %v260, 3
        %v391 = vsel %vm328, %v389, %v390
        %v392 = vrot.slane %v261, 3
        %v393 = vsel %vm328, %v390, %v392
        %v394 = vrot.slane %v262, 3
        %v395 = vrot.slane %v263, 3
        %v396 = vsel %vm328, %v394, %v395
        %v397 = vrot.slane %v264, 3
        %v398 = vsel %vm328, %v395, %v397
        %v399 = vrot.slane %v265, 3
        %v400 = vrot.slane %v266, 3
        %v401 = vsel %vm328, %v399, %v400
        %v402 = vrot.slane %v267, 3
        %v403 = vsel %vm328, %v400, %v402
        %v404 = vrot.slane %v268, 3
        %v405 = vrot.slane %v269, 3
        %v406 = vsel %vm328, %v404, %v405
        %v407 = vrot.slane %v270, 3
        %v408 = vsel %vm328, %v405, %v407
        %vm444 = vcmask 1046528
        %v445 = vrot.slane %v220, 1
        %v446 = vrot.slane %v221, 1
        %v447 = vsel %vm444, %v445, %v446
        %v448 = vrot.slane %v222, 1
        %v449 = vsel %vm444, %v446, %v448
        %v450 = vrot.slane %v223, 1
        %v451 = vrot.slane %v224, 1
        %v452 = vsel %vm444, %v450, %v451
        %v453 = vrot.slane %v225, 1
        %v454 = vsel %vm444, %v451, %v453
        %v455 = vrot.slane %v226, 1
        %v456 = vrot.slane %v227, 1
        %v457 = vsel %vm444, %v455, %v456
        %v458 = vrot.slane %v228, 1
        %v459 = vsel %vm444, %v456, %v458
        %v460 = vrot.slane %v229, 1
        %v461 = vrot.slane %v230, 1
        %v462 = vsel %vm444, %v460, %v461
        %v463 = vrot.slane %v231, 1
        %v464 = vsel %vm444, %v461, %v463
        %v465 = vrot.slane %v232, 1
        %v466 = vrot.slane %v233, 1
        %v467 = vsel %vm444, %v465, %v466
        %v468 = vrot.slane %v234, 1
        %v469 = vsel %vm444, %v466, %v468
        %v470 = vrot.slane %v235, 1
        %v471 = vrot.slane %v236, 1
        %v472 = vsel %vm444, %v470, %v471
        %v473 = vrot.slane %v237, 1
        %v474 = vsel %vm444, %v471, %v473
        %v475 = vrot.slane %v238, 1
        %v476 = vrot.slane %v239, 1
        %v477 = vsel %vm444, %v475, %v476
        %v478 = vrot.slane %v240, 1
        %v479 = vsel %vm444, %v476, %v478
        %v480 = vrot.slane %v241, 1
        %v481 = vrot.slane %v242, 1
        %v482 = vsel %vm444, %v480, %v481
        %v483 = vrot.slane %v243, 1
        %v484 = vsel %vm444, %v481, %v483
        %v485 = vrot.slane %v244, 1
        %v486 = vrot.slane %v245, 1
        %v487 = vsel %vm444, %v485, %v486
        %v488 = vrot.slane %v246, 1
        %v489 = vsel %vm444, %v486, %v488
        %v490 = vrot.slane %v247, 1
        %v491 = vrot.slane %v248, 1
        %v492 = vsel %vm444, %v490, %v491
        %v493 = vrot.slane %v249, 1
        %v494 = vsel %vm444, %v491, %v493
        %v495 = vrot.slane %v250, 1
        %v496 = vrot.slane %v251, 1
        %v497 = vsel %vm444, %v495, %v496
        %v498 = vrot.slane %v252, 1
        %v499 = vsel %vm444, %v496, %v498
        %v500 = vrot.slane %v253, 1
        %v501 = vrot.slane %v254, 1
        %v502 = vsel %vm444, %v500, %v501
        %v503 = vrot.slane %v255, 1
        %v504 = vsel %vm444, %v501, %v503
        %v505 = vrot.slane %v256, 1
        %v506 = vrot.slane %v257, 1
        %v507 = vsel %vm444, %v505, %v506
        %v508 = vrot.slane %v258, 1
        %v509 = vsel %vm444, %v506, %v508
        %v510 = vrot.slane %v259, 1
        %v511 = vrot.slane %v260, 1
        %v512 = vsel %vm444, %v510, %v511
        %v513 = vrot.slane %v261, 1
        %v514 = vsel %vm444, %v511, %v513
        %v515 = vrot.slane %v262, 1
        %v516 = vrot.slane %v263, 1
        %v517 = vsel %vm444, %v515, %v516
        %v518 = vrot.slane %v264, 1
        %v519 = vsel %vm444, %v516, %v518
        %v520 = vrot.slane %v265, 1
        %v521 = vrot.slane %v266, 1
        %v522 = vsel %vm444, %v520, %v521
        %v523 = vrot.slane %v267, 1
        %v524 = vsel %vm444, %v521, %v523
        %525 = vrot.lane.b32.xlu0 %v447, 8
        %v526 = vpop.permute.xlu0 %525
        %527 = vrot.lane.b32.xlu0 %v449, 8
        %v528 = vpop.permute.xlu0 %527
        %529 = vrot.lane.b32.xlu0 %v448, 8
        %v530 = vpop.permute.xlu0 %529
        %531 = vrot.lane.b32.xlu0 %v452, 8
        %v532 = vpop.permute.xlu0 %531
        %533 = vrot.lane.b32.xlu0 %v454, 8
        %v534 = vpop.permute.xlu0 %533
        %535 = vrot.lane.b32.xlu0 %v453, 8
        %v536 = vpop.permute.xlu0 %535
        %537 = vrot.lane.b32.xlu0 %v457, 8
        %v538 = vpop.permute.xlu0 %537
        %539 = vrot.lane.b32.xlu0 %v459, 8
        %v540 = vpop.permute.xlu0 %539
        %541 = vrot.lane.b32.xlu0 %v458, 8
        %v542 = vpop.permute.xlu0 %541
        %543 = vrot.lane.b32.xlu0 %v462, 8
        %v544 = vpop.permute.xlu0 %543
        %545 = vrot.lane.b32.xlu0 %v464, 8
        %v546 = vpop.permute.xlu0 %545
        %547 = vrot.lane.b32.xlu0 %v463, 8
        %v548 = vpop.permute.xlu0 %547
        %549 = vrot.lane.b32.xlu0 %v467, 8
        %v550 = vpop.permute.xlu0 %549
        %551 = vrot.lane.b32.xlu0 %v469, 8
        %v552 = vpop.permute.xlu0 %551
        %553 = vrot.lane.b32.xlu0 %v468, 8
        %v554 = vpop.permute.xlu0 %553
        %555 = vrot.lane.b32.xlu0 %v472, 8
        %v556 = vpop.permute.xlu0 %555
        %557 = vrot.lane.b32.xlu0 %v474, 8
        %v558 = vpop.permute.xlu0 %557
        %559 = vrot.lane.b32.xlu0 %v473, 8
        %v560 = vpop.permute.xlu0 %559
        %561 = vrot.lane.b32.xlu0 %v477, 8
        %v562 = vpop.permute.xlu0 %561
        %563 = vrot.lane.b32.xlu0 %v479, 8
        %v564 = vpop.permute.xlu0 %563
        %565 = vrot.lane.b32.xlu0 %v478, 8
        %v566 = vpop.permute.xlu0 %565
        %567 = vrot.lane.b32.xlu0 %v482, 8
        %v568 = vpop.permute.xlu0 %567
        %569 = vrot.lane.b32.xlu0 %v484, 8
        %v570 = vpop.permute.xlu0 %569
        %571 = vrot.lane.b32.xlu0 %v483, 8
        %v572 = vpop.permute.xlu0 %571
        %573 = vrot.lane.b32.xlu0 %v487, 8
        %v574 = vpop.permute.xlu0 %573
        %575 = vrot.lane.b32.xlu0 %v489, 8
        %v576 = vpop.permute.xlu0 %575
        %577 = vrot.lane.b32.xlu0 %v488, 8
        %v578 = vpop.permute.xlu0 %577
        %579 = vrot.lane.b32.xlu0 %v492, 8
        %v580 = vpop.permute.xlu0 %579
        %581 = vrot.lane.b32.xlu0 %v494, 8
        %v582 = vpop.permute.xlu0 %581
        %583 = vrot.lane.b32.xlu0 %v493, 8
        %v584 = vpop.permute.xlu0 %583
        %585 = vrot.lane.b32.xlu0 %v497, 8
        %v586 = vpop.permute.xlu0 %585
        %587 = vrot.lane.b32.xlu0 %v499, 8
        %v588 = vpop.permute.xlu0 %587
        %589 = vrot.lane.b32.xlu0 %v498, 8
        %v590 = vpop.permute.xlu0 %589
        %591 = vrot.lane.b32.xlu0 %v502, 8
        %v592 = vpop.permute.xlu0 %591
        %593 = vrot.lane.b32.xlu0 %v504, 8
        %v594 = vpop.permute.xlu0 %593
        %595 = vrot.lane.b32.xlu0 %v503, 8
        %v596 = vpop.permute.xlu0 %595
        %597 = vrot.lane.b32.xlu0 %v507, 8
        %v598 = vpop.permute.xlu0 %597
        %599 = vrot.lane.b32.xlu0 %v509, 8
        %v600 = vpop.permute.xlu0 %599
        %601 = vrot.lane.b32.xlu0 %v508, 8
        %v602 = vpop.permute.xlu0 %601
        %603 = vrot.lane.b32.xlu0 %v512, 8
        %v604 = vpop.permute.xlu0 %603
        %605 = vrot.lane.b32.xlu0 %v514, 8
        %v606 = vpop.permute.xlu0 %605
        %607 = vrot.lane.b32.xlu0 %v513, 8
        %v608 = vpop.permute.xlu0 %607
        %609 = vrot.lane.b32.xlu0 %v517, 8
        %v610 = vpop.permute.xlu0 %609
        %611 = vrot.lane.b32.xlu0 %v519, 8
        %v612 = vpop.permute.xlu0 %611
        %613 = vrot.lane.b32.xlu0 %v518, 8
        %v614 = vpop.permute.xlu0 %613
        %615 = vrot.lane.b32.xlu0 %v522, 8
        %v616 = vpop.permute.xlu0 %615
        %617 = vrot.lane.b32.xlu0 %v524, 8
        %v618 = vpop.permute.xlu0 %617
        %619 = vrot.lane.b32.xlu0 %v523, 8
        %v620 = vpop.permute.xlu0 %619
        %vm669 = vcmask 1045504
        %v670 = vrot.slane %v220, 2
        %v671 = vrot.slane %v221, 2
        %v672 = vsel %vm669, %v670, %v671
        %v673 = vrot.slane %v222, 2
        %v674 = vsel %vm669, %v671, %v673
        %v675 = vrot.slane %v223, 2
        %v676 = vrot.slane %v224, 2
        %v677 = vsel %vm669, %v675, %v676
        %v678 = vrot.slane %v225, 2
        %v679 = vsel %vm669, %v676, %v678
        %v680 = vrot.slane %v226, 2
        %v681 = vrot.slane %v227, 2
        %v682 = vsel %vm669, %v680, %v681
        %v683 = vrot.slane %v228, 2
        %v684 = vsel %vm669, %v681, %v683
        %v685 = vrot.slane %v229, 2
        %v686 = vrot.slane %v230, 2
        %v687 = vsel %vm669, %v685, %v686
        %v688 = vrot.slane %v231, 2
        %v689 = vsel %vm669, %v686, %v688
        %v690 = vrot.slane %v232, 2
        %v691 = vrot.slane %v233, 2
        %v692 = vsel %vm669, %v690, %v691
        %v693 = vrot.slane %v234, 2
        %v694 = vsel %vm669, %v691, %v693
        %v695 = vrot.slane %v235, 2
        %v696 = vrot.slane %v236, 2
        %v697 = vsel %vm669, %v695, %v696
        %v698 = vrot.slane %v237, 2
        %v699 = vsel %vm669, %v696, %v698
        %v700 = vrot.slane %v238, 2
        %v701 = vrot.slane %v239, 2
        %v702 = vsel %vm669, %v700, %v701
        %v703 = vrot.slane %v240, 2
        %v704 = vsel %vm669, %v701, %v703
        %v705 = vrot.slane %v241, 2
        %v706 = vrot.slane %v242, 2
        %v707 = vsel %vm669, %v705, %v706
        %v708 = vrot.slane %v243, 2
        %v709 = vsel %vm669, %v706, %v708
        %v710 = vrot.slane %v244, 2
        %v711 = vrot.slane %v245, 2
        %v712 = vsel %vm669, %v710, %v711
        %v713 = vrot.slane %v246, 2
        %v714 = vsel %vm669, %v711, %v713
        %v715 = vrot.slane %v247, 2
        %v716 = vrot.slane %v248, 2
        %v717 = vsel %vm669, %v715, %v716
        %v718 = vrot.slane %v249, 2
        %v719 = vsel %vm669, %v716, %v718
        %v720 = vrot.slane %v250, 2
        %v721 = vrot.slane %v251, 2
        %v722 = vsel %vm669, %v720, %v721
        %v723 = vrot.slane %v252, 2
        %v724 = vsel %vm669, %v721, %v723
        %v725 = vrot.slane %v253, 2
        %v726 = vrot.slane %v254, 2
        %v727 = vsel %vm669, %v725, %v726
        %v728 = vrot.slane %v255, 2
        %v729 = vsel %vm669, %v726, %v728
        %v730 = vrot.slane %v256, 2
        %v731 = vrot.slane %v257, 2
        %v732 = vsel %vm669, %v730, %v731
        %v733 = vrot.slane %v258, 2
        %v734 = vsel %vm669, %v731, %v733
        %v735 = vrot.slane %v259, 2
        %v736 = vrot.slane %v260, 2
        %v737 = vsel %vm669, %v735, %v736
        %v738 = vrot.slane %v261, 2
        %v739 = vsel %vm669, %v736, %v738
        %v740 = vrot.slane %v262, 2
        %v741 = vrot.slane %v263, 2
        %v742 = vsel %vm669, %v740, %v741
        %v743 = vrot.slane %v264, 2
        %v744 = vsel %vm669, %v741, %v743
        %v745 = vrot.slane %v265, 2
        %v746 = vrot.slane %v266, 2
        %v747 = vsel %vm669, %v745, %v746
        %v748 = vrot.slane %v267, 2
        %v749 = vsel %vm669, %v746, %v748
        %750 = vrot.lane.b32.xlu0 %v672, 16
        %v751 = vpop.permute.xlu0 %750
        %752 = vrot.lane.b32.xlu0 %v674, 16
        %v753 = vpop.permute.xlu0 %752
        %754 = vrot.lane.b32.xlu0 %v673, 16
        %v755 = vpop.permute.xlu0 %754
        %756 = vrot.lane.b32.xlu0 %v677, 16
        %v757 = vpop.permute.xlu0 %756
        %758 = vrot.lane.b32.xlu0 %v679, 16
        %v759 = vpop.permute.xlu0 %758
        %760 = vrot.lane.b32.xlu0 %v678, 16
        %v761 = vpop.permute.xlu0 %760
        %762 = vrot.lane.b32.xlu0 %v682, 16
        %v763 = vpop.permute.xlu0 %762
        %764 = vrot.lane.b32.xlu0 %v684, 16
        %v765 = vpop.permute.xlu0 %764
        %766 = vrot.lane.b32.xlu0 %v683, 16
        %v767 = vpop.permute.xlu0 %766
        %768 = vrot.lane.b32.xlu0 %v687, 16
        %v769 = vpop.permute.xlu0 %768
        %770 = vrot.lane.b32.xlu0 %v689, 16
        %v771 = vpop.permute.xlu0 %770
        %772 = vrot.lane.b32.xlu0 %v688, 16
        %v773 = vpop.permute.xlu0 %772
        %774 = vrot.lane.b32.xlu0 %v692, 16
        %v775 = vpop.permute.xlu0 %774
        %776 = vrot.lane.b32.xlu0 %v694, 16
        %v777 = vpop.permute.xlu0 %776
        %778 = vrot.lane.b32.xlu0 %v693, 16
        %v779 = vpop.permute.xlu0 %778
        %780 = vrot.lane.b32.xlu0 %v697, 16
        %v781 = vpop.permute.xlu0 %780
        %782 = vrot.lane.b32.xlu0 %v699, 16
        %v783 = vpop.permute.xlu0 %782
        %784 = vrot.lane.b32.xlu0 %v698, 16
        %v785 = vpop.permute.xlu0 %784
        %786 = vrot.lane.b32.xlu0 %v702, 16
        %v787 = vpop.permute.xlu0 %786
        %788 = vrot.lane.b32.xlu0 %v704, 16
        %v789 = vpop.permute.xlu0 %788
        %790 = vrot.lane.b32.xlu0 %v703, 16
        %v791 = vpop.permute.xlu0 %790
        %792 = vrot.lane.b32.xlu0 %v707, 16
        %v793 = vpop.permute.xlu0 %792
        %794 = vrot.lane.b32.xlu0 %v709, 16
        %v795 = vpop.permute.xlu0 %794
        %796 = vrot.lane.b32.xlu0 %v708, 16
        %v797 = vpop.permute.xlu0 %796
        %798 = vrot.lane.b32.xlu0 %v712, 16
        %v799 = vpop.permute.xlu0 %798
        %800 = vrot.lane.b32.xlu0 %v714, 16
        %v801 = vpop.permute.xlu0 %800
        %802 = vrot.lane.b32.xlu0 %v713, 16
        %v803 = vpop.permute.xlu0 %802
        %804 = vrot.lane.b32.xlu0 %v717, 16
        %v805 = vpop.permute.xlu0 %804
        %806 = vrot.lane.b32.xlu0 %v719, 16
        %v807 = vpop.permute.xlu0 %806
        %808 = vrot.lane.b32.xlu0 %v718, 16
        %v809 = vpop.permute.xlu0 %808
        %810 = vrot.lane.b32.xlu0 %v722, 16
        %v811 = vpop.permute.xlu0 %810
        %812 = vrot.lane.b32.xlu0 %v724, 16
        %v813 = vpop.permute.xlu0 %812
        %814 = vrot.lane.b32.xlu0 %v723, 16
        %v815 = vpop.permute.xlu0 %814
        %816 = vrot.lane.b32.xlu0 %v727, 16
        %v817 = vpop.permute.xlu0 %816
        %818 = vrot.lane.b32.xlu0 %v729, 16
        %v819 = vpop.permute.xlu0 %818
        %820 = vrot.lane.b32.xlu0 %v728, 16
        %v821 = vpop.permute.xlu0 %820
        %822 = vrot.lane.b32.xlu0 %v732, 16
        %v823 = vpop.permute.xlu0 %822
        %824 = vrot.lane.b32.xlu0 %v734, 16
        %v825 = vpop.permute.xlu0 %824
        %826 = vrot.lane.b32.xlu0 %v733, 16
        %v827 = vpop.permute.xlu0 %826
        %828 = vrot.lane.b32.xlu0 %v737, 16
        %v829 = vpop.permute.xlu0 %828
        %830 = vrot.lane.b32.xlu0 %v739, 16
        %v831 = vpop.permute.xlu0 %830
        %832 = vrot.lane.b32.xlu0 %v738, 16
        %v833 = vpop.permute.xlu0 %832
        %834 = vrot.lane.b32.xlu0 %v742, 16
        %v835 = vpop.permute.xlu0 %834
        %836 = vrot.lane.b32.xlu0 %v744, 16
        %v837 = vpop.permute.xlu0 %836
        %838 = vrot.lane.b32.xlu0 %v743, 16
        %v839 = vpop.permute.xlu0 %838
        %840 = vrot.lane.b32.xlu0 %v747, 16
        %v841 = vpop.permute.xlu0 %840
        %842 = vrot.lane.b32.xlu0 %v749, 16
        %v843 = vpop.permute.xlu0 %842
        %844 = vrot.lane.b32.xlu0 %v748, 16
        %v845 = vpop.permute.xlu0 %844
        %894 = vrot.lane.b32.xlu0 %v223, 24
        %v895 = vpop.permute.xlu0 %894
        %896 = vrot.lane.b32.xlu0 %v224, 24
        %v897 = vpop.permute.xlu0 %896
        %898 = vrot.lane.b32.xlu0 %v225, 24
        %v899 = vpop.permute.xlu0 %898
        %900 = vrot.lane.b32.xlu0 %v226, 24
        %v901 = vpop.permute.xlu0 %900
        %902 = vrot.lane.b32.xlu0 %v227, 24
        %v903 = vpop.permute.xlu0 %902
        %904 = vrot.lane.b32.xlu0 %v228, 24
        %v905 = vpop.permute.xlu0 %904
        %906 = vrot.lane.b32.xlu0 %v229, 24
        %v907 = vpop.permute.xlu0 %906
        %908 = vrot.lane.b32.xlu0 %v230, 24
        %v909 = vpop.permute.xlu0 %908
        %910 = vrot.lane.b32.xlu0 %v231, 24
        %v911 = vpop.permute.xlu0 %910
        %912 = vrot.lane.b32.xlu0 %v232, 24
        %v913 = vpop.permute.xlu0 %912
        %914 = vrot.lane.b32.xlu0 %v233, 24
        %v915 = vpop.permute.xlu0 %914
        %916 = vrot.lane.b32.xlu0 %v234, 24
        %v917 = vpop.permute.xlu0 %916
        %918 = vrot.lane.b32.xlu0 %v235, 24
        %v919 = vpop.permute.xlu0 %918
        %920 = vrot.lane.b32.xlu0 %v236, 24
        %v921 = vpop.permute.xlu0 %920
        %922 = vrot.lane.b32.xlu0 %v237, 24
        %v923 = vpop.permute.xlu0 %922
        %924 = vrot.lane.b32.xlu0 %v238, 24
        %v925 = vpop.permute.xlu0 %924
        %926 = vrot.lane.b32.xlu0 %v239, 24
        %v927 = vpop.permute.xlu0 %926
        %928 = vrot.lane.b32.xlu0 %v240, 24
        %v929 = vpop.permute.xlu0 %928
        %930 = vrot.lane.b32.xlu0 %v241, 24
        %v931 = vpop.permute.xlu0 %930
        %932 = vrot.lane.b32.xlu0 %v242, 24
        %v933 = vpop.permute.xlu0 %932
        %934 = vrot.lane.b32.xlu0 %v243, 24
        %v935 = vpop.permute.xlu0 %934
        %936 = vrot.lane.b32.xlu0 %v244, 24
        %v937 = vpop.permute.xlu0 %936
        %938 = vrot.lane.b32.xlu0 %v245, 24
        %v939 = vpop.permute.xlu0 %938
        %940 = vrot.lane.b32.xlu0 %v246, 24
        %v941 = vpop.permute.xlu0 %940
        %942 = vrot.lane.b32.xlu0 %v247, 24
        %v943 = vpop.permute.xlu0 %942
        %944 = vrot.lane.b32.xlu0 %v248, 24
        %v945 = vpop.permute.xlu0 %944
        %946 = vrot.lane.b32.xlu0 %v249, 24
        %v947 = vpop.permute.xlu0 %946
        %948 = vrot.lane.b32.xlu0 %v250, 24
        %v949 = vpop.permute.xlu0 %948
        %950 = vrot.lane.b32.xlu0 %v251, 24
        %v951 = vpop.permute.xlu0 %950
        %952 = vrot.lane.b32.xlu0 %v252, 24
        %v953 = vpop.permute.xlu0 %952
        %954 = vrot.lane.b32.xlu0 %v253, 24
        %v955 = vpop.permute.xlu0 %954
        %956 = vrot.lane.b32.xlu0 %v254, 24
        %v957 = vpop.permute.xlu0 %956
        %958 = vrot.lane.b32.xlu0 %v255, 24
        %v959 = vpop.permute.xlu0 %958
        %960 = vrot.lane.b32.xlu0 %v256, 24
        %v961 = vpop.permute.xlu0 %960
        %962 = vrot.lane.b32.xlu0 %v257, 24
        %v963 = vpop.permute.xlu0 %962
        %964 = vrot.lane.b32.xlu0 %v258, 24
        %v965 = vpop.permute.xlu0 %964
        %966 = vrot.lane.b32.xlu0 %v259, 24
        %v967 = vpop.permute.xlu0 %966
        %968 = vrot.lane.b32.xlu0 %v260, 24
        %v969 = vpop.permute.xlu0 %968
        %970 = vrot.lane.b32.xlu0 %v261, 24
        %v971 = vpop.permute.xlu0 %970
        %972 = vrot.lane.b32.xlu0 %v262, 24
        %v973 = vpop.permute.xlu0 %972
        %974 = vrot.lane.b32.xlu0 %v263, 24
        %v975 = vpop.permute.xlu0 %974
        %976 = vrot.lane.b32.xlu0 %v264, 24
        %v977 = vpop.permute.xlu0 %976
        %978 = vrot.lane.b32.xlu0 %v265, 24
        %v979 = vpop.permute.xlu0 %978
        %980 = vrot.lane.b32.xlu0 %v266, 24
        %v981 = vpop.permute.xlu0 %980
        %982 = vrot.lane.b32.xlu0 %v267, 24
        %v983 = vpop.permute.xlu0 %982
        %984 = vrot.lane.b32.xlu0 %v268, 24
        %v985 = vpop.permute.xlu0 %984
        %986 = vrot.lane.b32.xlu0 %v269, 24
        %v987 = vpop.permute.xlu0 %986
        %988 = vrot.lane.b32.xlu0 %v270, 24
        %v989 = vpop.permute.xlu0 %988
        %v1038 = vrot.slane %v268, 1
        %v1039 = vrot.slane %v269, 1
        %v1040 = vsel %vm444, %v1038, %v1039
        %v1041 = vrot.slane %v270, 1
        %v1042 = vsel %vm444, %v1039, %v1041
        %1043 = vrot.lane.b32.xlu0 %v452, 32
        %v1044 = vpop.permute.xlu0 %1043
        %1045 = vrot.lane.b32.xlu0 %v454, 32
        %v1046 = vpop.permute.xlu0 %1045
        %1047 = vrot.lane.b32.xlu0 %v453, 32
        %v1048 = vpop.permute.xlu0 %1047
        %1049 = vrot.lane.b32.xlu0 %v457, 32
        %v1050 = vpop.permute.xlu0 %1049
        %1051 = vrot.lane.b32.xlu0 %v459, 32
        %v1052 = vpop.permute.xlu0 %1051
        %1053 = vrot.lane.b32.xlu0 %v458, 32
        %v1054 = vpop.permute.xlu0 %1053
        %1055 = vrot.lane.b32.xlu0 %v462, 32
        %v1056 = vpop.permute.xlu0 %1055
        %1057 = vrot.lane.b32.xlu0 %v464, 32
        %v1058 = vpop.permute.xlu0 %1057
        %1059 = vrot.lane.b32.xlu0 %v463, 32
        %v1060 = vpop.permute.xlu0 %1059
        %1061 = vrot.lane.b32.xlu0 %v467, 32
        %v1062 = vpop.permute.xlu0 %1061
        %1063 = vrot.lane.b32.xlu0 %v469, 32
        %v1064 = vpop.permute.xlu0 %1063
        %1065 = vrot.lane.b32.xlu0 %v468, 32
        %v1066 = vpop.permute.xlu0 %1065
        %1067 = vrot.lane.b32.xlu0 %v472, 32
        %v1068 = vpop.permute.xlu0 %1067
        %1069 = vrot.lane.b32.xlu0 %v474, 32
        %v1070 = vpop.permute.xlu0 %1069
        %1071 = vrot.lane.b32.xlu0 %v473, 32
        %v1072 = vpop.permute.xlu0 %1071
        %1073 = vrot.lane.b32.xlu0 %v477, 32
        %v1074 = vpop.permute.xlu0 %1073
        %1075 = vrot.lane.b32.xlu0 %v479, 32
        %v1076 = vpop.permute.xlu0 %1075
        %1077 = vrot.lane.b32.xlu0 %v478, 32
        %v1078 = vpop.permute.xlu0 %1077
        %1079 = vrot.lane.b32.xlu0 %v482, 32
        %v1080 = vpop.permute.xlu0 %1079
        %1081 = vrot.lane.b32.xlu0 %v484, 32
        %v1082 = vpop.permute.xlu0 %1081
        %1083 = vrot.lane.b32.xlu0 %v483, 32
        %v1084 = vpop.permute.xlu0 %1083
        %1085 = vrot.lane.b32.xlu0 %v487, 32
        %v1086 = vpop.permute.xlu0 %1085
        %1087 = vrot.lane.b32.xlu0 %v489, 32
        %v1088 = vpop.permute.xlu0 %1087
        %1089 = vrot.lane.b32.xlu0 %v488, 32
        %v1090 = vpop.permute.xlu0 %1089
        %1091 = vrot.lane.b32.xlu0 %v492, 32
        %v1092 = vpop.permute.xlu0 %1091
        %1093 = vrot.lane.b32.xlu0 %v494, 32
        %v1094 = vpop.permute.xlu0 %1093
        %1095 = vrot.lane.b32.xlu0 %v493, 32
        %v1096 = vpop.permute.xlu0 %1095
        %1097 = vrot.lane.b32.xlu0 %v497, 32
        %v1098 = vpop.permute.xlu0 %1097
        %1099 = vrot.lane.b32.xlu0 %v499, 32
        %v1100 = vpop.permute.xlu0 %1099
        %1101 = vrot.lane.b32.xlu0 %v498, 32
        %v1102 = vpop.permute.xlu0 %1101
        %1103 = vrot.lane.b32.xlu0 %v502, 32
        %v1104 = vpop.permute.xlu0 %1103
        %1105 = vrot.lane.b32.xlu0 %v504, 32
        %v1106 = vpop.permute.xlu0 %1105
        %1107 = vrot.lane.b32.xlu0 %v503, 32
        %v1108 = vpop.permute.xlu0 %1107
        %1109 = vrot.lane.b32.xlu0 %v507, 32
        %v1110 = vpop.permute.xlu0 %1109
        %1111 = vrot.lane.b32.xlu0 %v509, 32
        %v1112 = vpop.permute.xlu0 %1111
        %1113 = vrot.lane.b32.xlu0 %v508, 32
        %v1114 = vpop.permute.xlu0 %1113
        %1115 = vrot.lane.b32.xlu0 %v512, 32
        %v1116 = vpop.permute.xlu0 %1115
        %1117 = vrot.lane.b32.xlu0 %v514, 32
        %v1118 = vpop.permute.xlu0 %1117
        %1119 = vrot.lane.b32.xlu0 %v513, 32
        %v1120 = vpop.permute.xlu0 %1119
        %1121 = vrot.lane.b32.xlu0 %v517, 32
        %v1122 = vpop.permute.xlu0 %1121
        %1123 = vrot.lane.b32.xlu0 %v519, 32
        %v1124 = vpop.permute.xlu0 %1123
        %1125 = vrot.lane.b32.xlu0 %v518, 32
        %v1126 = vpop.permute.xlu0 %1125
        %1127 = vrot.lane.b32.xlu0 %v522, 32
        %v1128 = vpop.permute.xlu0 %1127
        %1129 = vrot.lane.b32.xlu0 %v524, 32
        %v1130 = vpop.permute.xlu0 %1129
        %1131 = vrot.lane.b32.xlu0 %v523, 32
        %v1132 = vpop.permute.xlu0 %1131
        %1133 = vrot.lane.b32.xlu0 %v1040, 32
        %v1134 = vpop.permute.xlu0 %1133
        %1135 = vrot.lane.b32.xlu0 %v1042, 32
        %v1136 = vpop.permute.xlu0 %1135
        %1137 = vrot.lane.b32.xlu0 %v1041, 32
        %v1138 = vpop.permute.xlu0 %1137
        %v1187 = vrot.slane %v268, 2
        %v1188 = vrot.slane %v269, 2
        %v1189 = vsel %vm669, %v1187, %v1188
        %v1190 = vrot.slane %v270, 2
        %v1191 = vsel %vm669, %v1188, %v1190
        %1192 = vrot.lane.b32.xlu0 %v677, 40
        %v1193 = vpop.permute.xlu0 %1192
        %1194 = vrot.lane.b32.xlu0 %v679, 40
        %v1195 = vpop.permute.xlu0 %1194
        %1196 = vrot.lane.b32.xlu0 %v678, 40
        %v1197 = vpop.permute.xlu0 %1196
        %1198 = vrot.lane.b32.xlu0 %v682, 40
        %v1199 = vpop.permute.xlu0 %1198
        %1200 = vrot.lane.b32.xlu0 %v684, 40
        %v1201 = vpop.permute.xlu0 %1200
        %1202 = vrot.lane.b32.xlu0 %v683, 40
        %v1203 = vpop.permute.xlu0 %1202
        %1204 = vrot.lane.b32.xlu0 %v687, 40
        %v1205 = vpop.permute.xlu0 %1204
        %1206 = vrot.lane.b32.xlu0 %v689, 40
        %v1207 = vpop.permute.xlu0 %1206
        %1208 = vrot.lane.b32.xlu0 %v688, 40
        %v1209 = vpop.permute.xlu0 %1208
        %1210 = vrot.lane.b32.xlu0 %v692, 40
        %v1211 = vpop.permute.xlu0 %1210
        %1212 = vrot.lane.b32.xlu0 %v694, 40
        %v1213 = vpop.permute.xlu0 %1212
        %1214 = vrot.lane.b32.xlu0 %v693, 40
        %v1215 = vpop.permute.xlu0 %1214
        %1216 = vrot.lane.b32.xlu0 %v697, 40
        %v1217 = vpop.permute.xlu0 %1216
        %1218 = vrot.lane.b32.xlu0 %v699, 40
        %v1219 = vpop.permute.xlu0 %1218
        %1220 = vrot.lane.b32.xlu0 %v698, 40
        %v1221 = vpop.permute.xlu0 %1220
        %1222 = vrot.lane.b32.xlu0 %v702, 40
        %v1223 = vpop.permute.xlu0 %1222
        %1224 = vrot.lane.b32.xlu0 %v704, 40
        %v1225 = vpop.permute.xlu0 %1224
        %1226 = vrot.lane.b32.xlu0 %v703, 40
        %v1227 = vpop.permute.xlu0 %1226
        %1228 = vrot.lane.b32.xlu0 %v707, 40
        %v1229 = vpop.permute.xlu0 %1228
        %1230 = vrot.lane.b32.xlu0 %v709, 40
        %v1231 = vpop.permute.xlu0 %1230
        %1232 = vrot.lane.b32.xlu0 %v708, 40
        %v1233 = vpop.permute.xlu0 %1232
        %1234 = vrot.lane.b32.xlu0 %v712, 40
        %v1235 = vpop.permute.xlu0 %1234
        %1236 = vrot.lane.b32.xlu0 %v714, 40
        %v1237 = vpop.permute.xlu0 %1236
        %1238 = vrot.lane.b32.xlu0 %v713, 40
        %v1239 = vpop.permute.xlu0 %1238
        %1240 = vrot.lane.b32.xlu0 %v717, 40
        %v1241 = vpop.permute.xlu0 %1240
        %1242 = vrot.lane.b32.xlu0 %v719, 40
        %v1243 = vpop.permute.xlu0 %1242
        %1244 = vrot.lane.b32.xlu0 %v718, 40
        %v1245 = vpop.permute.xlu0 %1244
        %1246 = vrot.lane.b32.xlu0 %v722, 40
        %v1247 = vpop.permute.xlu0 %1246
        %1248 = vrot.lane.b32.xlu0 %v724, 40
        %v1249 = vpop.permute.xlu0 %1248
        %1250 = vrot.lane.b32.xlu0 %v723, 40
        %v1251 = vpop.permute.xlu0 %1250
        %1252 = vrot.lane.b32.xlu0 %v727, 40
        %v1253 = vpop.permute.xlu0 %1252
        %1254 = vrot.lane.b32.xlu0 %v729, 40
        %v1255 = vpop.permute.xlu0 %1254
        %1256 = vrot.lane.b32.xlu0 %v728, 40
        %v1257 = vpop.permute.xlu0 %1256
        %1258 = vrot.lane.b32.xlu0 %v732, 40
        %v1259 = vpop.permute.xlu0 %1258
        %1260 = vrot.lane.b32.xlu0 %v734, 40
        %v1261 = vpop.permute.xlu0 %1260
        %1262 = vrot.lane.b32.xlu0 %v733, 40
        %v1263 = vpop.permute.xlu0 %1262
        %1264 = vrot.lane.b32.xlu0 %v737, 40
        %v1265 = vpop.permute.xlu0 %1264
        %1266 = vrot.lane.b32.xlu0 %v739, 40
        %v1267 = vpop.permute.xlu0 %1266
        %1268 = vrot.lane.b32.xlu0 %v738, 40
        %v1269 = vpop.permute.xlu0 %1268
        %1270 = vrot.lane.b32.xlu0 %v742, 40
        %v1271 = vpop.permute.xlu0 %1270
        %1272 = vrot.lane.b32.xlu0 %v744, 40
        %v1273 = vpop.permute.xlu0 %1272
        %1274 = vrot.lane.b32.xlu0 %v743, 40
        %v1275 = vpop.permute.xlu0 %1274
        %1276 = vrot.lane.b32.xlu0 %v747, 40
        %v1277 = vpop.permute.xlu0 %1276
        %1278 = vrot.lane.b32.xlu0 %v749, 40
        %v1279 = vpop.permute.xlu0 %1278
        %1280 = vrot.lane.b32.xlu0 %v748, 40
        %v1281 = vpop.permute.xlu0 %1280
        %1282 = vrot.lane.b32.xlu0 %v1189, 40
        %v1283 = vpop.permute.xlu0 %1282
        %1284 = vrot.lane.b32.xlu0 %v1191, 40
        %v1285 = vpop.permute.xlu0 %1284
        %1286 = vrot.lane.b32.xlu0 %v1190, 40
        %v1287 = vpop.permute.xlu0 %1286
        %1339 = vrot.lane.b32.xlu0 %v226, 48
        %v1340 = vpop.permute.xlu0 %1339
        %1341 = vrot.lane.b32.xlu0 %v227, 48
        %v1342 = vpop.permute.xlu0 %1341
        %1343 = vrot.lane.b32.xlu0 %v228, 48
        %v1344 = vpop.permute.xlu0 %1343
        %1345 = vrot.lane.b32.xlu0 %v229, 48
        %v1346 = vpop.permute.xlu0 %1345
        %1347 = vrot.lane.b32.xlu0 %v230, 48
        %v1348 = vpop.permute.xlu0 %1347
        %1349 = vrot.lane.b32.xlu0 %v231, 48
        %v1350 = vpop.permute.xlu0 %1349
        %1351 = vrot.lane.b32.xlu0 %v232, 48
        %v1352 = vpop.permute.xlu0 %1351
        %1353 = vrot.lane.b32.xlu0 %v233, 48
        %v1354 = vpop.permute.xlu0 %1353
        %1355 = vrot.lane.b32.xlu0 %v234, 48
        %v1356 = vpop.permute.xlu0 %1355
        %1357 = vrot.lane.b32.xlu0 %v235, 48
        %v1358 = vpop.permute.xlu0 %1357
        %1359 = vrot.lane.b32.xlu0 %v236, 48
        %v1360 = vpop.permute.xlu0 %1359
        %1361 = vrot.lane.b32.xlu0 %v237, 48
        %v1362 = vpop.permute.xlu0 %1361
        %1363 = vrot.lane.b32.xlu0 %v238, 48
        %v1364 = vpop.permute.xlu0 %1363
        %1365 = vrot.lane.b32.xlu0 %v239, 48
        %v1366 = vpop.permute.xlu0 %1365
        %1367 = vrot.lane.b32.xlu0 %v240, 48
        %v1368 = vpop.permute.xlu0 %1367
        %1369 = vrot.lane.b32.xlu0 %v241, 48
        %v1370 = vpop.permute.xlu0 %1369
        %1371 = vrot.lane.b32.xlu0 %v242, 48
        %v1372 = vpop.permute.xlu0 %1371
        %1373 = vrot.lane.b32.xlu0 %v243, 48
        %v1374 = vpop.permute.xlu0 %1373
        %1375 = vrot.lane.b32.xlu0 %v244, 48
        %v1376 = vpop.permute.xlu0 %1375
        %1377 = vrot.lane.b32.xlu0 %v245, 48
        %v1378 = vpop.permute.xlu0 %1377
        %1379 = vrot.lane.b32.xlu0 %v246, 48
        %v1380 = vpop.permute.xlu0 %1379
        %1381 = vrot.lane.b32.xlu0 %v247, 48
        %v1382 = vpop.permute.xlu0 %1381
        %1383 = vrot.lane.b32.xlu0 %v248, 48
        %v1384 = vpop.permute.xlu0 %1383
        %1385 = vrot.lane.b32.xlu0 %v249, 48
        %v1386 = vpop.permute.xlu0 %1385
        %1387 = vrot.lane.b32.xlu0 %v250, 48
        %v1388 = vpop.permute.xlu0 %1387
        %1389 = vrot.lane.b32.xlu0 %v251, 48
        %v1390 = vpop.permute.xlu0 %1389
        %1391 = vrot.lane.b32.xlu0 %v252, 48
        %v1392 = vpop.permute.xlu0 %1391
        %1393 = vrot.lane.b32.xlu0 %v253, 48
        %v1394 = vpop.permute.xlu0 %1393
        %1395 = vrot.lane.b32.xlu0 %v254, 48
        %v1396 = vpop.permute.xlu0 %1395
        %1397 = vrot.lane.b32.xlu0 %v255, 48
        %v1398 = vpop.permute.xlu0 %1397
        %1399 = vrot.lane.b32.xlu0 %v256, 48
        %v1400 = vpop.permute.xlu0 %1399
        %1401 = vrot.lane.b32.xlu0 %v257, 48
        %v1402 = vpop.permute.xlu0 %1401
        %1403 = vrot.lane.b32.xlu0 %v258, 48
        %v1404 = vpop.permute.xlu0 %1403
        %1405 = vrot.lane.b32.xlu0 %v259, 48
        %v1406 = vpop.permute.xlu0 %1405
        %1407 = vrot.lane.b32.xlu0 %v260, 48
        %v1408 = vpop.permute.xlu0 %1407
        %1409 = vrot.lane.b32.xlu0 %v261, 48
        %v1410 = vpop.permute.xlu0 %1409
        %1411 = vrot.lane.b32.xlu0 %v262, 48
        %v1412 = vpop.permute.xlu0 %1411
        %1413 = vrot.lane.b32.xlu0 %v263, 48
        %v1414 = vpop.permute.xlu0 %1413
        %1415 = vrot.lane.b32.xlu0 %v264, 48
        %v1416 = vpop.permute.xlu0 %1415
        %1417 = vrot.lane.b32.xlu0 %v265, 48
        %v1418 = vpop.permute.xlu0 %1417
        %1419 = vrot.lane.b32.xlu0 %v266, 48
        %v1420 = vpop.permute.xlu0 %1419
        %1421 = vrot.lane.b32.xlu0 %v267, 48
        %v1422 = vpop.permute.xlu0 %1421
        %1423 = vrot.lane.b32.xlu0 %v268, 48
        %v1424 = vpop.permute.xlu0 %1423
        %1425 = vrot.lane.b32.xlu0 %v269, 48
        %v1426 = vpop.permute.xlu0 %1425
        %1427 = vrot.lane.b32.xlu0 %v270, 48
        %v1428 = vpop.permute.xlu0 %1427
        %1429 = vrot.lane.b32.xlu0 %v271, 48
        %v1430 = vpop.permute.xlu0 %1429
        %1431 = vrot.lane.b32.xlu0 %v272, 48
        %v1432 = vpop.permute.xlu0 %1431
        %1433 = vrot.lane.b32.xlu0 %v273, 48
        %v1434 = vpop.permute.xlu0 %1433
        %v1483 = vrot.slane %v271, 1
        %v1484 = vrot.slane %v272, 1
        %v1485 = vsel %vm444, %v1483, %v1484
        %v1486 = vrot.slane %v273, 1
        %v1487 = vsel %vm444, %v1484, %v1486
        %1488 = vrot.lane.b32.xlu0 %v457, 56
        %v1489 = vpop.permute.xlu0 %1488
        %1490 = vrot.lane.b32.xlu0 %v459, 56
        %v1491 = vpop.permute.xlu0 %1490
        %1492 = vrot.lane.b32.xlu0 %v458, 56
        %v1493 = vpop.permute.xlu0 %1492
        %1494 = vrot.lane.b32.xlu0 %v462, 56
        %v1495 = vpop.permute.xlu0 %1494
        %1496 = vrot.lane.b32.xlu0 %v464, 56
        %v1497 = vpop.permute.xlu0 %1496
        %1498 = vrot.lane.b32.xlu0 %v463, 56
        %v1499 = vpop.permute.xlu0 %1498
        %1500 = vrot.lane.b32.xlu0 %v467, 56
        %v1501 = vpop.permute.xlu0 %1500
        %1502 = vrot.lane.b32.xlu0 %v469, 56
        %v1503 = vpop.permute.xlu0 %1502
        %1504 = vrot.lane.b32.xlu0 %v468, 56
        %v1505 = vpop.permute.xlu0 %1504
        %1506 = vrot.lane.b32.xlu0 %v472, 56
        %v1507 = vpop.permute.xlu0 %1506
        %1508 = vrot.lane.b32.xlu0 %v474, 56
        %v1509 = vpop.permute.xlu0 %1508
        %1510 = vrot.lane.b32.xlu0 %v473, 56
        %v1511 = vpop.permute.xlu0 %1510
        %1512 = vrot.lane.b32.xlu0 %v477, 56
        %v1513 = vpop.permute.xlu0 %1512
        %1514 = vrot.lane.b32.xlu0 %v479, 56
        %v1515 = vpop.permute.xlu0 %1514
        %1516 = vrot.lane.b32.xlu0 %v478, 56
        %v1517 = vpop.permute.xlu0 %1516
        %1518 = vrot.lane.b32.xlu0 %v482, 56
        %v1519 = vpop.permute.xlu0 %1518
        %1520 = vrot.lane.b32.xlu0 %v484, 56
        %v1521 = vpop.permute.xlu0 %1520
        %1522 = vrot.lane.b32.xlu0 %v483, 56
        %v1523 = vpop.permute.xlu0 %1522
        %1524 = vrot.lane.b32.xlu0 %v487, 56
        %v1525 = vpop.permute.xlu0 %1524
        %1526 = vrot.lane.b32.xlu0 %v489, 56
        %v1527 = vpop.permute.xlu0 %1526
        %1528 = vrot.lane.b32.xlu0 %v488, 56
        %v1529 = vpop.permute.xlu0 %1528
        %1530 = vrot.lane.b32.xlu0 %v492, 56
        %v1531 = vpop.permute.xlu0 %1530
        %1532 = vrot.lane.b32.xlu0 %v494, 56
        %v1533 = vpop.permute.xlu0 %1532
        %1534 = vrot.lane.b32.xlu0 %v493, 56
        %v1535 = vpop.permute.xlu0 %1534
        %1536 = vrot.lane.b32.xlu0 %v497, 56
        %v1537 = vpop.permute.xlu0 %1536
        %1538 = vrot.lane.b32.xlu0 %v499, 56
        %v1539 = vpop.permute.xlu0 %1538
        %1540 = vrot.lane.b32.xlu0 %v498, 56
        %v1541 = vpop.permute.xlu0 %1540
        %1542 = vrot.lane.b32.xlu0 %v502, 56
        %v1543 = vpop.permute.xlu0 %1542
        %1544 = vrot.lane.b32.xlu0 %v504, 56
        %v1545 = vpop.permute.xlu0 %1544
        %1546 = vrot.lane.b32.xlu0 %v503, 56
        %v1547 = vpop.permute.xlu0 %1546
        %1548 = vrot.lane.b32.xlu0 %v507, 56
        %v1549 = vpop.permute.xlu0 %1548
        %1550 = vrot.lane.b32.xlu0 %v509, 56
        %v1551 = vpop.permute.xlu0 %1550
        %1552 = vrot.lane.b32.xlu0 %v508, 56
        %v1553 = vpop.permute.xlu0 %1552
        %1554 = vrot.lane.b32.xlu0 %v512, 56
        %v1555 = vpop.permute.xlu0 %1554
        %1556 = vrot.lane.b32.xlu0 %v514, 56
        %v1557 = vpop.permute.xlu0 %1556
        %1558 = vrot.lane.b32.xlu0 %v513, 56
        %v1559 = vpop.permute.xlu0 %1558
        %1560 = vrot.lane.b32.xlu0 %v517, 56
        %v1561 = vpop.permute.xlu0 %1560
        %1562 = vrot.lane.b32.xlu0 %v519, 56
        %v1563 = vpop.permute.xlu0 %1562
        %1564 = vrot.lane.b32.xlu0 %v518, 56
        %v1565 = vpop.permute.xlu0 %1564
        %1566 = vrot.lane.b32.xlu0 %v522, 56
        %v1567 = vpop.permute.xlu0 %1566
        %1568 = vrot.lane.b32.xlu0 %v524, 56
        %v1569 = vpop.permute.xlu0 %1568
        %1570 = vrot.lane.b32.xlu0 %v523, 56
        %v1571 = vpop.permute.xlu0 %1570
        %1572 = vrot.lane.b32.xlu0 %v1040, 56
        %v1573 = vpop.permute.xlu0 %1572
        %1574 = vrot.lane.b32.xlu0 %v1042, 56
        %v1575 = vpop.permute.xlu0 %1574
        %1576 = vrot.lane.b32.xlu0 %v1041, 56
        %v1577 = vpop.permute.xlu0 %1576
        %1578 = vrot.lane.b32.xlu0 %v1485, 56
        %v1579 = vpop.permute.xlu0 %1578
        %1580 = vrot.lane.b32.xlu0 %v1487, 56
        %v1581 = vpop.permute.xlu0 %1580
        %1582 = vrot.lane.b32.xlu0 %v1486, 56
        %v1583 = vpop.permute.xlu0 %1582
        %v1632 = vrot.slane %v271, 2
        %v1633 = vrot.slane %v272, 2
        %v1634 = vsel %vm669, %v1632, %v1633
        %v1635 = vrot.slane %v273, 2
        %v1636 = vsel %vm669, %v1633, %v1635
        %1637 = vrot.lane.b32.xlu0 %v682, 64
        %v1638 = vpop.permute.xlu0 %1637
        %1639 = vrot.lane.b32.xlu0 %v684, 64
        %v1640 = vpop.permute.xlu0 %1639
        %1641 = vrot.lane.b32.xlu0 %v683, 64
        %v1642 = vpop.permute.xlu0 %1641
        %1643 = vrot.lane.b32.xlu0 %v687, 64
        %v1644 = vpop.permute.xlu0 %1643
        %1645 = vrot.lane.b32.xlu0 %v689, 64
        %v1646 = vpop.permute.xlu0 %1645
        %1647 = vrot.lane.b32.xlu0 %v688, 64
        %v1648 = vpop.permute.xlu0 %1647
        %1649 = vrot.lane.b32.xlu0 %v692, 64
        %v1650 = vpop.permute.xlu0 %1649
        %1651 = vrot.lane.b32.xlu0 %v694, 64
        %v1652 = vpop.permute.xlu0 %1651
        %1653 = vrot.lane.b32.xlu0 %v693, 64
        %v1654 = vpop.permute.xlu0 %1653
        %1655 = vrot.lane.b32.xlu0 %v697, 64
        %v1656 = vpop.permute.xlu0 %1655
        %1657 = vrot.lane.b32.xlu0 %v699, 64
        %v1658 = vpop.permute.xlu0 %1657
        %1659 = vrot.lane.b32.xlu0 %v698, 64
        %v1660 = vpop.permute.xlu0 %1659
        %1661 = vrot.lane.b32.xlu0 %v702, 64
        %v1662 = vpop.permute.xlu0 %1661
        %1663 = vrot.lane.b32.xlu0 %v704, 64
        %v1664 = vpop.permute.xlu0 %1663
        %1665 = vrot.lane.b32.xlu0 %v703, 64
        %v1666 = vpop.permute.xlu0 %1665
        %1667 = vrot.lane.b32.xlu0 %v707, 64
        %v1668 = vpop.permute.xlu0 %1667
        %1669 = vrot.lane.b32.xlu0 %v709, 64
        %v1670 = vpop.permute.xlu0 %1669
        %1671 = vrot.lane.b32.xlu0 %v708, 64
        %v1672 = vpop.permute.xlu0 %1671
        %1673 = vrot.lane.b32.xlu0 %v712, 64
        %v1674 = vpop.permute.xlu0 %1673
        %1675 = vrot.lane.b32.xlu0 %v714, 64
        %v1676 = vpop.permute.xlu0 %1675
        %1677 = vrot.lane.b32.xlu0 %v713, 64
        %v1678 = vpop.permute.xlu0 %1677
        %1679 = vrot.lane.b32.xlu0 %v717, 64
        %v1680 = vpop.permute.xlu0 %1679
        %1681 = vrot.lane.b32.xlu0 %v719, 64
        %v1682 = vpop.permute.xlu0 %1681
        %1683 = vrot.lane.b32.xlu0 %v718, 64
        %v1684 = vpop.permute.xlu0 %1683
        %1685 = vrot.lane.b32.xlu0 %v722, 64
        %v1686 = vpop.permute.xlu0 %1685
        %1687 = vrot.lane.b32.xlu0 %v724, 64
        %v1688 = vpop.permute.xlu0 %1687
        %1689 = vrot.lane.b32.xlu0 %v723, 64
        %v1690 = vpop.permute.xlu0 %1689
        %1691 = vrot.lane.b32.xlu0 %v727, 64
        %v1692 = vpop.permute.xlu0 %1691
        %1693 = vrot.lane.b32.xlu0 %v729, 64
        %v1694 = vpop.permute.xlu0 %1693
        %1695 = vrot.lane.b32.xlu0 %v728, 64
        %v1696 = vpop.permute.xlu0 %1695
        %1697 = vrot.lane.b32.xlu0 %v732, 64
        %v1698 = vpop.permute.xlu0 %1697
        %1699 = vrot.lane.b32.xlu0 %v734, 64
        %v1700 = vpop.permute.xlu0 %1699
        %1701 = vrot.lane.b32.xlu0 %v733, 64
        %v1702 = vpop.permute.xlu0 %1701
        %1703 = vrot.lane.b32.xlu0 %v737, 64
        %v1704 = vpop.permute.xlu0 %1703
        %1705 = vrot.lane.b32.xlu0 %v739, 64
        %v1706 = vpop.permute.xlu0 %1705
        %1707 = vrot.lane.b32.xlu0 %v738, 64
        %v1708 = vpop.permute.xlu0 %1707
        %1709 = vrot.lane.b32.xlu0 %v742, 64
        %v1710 = vpop.permute.xlu0 %1709
        %1711 = vrot.lane.b32.xlu0 %v744, 64
        %v1712 = vpop.permute.xlu0 %1711
        %1713 = vrot.lane.b32.xlu0 %v743, 64
        %v1714 = vpop.permute.xlu0 %1713
        %1715 = vrot.lane.b32.xlu0 %v747, 64
        %v1716 = vpop.permute.xlu0 %1715
        %1717 = vrot.lane.b32.xlu0 %v749, 64
        %v1718 = vpop.permute.xlu0 %1717
        %1719 = vrot.lane.b32.xlu0 %v748, 64
        %v1720 = vpop.permute.xlu0 %1719
        %1721 = vrot.lane.b32.xlu0 %v1189, 64
        %v1722 = vpop.permute.xlu0 %1721
        %1723 = vrot.lane.b32.xlu0 %v1191, 64
        %v1724 = vpop.permute.xlu0 %1723
        %1725 = vrot.lane.b32.xlu0 %v1190, 64
        %v1726 = vpop.permute.xlu0 %1725
        %1727 = vrot.lane.b32.xlu0 %v1634, 64
        %v1728 = vpop.permute.xlu0 %1727
        %1729 = vrot.lane.b32.xlu0 %v1636, 64
        %v1730 = vpop.permute.xlu0 %1729
        %1731 = vrot.lane.b32.xlu0 %v1635, 64
        %v1732 = vpop.permute.xlu0 %1731
        %vm1784 = vcmask 1040384
        %v1785 = vrot.slane %v217, 7
        %v1786 = vrot.slane %v218, 7
        %v1787 = vsel %vm1784, %v1785, %v1786
        %v1788 = vrot.slane %v219, 7
        %v1789 = vsel %vm1784, %v1786, %v1788
        %v1790 = vrot.slane %v220, 7
        %v1791 = vrot.slane %v221, 7
        %v1792 = vsel %vm1784, %v1790, %v1791
        %v1793 = vrot.slane %v222, 7
        %v1794 = vsel %vm1784, %v1791, %v1793
        %v1795 = vrot.slane %v223, 7
        %v1796 = vrot.slane %v224, 7
        %v1797 = vsel %vm1784, %v1795, %v1796
        %v1798 = vrot.slane %v225, 7
        %v1799 = vsel %vm1784, %v1796, %v1798
        %v1800 = vrot.slane %v226, 7
        %v1801 = vrot.slane %v227, 7
        %v1802 = vsel %vm1784, %v1800, %v1801
        %v1803 = vrot.slane %v228, 7
        %v1804 = vsel %vm1784, %v1801, %v1803
        %v1805 = vrot.slane %v229, 7
        %v1806 = vrot.slane %v230, 7
        %v1807 = vsel %vm1784, %v1805, %v1806
        %v1808 = vrot.slane %v231, 7
        %v1809 = vsel %vm1784, %v1806, %v1808
        %v1810 = vrot.slane %v232, 7
        %v1811 = vrot.slane %v233, 7
        %v1812 = vsel %vm1784, %v1810, %v1811
        %v1813 = vrot.slane %v234, 7
        %v1814 = vsel %vm1784, %v1811, %v1813
        %v1815 = vrot.slane %v235, 7
        %v1816 = vrot.slane %v236, 7
        %v1817 = vsel %vm1784, %v1815, %v1816
        %v1818 = vrot.slane %v237, 7
        %v1819 = vsel %vm1784, %v1816, %v1818
        %v1820 = vrot.slane %v238, 7
        %v1821 = vrot.slane %v239, 7
        %v1822 = vsel %vm1784, %v1820, %v1821
        %v1823 = vrot.slane %v240, 7
        %v1824 = vsel %vm1784, %v1821, %v1823
        %v1825 = vrot.slane %v241, 7
        %v1826 = vrot.slane %v242, 7
        %v1827 = vsel %vm1784, %v1825, %v1826
        %v1828 = vrot.slane %v243, 7
        %v1829 = vsel %vm1784, %v1826, %v1828
        %v1830 = vrot.slane %v244, 7
        %v1831 = vrot.slane %v245, 7
        %v1832 = vsel %vm1784, %v1830, %v1831
        %v1833 = vrot.slane %v246, 7
        %v1834 = vsel %vm1784, %v1831, %v1833
        %v1835 = vrot.slane %v247, 7
        %v1836 = vrot.slane %v248, 7
        %v1837 = vsel %vm1784, %v1835, %v1836
        %v1838 = vrot.slane %v249, 7
        %v1839 = vsel %vm1784, %v1836, %v1838
        %v1840 = vrot.slane %v250, 7
        %v1841 = vrot.slane %v251, 7
        %v1842 = vsel %vm1784, %v1840, %v1841
        %v1843 = vrot.slane %v252, 7
        %v1844 = vsel %vm1784, %v1841, %v1843
        %v1845 = vrot.slane %v253, 7
        %v1846 = vrot.slane %v254, 7
        %v1847 = vsel %vm1784, %v1845, %v1846
        %v1848 = vrot.slane %v255, 7
        %v1849 = vsel %vm1784, %v1846, %v1848
        %v1850 = vrot.slane %v256, 7
        %v1851 = vrot.slane %v257, 7
        %v1852 = vsel %vm1784, %v1850, %v1851
        %v1853 = vrot.slane %v258, 7
        %v1854 = vsel %vm1784, %v1851, %v1853
        %v1855 = vrot.slane %v259, 7
        %v1856 = vrot.slane %v260, 7
        %v1857 = vsel %vm1784, %v1855, %v1856
        %v1858 = vrot.slane %v261, 7
        %v1859 = vsel %vm1784, %v1856, %v1858
        %v1860 = vrot.slane %v262, 7
        %v1861 = vrot.slane %v263, 7
        %v1862 = vsel %vm1784, %v1860, %v1861
        %v1863 = vrot.slane %v264, 7
        %v1864 = vsel %vm1784, %v1861, %v1863
        %1865 = vrot.lane.b32.xlu0 %v1785, 72
        %v1866 = vpop.permute.xlu0 %1865
        %1867 = vrot.lane.b32.xlu0 %v1787, 72
        %v1868 = vpop.permute.xlu0 %1867
        %1869 = vrot.lane.b32.xlu0 %v1789, 72
        %v1870 = vpop.permute.xlu0 %1869
        %1871 = vrot.lane.b32.xlu0 %v1790, 72
        %v1872 = vpop.permute.xlu0 %1871
        %1873 = vrot.lane.b32.xlu0 %v1792, 72
        %v1874 = vpop.permute.xlu0 %1873
        %1875 = vrot.lane.b32.xlu0 %v1794, 72
        %v1876 = vpop.permute.xlu0 %1875
        %1877 = vrot.lane.b32.xlu0 %v1795, 72
        %v1878 = vpop.permute.xlu0 %1877
        %1879 = vrot.lane.b32.xlu0 %v1797, 72
        %v1880 = vpop.permute.xlu0 %1879
        %1881 = vrot.lane.b32.xlu0 %v1799, 72
        %v1882 = vpop.permute.xlu0 %1881
        %1883 = vrot.lane.b32.xlu0 %v1800, 72
        %v1884 = vpop.permute.xlu0 %1883
        %1885 = vrot.lane.b32.xlu0 %v1802, 72
        %v1886 = vpop.permute.xlu0 %1885
        %1887 = vrot.lane.b32.xlu0 %v1804, 72
        %v1888 = vpop.permute.xlu0 %1887
        %1889 = vrot.lane.b32.xlu0 %v1805, 72
        %v1890 = vpop.permute.xlu0 %1889
        %1891 = vrot.lane.b32.xlu0 %v1807, 72
        %v1892 = vpop.permute.xlu0 %1891
        %1893 = vrot.lane.b32.xlu0 %v1809, 72
        %v1894 = vpop.permute.xlu0 %1893
        %1895 = vrot.lane.b32.xlu0 %v1810, 72
        %v1896 = vpop.permute.xlu0 %1895
        %1897 = vrot.lane.b32.xlu0 %v1812, 72
        %v1898 = vpop.permute.xlu0 %1897
        %1899 = vrot.lane.b32.xlu0 %v1814, 72
        %v1900 = vpop.permute.xlu0 %1899
        %1901 = vrot.lane.b32.xlu0 %v1815, 72
        %v1902 = vpop.permute.xlu0 %1901
        %1903 = vrot.lane.b32.xlu0 %v1817, 72
        %v1904 = vpop.permute.xlu0 %1903
        %1905 = vrot.lane.b32.xlu0 %v1819, 72
        %v1906 = vpop.permute.xlu0 %1905
        %1907 = vrot.lane.b32.xlu0 %v1820, 72
        %v1908 = vpop.permute.xlu0 %1907
        %1909 = vrot.lane.b32.xlu0 %v1822, 72
        %v1910 = vpop.permute.xlu0 %1909
        %1911 = vrot.lane.b32.xlu0 %v1824, 72
        %v1912 = vpop.permute.xlu0 %1911
        %1913 = vrot.lane.b32.xlu0 %v1825, 72
        %v1914 = vpop.permute.xlu0 %1913
        %1915 = vrot.lane.b32.xlu0 %v1827, 72
        %v1916 = vpop.permute.xlu0 %1915
        %1917 = vrot.lane.b32.xlu0 %v1829, 72
        %v1918 = vpop.permute.xlu0 %1917
        %1919 = vrot.lane.b32.xlu0 %v1830, 72
        %v1920 = vpop.permute.xlu0 %1919
        %1921 = vrot.lane.b32.xlu0 %v1832, 72
        %v1922 = vpop.permute.xlu0 %1921
        %1923 = vrot.lane.b32.xlu0 %v1834, 72
        %v1924 = vpop.permute.xlu0 %1923
        %1925 = vrot.lane.b32.xlu0 %v1835, 72
        %v1926 = vpop.permute.xlu0 %1925
        %1927 = vrot.lane.b32.xlu0 %v1837, 72
        %v1928 = vpop.permute.xlu0 %1927
        %1929 = vrot.lane.b32.xlu0 %v1839, 72
        %v1930 = vpop.permute.xlu0 %1929
        %1931 = vrot.lane.b32.xlu0 %v1840, 72
        %v1932 = vpop.permute.xlu0 %1931
        %1933 = vrot.lane.b32.xlu0 %v1842, 72
        %v1934 = vpop.permute.xlu0 %1933
        %1935 = vrot.lane.b32.xlu0 %v1844, 72
        %v1936 = vpop.permute.xlu0 %1935
        %1937 = vrot.lane.b32.xlu0 %v1845, 72
        %v1938 = vpop.permute.xlu0 %1937
        %1939 = vrot.lane.b32.xlu0 %v1847, 72
        %v1940 = vpop.permute.xlu0 %1939
        %1941 = vrot.lane.b32.xlu0 %v1849, 72
        %v1942 = vpop.permute.xlu0 %1941
        %1943 = vrot.lane.b32.xlu0 %v1850, 72
        %v1944 = vpop.permute.xlu0 %1943
        %1945 = vrot.lane.b32.xlu0 %v1852, 72
        %v1946 = vpop.permute.xlu0 %1945
        %1947 = vrot.lane.b32.xlu0 %v1854, 72
        %v1948 = vpop.permute.xlu0 %1947
        %1949 = vrot.lane.b32.xlu0 %v1855, 72
        %v1950 = vpop.permute.xlu0 %1949
        %1951 = vrot.lane.b32.xlu0 %v1857, 72
        %v1952 = vpop.permute.xlu0 %1951
        %1953 = vrot.lane.b32.xlu0 %v1859, 72
        %v1954 = vpop.permute.xlu0 %1953
        %1955 = vrot.lane.b32.xlu0 %v1860, 72
        %v1956 = vpop.permute.xlu0 %1955
        %1957 = vrot.lane.b32.xlu0 %v1862, 72
        %v1958 = vpop.permute.xlu0 %1957
        %1959 = vrot.lane.b32.xlu0 %v1864, 72
        %v1960 = vpop.permute.xlu0 %1959
        %v2009 = vrot.slane %v217, 1
        %v2010 = vrot.slane %v218, 1
        %v2011 = vsel %vm444, %v2009, %v2010
        %v2012 = vrot.slane %v219, 1
        %v2013 = vsel %vm444, %v2010, %v2012
        %2014 = vrot.lane.b32.xlu0 %v2011, 80
        %v2015 = vpop.permute.xlu0 %2014
        %2016 = vrot.lane.b32.xlu0 %v2013, 80
        %v2017 = vpop.permute.xlu0 %2016
        %2018 = vrot.lane.b32.xlu0 %v2012, 80
        %v2019 = vpop.permute.xlu0 %2018
        %2020 = vrot.lane.b32.xlu0 %v447, 80
        %v2021 = vpop.permute.xlu0 %2020
        %2022 = vrot.lane.b32.xlu0 %v449, 80
        %v2023 = vpop.permute.xlu0 %2022
        %2024 = vrot.lane.b32.xlu0 %v448, 80
        %v2025 = vpop.permute.xlu0 %2024
        %2026 = vrot.lane.b32.xlu0 %v452, 80
        %v2027 = vpop.permute.xlu0 %2026
        %2028 = vrot.lane.b32.xlu0 %v454, 80
        %v2029 = vpop.permute.xlu0 %2028
        %2030 = vrot.lane.b32.xlu0 %v453, 80
        %v2031 = vpop.permute.xlu0 %2030
        %2032 = vrot.lane.b32.xlu0 %v457, 80
        %v2033 = vpop.permute.xlu0 %2032
        %2034 = vrot.lane.b32.xlu0 %v459, 80
        %v2035 = vpop.permute.xlu0 %2034
        %2036 = vrot.lane.b32.xlu0 %v458, 80
        %v2037 = vpop.permute.xlu0 %2036
        %2038 = vrot.lane.b32.xlu0 %v462, 80
        %v2039 = vpop.permute.xlu0 %2038
        %2040 = vrot.lane.b32.xlu0 %v464, 80
        %v2041 = vpop.permute.xlu0 %2040
        %2042 = vrot.lane.b32.xlu0 %v463, 80
        %v2043 = vpop.permute.xlu0 %2042
        %2044 = vrot.lane.b32.xlu0 %v467, 80
        %v2045 = vpop.permute.xlu0 %2044
        %2046 = vrot.lane.b32.xlu0 %v469, 80
        %v2047 = vpop.permute.xlu0 %2046
        %2048 = vrot.lane.b32.xlu0 %v468, 80
        %v2049 = vpop.permute.xlu0 %2048
        %2050 = vrot.lane.b32.xlu0 %v472, 80
        %v2051 = vpop.permute.xlu0 %2050
        %2052 = vrot.lane.b32.xlu0 %v474, 80
        %v2053 = vpop.permute.xlu0 %2052
        %2054 = vrot.lane.b32.xlu0 %v473, 80
        %v2055 = vpop.permute.xlu0 %2054
        %2056 = vrot.lane.b32.xlu0 %v477, 80
        %v2057 = vpop.permute.xlu0 %2056
        %2058 = vrot.lane.b32.xlu0 %v479, 80
        %v2059 = vpop.permute.xlu0 %2058
        %2060 = vrot.lane.b32.xlu0 %v478, 80
        %v2061 = vpop.permute.xlu0 %2060
        %2062 = vrot.lane.b32.xlu0 %v482, 80
        %v2063 = vpop.permute.xlu0 %2062
        %2064 = vrot.lane.b32.xlu0 %v484, 80
        %v2065 = vpop.permute.xlu0 %2064
        %2066 = vrot.lane.b32.xlu0 %v483, 80
        %v2067 = vpop.permute.xlu0 %2066
        %2068 = vrot.lane.b32.xlu0 %v487, 80
        %v2069 = vpop.permute.xlu0 %2068
        %2070 = vrot.lane.b32.xlu0 %v489, 80
        %v2071 = vpop.permute.xlu0 %2070
        %2072 = vrot.lane.b32.xlu0 %v488, 80
        %v2073 = vpop.permute.xlu0 %2072
        %2074 = vrot.lane.b32.xlu0 %v492, 80
        %v2075 = vpop.permute.xlu0 %2074
        %2076 = vrot.lane.b32.xlu0 %v494, 80
        %v2077 = vpop.permute.xlu0 %2076
        %2078 = vrot.lane.b32.xlu0 %v493, 80
        %v2079 = vpop.permute.xlu0 %2078
        %2080 = vrot.lane.b32.xlu0 %v497, 80
        %v2081 = vpop.permute.xlu0 %2080
        %2082 = vrot.lane.b32.xlu0 %v499, 80
        %v2083 = vpop.permute.xlu0 %2082
        %2084 = vrot.lane.b32.xlu0 %v498, 80
        %v2085 = vpop.permute.xlu0 %2084
        %2086 = vrot.lane.b32.xlu0 %v502, 80
        %v2087 = vpop.permute.xlu0 %2086
        %2088 = vrot.lane.b32.xlu0 %v504, 80
        %v2089 = vpop.permute.xlu0 %2088
        %2090 = vrot.lane.b32.xlu0 %v503, 80
        %v2091 = vpop.permute.xlu0 %2090
        %2092 = vrot.lane.b32.xlu0 %v507, 80
        %v2093 = vpop.permute.xlu0 %2092
        %2094 = vrot.lane.b32.xlu0 %v509, 80
        %v2095 = vpop.permute.xlu0 %2094
        %2096 = vrot.lane.b32.xlu0 %v508, 80
        %v2097 = vpop.permute.xlu0 %2096
        %2098 = vrot.lane.b32.xlu0 %v512, 80
        %v2099 = vpop.permute.xlu0 %2098
        %2100 = vrot.lane.b32.xlu0 %v514, 80
        %v2101 = vpop.permute.xlu0 %2100
        %2102 = vrot.lane.b32.xlu0 %v513, 80
        %v2103 = vpop.permute.xlu0 %2102
        %2104 = vrot.lane.b32.xlu0 %v517, 80
        %v2105 = vpop.permute.xlu0 %2104
        %2106 = vrot.lane.b32.xlu0 %v519, 80
        %v2107 = vpop.permute.xlu0 %2106
        %2108 = vrot.lane.b32.xlu0 %v518, 80
        %v2109 = vpop.permute.xlu0 %2108
        %v2158 = vrot.slane %v217, 3
        %v2159 = vrot.slane %v218, 3
        %v2160 = vsel %vm328, %v2158, %v2159
        %v2161 = vrot.slane %v219, 3
        %v2162 = vsel %vm328, %v2159, %v2161
        %v2163 = vrot.slane %v220, 3
        %v2164 = vrot.slane %v221, 3
        %v2165 = vsel %vm328, %v2163, %v2164
        %v2166 = vrot.slane %v222, 3
        %v2167 = vsel %vm328, %v2164, %v2166
        %2168 = vrot.lane.b32.xlu0 %v2160, 88
        %v2169 = vpop.permute.xlu0 %2168
        %2170 = vrot.lane.b32.xlu0 %v2162, 88
        %v2171 = vpop.permute.xlu0 %2170
        %2172 = vrot.lane.b32.xlu0 %v2161, 88
        %v2173 = vpop.permute.xlu0 %2172
        %2174 = vrot.lane.b32.xlu0 %v2165, 88
        %v2175 = vpop.permute.xlu0 %2174
        %2176 = vrot.lane.b32.xlu0 %v2167, 88
        %v2177 = vpop.permute.xlu0 %2176
        %2178 = vrot.lane.b32.xlu0 %v2166, 88
        %v2179 = vpop.permute.xlu0 %2178
        %2180 = vrot.lane.b32.xlu0 %v331, 88
        %v2181 = vpop.permute.xlu0 %2180
        %2182 = vrot.lane.b32.xlu0 %v333, 88
        %v2183 = vpop.permute.xlu0 %2182
        %2184 = vrot.lane.b32.xlu0 %v332, 88
        %v2185 = vpop.permute.xlu0 %2184
        %2186 = vrot.lane.b32.xlu0 %v336, 88
        %v2187 = vpop.permute.xlu0 %2186
        %2188 = vrot.lane.b32.xlu0 %v338, 88
        %v2189 = vpop.permute.xlu0 %2188
        %2190 = vrot.lane.b32.xlu0 %v337, 88
        %v2191 = vpop.permute.xlu0 %2190
        %2192 = vrot.lane.b32.xlu0 %v341, 88
        %v2193 = vpop.permute.xlu0 %2192
        %2194 = vrot.lane.b32.xlu0 %v343, 88
        %v2195 = vpop.permute.xlu0 %2194
        %2196 = vrot.lane.b32.xlu0 %v342, 88
        %v2197 = vpop.permute.xlu0 %2196
        %2198 = vrot.lane.b32.xlu0 %v346, 88
        %v2199 = vpop.permute.xlu0 %2198
        %2200 = vrot.lane.b32.xlu0 %v348, 88
        %v2201 = vpop.permute.xlu0 %2200
        %2202 = vrot.lane.b32.xlu0 %v347, 88
        %v2203 = vpop.permute.xlu0 %2202
        %2204 = vrot.lane.b32.xlu0 %v351, 88
        %v2205 = vpop.permute.xlu0 %2204
        %2206 = vrot.lane.b32.xlu0 %v353, 88
        %v2207 = vpop.permute.xlu0 %2206
        %2208 = vrot.lane.b32.xlu0 %v352, 88
        %v2209 = vpop.permute.xlu0 %2208
        %2210 = vrot.lane.b32.xlu0 %v356, 88
        %v2211 = vpop.permute.xlu0 %2210
        %2212 = vrot.lane.b32.xlu0 %v358, 88
        %v2213 = vpop.permute.xlu0 %2212
        %2214 = vrot.lane.b32.xlu0 %v357, 88
        %v2215 = vpop.permute.xlu0 %2214
        %2216 = vrot.lane.b32.xlu0 %v361, 88
        %v2217 = vpop.permute.xlu0 %2216
        %2218 = vrot.lane.b32.xlu0 %v363, 88
        %v2219 = vpop.permute.xlu0 %2218
        %2220 = vrot.lane.b32.xlu0 %v362, 88
        %v2221 = vpop.permute.xlu0 %2220
        %2222 = vrot.lane.b32.xlu0 %v366, 88
        %v2223 = vpop.permute.xlu0 %2222
        %2224 = vrot.lane.b32.xlu0 %v368, 88
        %v2225 = vpop.permute.xlu0 %2224
        %2226 = vrot.lane.b32.xlu0 %v367, 88
        %v2227 = vpop.permute.xlu0 %2226
        %2228 = vrot.lane.b32.xlu0 %v371, 88
        %v2229 = vpop.permute.xlu0 %2228
        %2230 = vrot.lane.b32.xlu0 %v373, 88
        %v2231 = vpop.permute.xlu0 %2230
        %2232 = vrot.lane.b32.xlu0 %v372, 88
        %v2233 = vpop.permute.xlu0 %2232
        %2234 = vrot.lane.b32.xlu0 %v376, 88
        %v2235 = vpop.permute.xlu0 %2234
        %2236 = vrot.lane.b32.xlu0 %v378, 88
        %v2237 = vpop.permute.xlu0 %2236
        %2238 = vrot.lane.b32.xlu0 %v377, 88
        %v2239 = vpop.permute.xlu0 %2238
        %2240 = vrot.lane.b32.xlu0 %v381, 88
        %v2241 = vpop.permute.xlu0 %2240
        %2242 = vrot.lane.b32.xlu0 %v383, 88
        %v2243 = vpop.permute.xlu0 %2242
        %2244 = vrot.lane.b32.xlu0 %v382, 88
        %v2245 = vpop.permute.xlu0 %2244
        %2246 = vrot.lane.b32.xlu0 %v386, 88
        %v2247 = vpop.permute.xlu0 %2246
        %2248 = vrot.lane.b32.xlu0 %v388, 88
        %v2249 = vpop.permute.xlu0 %2248
        %2250 = vrot.lane.b32.xlu0 %v387, 88
        %v2251 = vpop.permute.xlu0 %2250
        %2252 = vrot.lane.b32.xlu0 %v391, 88
        %v2253 = vpop.permute.xlu0 %2252
        %2254 = vrot.lane.b32.xlu0 %v393, 88
        %v2255 = vpop.permute.xlu0 %2254
        %2256 = vrot.lane.b32.xlu0 %v392, 88
        %v2257 = vpop.permute.xlu0 %2256
        %2258 = vrot.lane.b32.xlu0 %v396, 88
        %v2259 = vpop.permute.xlu0 %2258
        %2260 = vrot.lane.b32.xlu0 %v398, 88
        %v2261 = vpop.permute.xlu0 %2260
        %2262 = vrot.lane.b32.xlu0 %v397, 88
        %v2263 = vpop.permute.xlu0 %2262
        %v2312 = vrot.slane %v265, 7
        %v2313 = vrot.slane %v266, 7
        %v2314 = vsel %vm1784, %v2312, %v2313
        %v2315 = vrot.slane %v267, 7
        %v2316 = vsel %vm1784, %v2313, %v2315
        %v2317 = vrot.slane %v268, 7
        %v2318 = vrot.slane %v269, 7
        %v2319 = vsel %vm1784, %v2317, %v2318
        %v2320 = vrot.slane %v270, 7
        %v2321 = vsel %vm1784, %v2318, %v2320
        %2322 = vrot.lane.b32.xlu0 %v1795, 96
        %v2323 = vpop.permute.xlu0 %2322
        %2324 = vrot.lane.b32.xlu0 %v1797, 96
        %v2325 = vpop.permute.xlu0 %2324
        %2326 = vrot.lane.b32.xlu0 %v1799, 96
        %v2327 = vpop.permute.xlu0 %2326
        %2328 = vrot.lane.b32.xlu0 %v1800, 96
        %v2329 = vpop.permute.xlu0 %2328
        %2330 = vrot.lane.b32.xlu0 %v1802, 96
        %v2331 = vpop.permute.xlu0 %2330
        %2332 = vrot.lane.b32.xlu0 %v1804, 96
        %v2333 = vpop.permute.xlu0 %2332
        %2334 = vrot.lane.b32.xlu0 %v1805, 96
        %v2335 = vpop.permute.xlu0 %2334
        %2336 = vrot.lane.b32.xlu0 %v1807, 96
        %v2337 = vpop.permute.xlu0 %2336
        %2338 = vrot.lane.b32.xlu0 %v1809, 96
        %v2339 = vpop.permute.xlu0 %2338
        %2340 = vrot.lane.b32.xlu0 %v1810, 96
        %v2341 = vpop.permute.xlu0 %2340
        %2342 = vrot.lane.b32.xlu0 %v1812, 96
        %v2343 = vpop.permute.xlu0 %2342
        %2344 = vrot.lane.b32.xlu0 %v1814, 96
        %v2345 = vpop.permute.xlu0 %2344
        %2346 = vrot.lane.b32.xlu0 %v1815, 96
        %v2347 = vpop.permute.xlu0 %2346
        %2348 = vrot.lane.b32.xlu0 %v1817, 96
        %v2349 = vpop.permute.xlu0 %2348
        %2350 = vrot.lane.b32.xlu0 %v1819, 96
        %v2351 = vpop.permute.xlu0 %2350
        %2352 = vrot.lane.b32.xlu0 %v1820, 96
        %v2353 = vpop.permute.xlu0 %2352
        %2354 = vrot.lane.b32.xlu0 %v1822, 96
        %v2355 = vpop.permute.xlu0 %2354
        %2356 = vrot.lane.b32.xlu0 %v1824, 96
        %v2357 = vpop.permute.xlu0 %2356
        %2358 = vrot.lane.b32.xlu0 %v1825, 96
        %v2359 = vpop.permute.xlu0 %2358
        %2360 = vrot.lane.b32.xlu0 %v1827, 96
        %v2361 = vpop.permute.xlu0 %2360
        %2362 = vrot.lane.b32.xlu0 %v1829, 96
        %v2363 = vpop.permute.xlu0 %2362
        %2364 = vrot.lane.b32.xlu0 %v1830, 96
        %v2365 = vpop.permute.xlu0 %2364
        %2366 = vrot.lane.b32.xlu0 %v1832, 96
        %v2367 = vpop.permute.xlu0 %2366
        %2368 = vrot.lane.b32.xlu0 %v1834, 96
        %v2369 = vpop.permute.xlu0 %2368
        %2370 = vrot.lane.b32.xlu0 %v1835, 96
        %v2371 = vpop.permute.xlu0 %2370
        %2372 = vrot.lane.b32.xlu0 %v1837, 96
        %v2373 = vpop.permute.xlu0 %2372
        %2374 = vrot.lane.b32.xlu0 %v1839, 96
        %v2375 = vpop.permute.xlu0 %2374
        %2376 = vrot.lane.b32.xlu0 %v1840, 96
        %v2377 = vpop.permute.xlu0 %2376
        %2378 = vrot.lane.b32.xlu0 %v1842, 96
        %v2379 = vpop.permute.xlu0 %2378
        %2380 = vrot.lane.b32.xlu0 %v1844, 96
        %v2381 = vpop.permute.xlu0 %2380
        %2382 = vrot.lane.b32.xlu0 %v1845, 96
        %v2383 = vpop.permute.xlu0 %2382
        %2384 = vrot.lane.b32.xlu0 %v1847, 96
        %v2385 = vpop.permute.xlu0 %2384
        %2386 = vrot.lane.b32.xlu0 %v1849, 96
        %v2387 = vpop.permute.xlu0 %2386
        %2388 = vrot.lane.b32.xlu0 %v1850, 96
        %v2389 = vpop.permute.xlu0 %2388
        %2390 = vrot.lane.b32.xlu0 %v1852, 96
        %v2391 = vpop.permute.xlu0 %2390
        %2392 = vrot.lane.b32.xlu0 %v1854, 96
        %v2393 = vpop.permute.xlu0 %2392
        %2394 = vrot.lane.b32.xlu0 %v1855, 96
        %v2395 = vpop.permute.xlu0 %2394
        %2396 = vrot.lane.b32.xlu0 %v1857, 96
        %v2397 = vpop.permute.xlu0 %2396
        %2398 = vrot.lane.b32.xlu0 %v1859, 96
        %v2399 = vpop.permute.xlu0 %2398
        %2400 = vrot.lane.b32.xlu0 %v1860, 96
        %v2401 = vpop.permute.xlu0 %2400
        %2402 = vrot.lane.b32.xlu0 %v1862, 96
        %v2403 = vpop.permute.xlu0 %2402
        %2404 = vrot.lane.b32.xlu0 %v1864, 96
        %v2405 = vpop.permute.xlu0 %2404
        %2406 = vrot.lane.b32.xlu0 %v2312, 96
        %v2407 = vpop.permute.xlu0 %2406
        %2408 = vrot.lane.b32.xlu0 %v2314, 96
        %v2409 = vpop.permute.xlu0 %2408
        %2410 = vrot.lane.b32.xlu0 %v2316, 96
        %v2411 = vpop.permute.xlu0 %2410
        %2412 = vrot.lane.b32.xlu0 %v2317, 96
        %v2413 = vpop.permute.xlu0 %2412
        %2414 = vrot.lane.b32.xlu0 %v2319, 96
        %v2415 = vpop.permute.xlu0 %2414
        %2416 = vrot.lane.b32.xlu0 %v2321, 96
        %v2417 = vpop.permute.xlu0 %2416
        %2466 = vrot.lane.b32.xlu0 %v452, 104
        %v2467 = vpop.permute.xlu0 %2466
        %2468 = vrot.lane.b32.xlu0 %v454, 104
        %v2469 = vpop.permute.xlu0 %2468
        %2470 = vrot.lane.b32.xlu0 %v453, 104
        %v2471 = vpop.permute.xlu0 %2470
        %2472 = vrot.lane.b32.xlu0 %v457, 104
        %v2473 = vpop.permute.xlu0 %2472
        %2474 = vrot.lane.b32.xlu0 %v459, 104
        %v2475 = vpop.permute.xlu0 %2474
        %2476 = vrot.lane.b32.xlu0 %v458, 104
        %v2477 = vpop.permute.xlu0 %2476
        %2478 = vrot.lane.b32.xlu0 %v462, 104
        %v2479 = vpop.permute.xlu0 %2478
        %2480 = vrot.lane.b32.xlu0 %v464, 104
        %v2481 = vpop.permute.xlu0 %2480
        %2482 = vrot.lane.b32.xlu0 %v463, 104
        %v2483 = vpop.permute.xlu0 %2482
        %2484 = vrot.lane.b32.xlu0 %v467, 104
        %v2485 = vpop.permute.xlu0 %2484
        %2486 = vrot.lane.b32.xlu0 %v469, 104
        %v2487 = vpop.permute.xlu0 %2486
        %2488 = vrot.lane.b32.xlu0 %v468, 104
        %v2489 = vpop.permute.xlu0 %2488
        %2490 = vrot.lane.b32.xlu0 %v472, 104
        %v2491 = vpop.permute.xlu0 %2490
        %2492 = vrot.lane.b32.xlu0 %v474, 104
        %v2493 = vpop.permute.xlu0 %2492
        %2494 = vrot.lane.b32.xlu0 %v473, 104
        %v2495 = vpop.permute.xlu0 %2494
        %2496 = vrot.lane.b32.xlu0 %v477, 104
        %v2497 = vpop.permute.xlu0 %2496
        %2498 = vrot.lane.b32.xlu0 %v479, 104
        %v2499 = vpop.permute.xlu0 %2498
        %2500 = vrot.lane.b32.xlu0 %v478, 104
        %v2501 = vpop.permute.xlu0 %2500
        %2502 = vrot.lane.b32.xlu0 %v482, 104
        %v2503 = vpop.permute.xlu0 %2502
        %2504 = vrot.lane.b32.xlu0 %v484, 104
        %v2505 = vpop.permute.xlu0 %2504
        %2506 = vrot.lane.b32.xlu0 %v483, 104
        %v2507 = vpop.permute.xlu0 %2506
        %2508 = vrot.lane.b32.xlu0 %v487, 104
        %v2509 = vpop.permute.xlu0 %2508
        %2510 = vrot.lane.b32.xlu0 %v489, 104
        %v2511 = vpop.permute.xlu0 %2510
        %2512 = vrot.lane.b32.xlu0 %v488, 104
        %v2513 = vpop.permute.xlu0 %2512
        %2514 = vrot.lane.b32.xlu0 %v492, 104
        %v2515 = vpop.permute.xlu0 %2514
        %2516 = vrot.lane.b32.xlu0 %v494, 104
        %v2517 = vpop.permute.xlu0 %2516
        %2518 = vrot.lane.b32.xlu0 %v493, 104
        %v2519 = vpop.permute.xlu0 %2518
        %2520 = vrot.lane.b32.xlu0 %v497, 104
        %v2521 = vpop.permute.xlu0 %2520
        %2522 = vrot.lane.b32.xlu0 %v499, 104
        %v2523 = vpop.permute.xlu0 %2522
        %2524 = vrot.lane.b32.xlu0 %v498, 104
        %v2525 = vpop.permute.xlu0 %2524
        %2526 = vrot.lane.b32.xlu0 %v502, 104
        %v2527 = vpop.permute.xlu0 %2526
        %2528 = vrot.lane.b32.xlu0 %v504, 104
        %v2529 = vpop.permute.xlu0 %2528
        %2530 = vrot.lane.b32.xlu0 %v503, 104
        %v2531 = vpop.permute.xlu0 %2530
        %2532 = vrot.lane.b32.xlu0 %v507, 104
        %v2533 = vpop.permute.xlu0 %2532
        %2534 = vrot.lane.b32.xlu0 %v509, 104
        %v2535 = vpop.permute.xlu0 %2534
        %2536 = vrot.lane.b32.xlu0 %v508, 104
        %v2537 = vpop.permute.xlu0 %2536
        %2538 = vrot.lane.b32.xlu0 %v512, 104
        %v2539 = vpop.permute.xlu0 %2538
        %2540 = vrot.lane.b32.xlu0 %v514, 104
        %v2541 = vpop.permute.xlu0 %2540
        %2542 = vrot.lane.b32.xlu0 %v513, 104
        %v2543 = vpop.permute.xlu0 %2542
        %2544 = vrot.lane.b32.xlu0 %v517, 104
        %v2545 = vpop.permute.xlu0 %2544
        %2546 = vrot.lane.b32.xlu0 %v519, 104
        %v2547 = vpop.permute.xlu0 %2546
        %2548 = vrot.lane.b32.xlu0 %v518, 104
        %v2549 = vpop.permute.xlu0 %2548
        %2550 = vrot.lane.b32.xlu0 %v522, 104
        %v2551 = vpop.permute.xlu0 %2550
        %2552 = vrot.lane.b32.xlu0 %v524, 104
        %v2553 = vpop.permute.xlu0 %2552
        %2554 = vrot.lane.b32.xlu0 %v523, 104
        %v2555 = vpop.permute.xlu0 %2554
        %2556 = vrot.lane.b32.xlu0 %v1040, 104
        %v2557 = vpop.permute.xlu0 %2556
        %2558 = vrot.lane.b32.xlu0 %v1042, 104
        %v2559 = vpop.permute.xlu0 %2558
        %2560 = vrot.lane.b32.xlu0 %v1041, 104
        %v2561 = vpop.permute.xlu0 %2560
        %2610 = vrot.lane.b32.xlu0 %v331, 112
        %v2611 = vpop.permute.xlu0 %2610
        %2612 = vrot.lane.b32.xlu0 %v333, 112
        %v2613 = vpop.permute.xlu0 %2612
        %2614 = vrot.lane.b32.xlu0 %v332, 112
        %v2615 = vpop.permute.xlu0 %2614
        %2616 = vrot.lane.b32.xlu0 %v336, 112
        %v2617 = vpop.permute.xlu0 %2616
        %2618 = vrot.lane.b32.xlu0 %v338, 112
        %v2619 = vpop.permute.xlu0 %2618
        %2620 = vrot.lane.b32.xlu0 %v337, 112
        %v2621 = vpop.permute.xlu0 %2620
        %2622 = vrot.lane.b32.xlu0 %v341, 112
        %v2623 = vpop.permute.xlu0 %2622
        %2624 = vrot.lane.b32.xlu0 %v343, 112
        %v2625 = vpop.permute.xlu0 %2624
        %2626 = vrot.lane.b32.xlu0 %v342, 112
        %v2627 = vpop.permute.xlu0 %2626
        %2628 = vrot.lane.b32.xlu0 %v346, 112
        %v2629 = vpop.permute.xlu0 %2628
        %2630 = vrot.lane.b32.xlu0 %v348, 112
        %v2631 = vpop.permute.xlu0 %2630
        %2632 = vrot.lane.b32.xlu0 %v347, 112
        %v2633 = vpop.permute.xlu0 %2632
        %2634 = vrot.lane.b32.xlu0 %v351, 112
        %v2635 = vpop.permute.xlu0 %2634
        %2636 = vrot.lane.b32.xlu0 %v353, 112
        %v2637 = vpop.permute.xlu0 %2636
        %2638 = vrot.lane.b32.xlu0 %v352, 112
        %v2639 = vpop.permute.xlu0 %2638
        %2640 = vrot.lane.b32.xlu0 %v356, 112
        %v2641 = vpop.permute.xlu0 %2640
        %2642 = vrot.lane.b32.xlu0 %v358, 112
        %v2643 = vpop.permute.xlu0 %2642
        %2644 = vrot.lane.b32.xlu0 %v357, 112
        %v2645 = vpop.permute.xlu0 %2644
        %2646 = vrot.lane.b32.xlu0 %v361, 112
        %v2647 = vpop.permute.xlu0 %2646
        %2648 = vrot.lane.b32.xlu0 %v363, 112
        %v2649 = vpop.permute.xlu0 %2648
        %2650 = vrot.lane.b32.xlu0 %v362, 112
        %v2651 = vpop.permute.xlu0 %2650
        %2652 = vrot.lane.b32.xlu0 %v366, 112
        %v2653 = vpop.permute.xlu0 %2652
        %2654 = vrot.lane.b32.xlu0 %v368, 112
        %v2655 = vpop.permute.xlu0 %2654
        %2656 = vrot.lane.b32.xlu0 %v367, 112
        %v2657 = vpop.permute.xlu0 %2656
        %2658 = vrot.lane.b32.xlu0 %v371, 112
        %v2659 = vpop.permute.xlu0 %2658
        %2660 = vrot.lane.b32.xlu0 %v373, 112
        %v2661 = vpop.permute.xlu0 %2660
        %2662 = vrot.lane.b32.xlu0 %v372, 112
        %v2663 = vpop.permute.xlu0 %2662
        %2664 = vrot.lane.b32.xlu0 %v376, 112
        %v2665 = vpop.permute.xlu0 %2664
        %2666 = vrot.lane.b32.xlu0 %v378, 112
        %v2667 = vpop.permute.xlu0 %2666
        %2668 = vrot.lane.b32.xlu0 %v377, 112
        %v2669 = vpop.permute.xlu0 %2668
        %2670 = vrot.lane.b32.xlu0 %v381, 112
        %v2671 = vpop.permute.xlu0 %2670
        %2672 = vrot.lane.b32.xlu0 %v383, 112
        %v2673 = vpop.permute.xlu0 %2672
        %2674 = vrot.lane.b32.xlu0 %v382, 112
        %v2675 = vpop.permute.xlu0 %2674
        %2676 = vrot.lane.b32.xlu0 %v386, 112
        %v2677 = vpop.permute.xlu0 %2676
        %2678 = vrot.lane.b32.xlu0 %v388, 112
        %v2679 = vpop.permute.xlu0 %2678
        %2680 = vrot.lane.b32.xlu0 %v387, 112
        %v2681 = vpop.permute.xlu0 %2680
        %2682 = vrot.lane.b32.xlu0 %v391, 112
        %v2683 = vpop.permute.xlu0 %2682
        %2684 = vrot.lane.b32.xlu0 %v393, 112
        %v2685 = vpop.permute.xlu0 %2684
        %2686 = vrot.lane.b32.xlu0 %v392, 112
        %v2687 = vpop.permute.xlu0 %2686
        %2688 = vrot.lane.b32.xlu0 %v396, 112
        %v2689 = vpop.permute.xlu0 %2688
        %2690 = vrot.lane.b32.xlu0 %v398, 112
        %v2691 = vpop.permute.xlu0 %2690
        %2692 = vrot.lane.b32.xlu0 %v397, 112
        %v2693 = vpop.permute.xlu0 %2692
        %2694 = vrot.lane.b32.xlu0 %v401, 112
        %v2695 = vpop.permute.xlu0 %2694
        %2696 = vrot.lane.b32.xlu0 %v403, 112
        %v2697 = vpop.permute.xlu0 %2696
        %2698 = vrot.lane.b32.xlu0 %v402, 112
        %v2699 = vpop.permute.xlu0 %2698
        %2700 = vrot.lane.b32.xlu0 %v406, 112
        %v2701 = vpop.permute.xlu0 %2700
        %2702 = vrot.lane.b32.xlu0 %v408, 112
        %v2703 = vpop.permute.xlu0 %2702
        %2704 = vrot.lane.b32.xlu0 %v407, 112
        %v2705 = vpop.permute.xlu0 %2704
        %v2757 = vrot.slane %v271, 7
        %v2758 = vrot.slane %v272, 7
        %v2759 = vsel %vm1784, %v2757, %v2758
        %v2760 = vrot.slane %v273, 7
        %v2761 = vsel %vm1784, %v2758, %v2760
        %v2762 = vrot.slane %v274, 7
        %v2763 = vrot.slane %v275, 7
        %v2764 = vsel %vm1784, %v2762, %v2763
        %v2765 = vrot.slane %v276, 7
        %v2766 = vsel %vm1784, %v2763, %v2765
        %2767 = vrot.lane.b32.xlu0 %v1805, 120
        %v2768 = vpop.permute.xlu0 %2767
        %2769 = vrot.lane.b32.xlu0 %v1807, 120
        %v2770 = vpop.permute.xlu0 %2769
        %2771 = vrot.lane.b32.xlu0 %v1809, 120
        %v2772 = vpop.permute.xlu0 %2771
        %2773 = vrot.lane.b32.xlu0 %v1810, 120
        %v2774 = vpop.permute.xlu0 %2773
        %2775 = vrot.lane.b32.xlu0 %v1812, 120
        %v2776 = vpop.permute.xlu0 %2775
        %2777 = vrot.lane.b32.xlu0 %v1814, 120
        %v2778 = vpop.permute.xlu0 %2777
        %2779 = vrot.lane.b32.xlu0 %v1815, 120
        %v2780 = vpop.permute.xlu0 %2779
        %2781 = vrot.lane.b32.xlu0 %v1817, 120
        %v2782 = vpop.permute.xlu0 %2781
        %2783 = vrot.lane.b32.xlu0 %v1819, 120
        %v2784 = vpop.permute.xlu0 %2783
        %2785 = vrot.lane.b32.xlu0 %v1820, 120
        %v2786 = vpop.permute.xlu0 %2785
        %2787 = vrot.lane.b32.xlu0 %v1822, 120
        %v2788 = vpop.permute.xlu0 %2787
        %2789 = vrot.lane.b32.xlu0 %v1824, 120
        %v2790 = vpop.permute.xlu0 %2789
        %2791 = vrot.lane.b32.xlu0 %v1825, 120
        %v2792 = vpop.permute.xlu0 %2791
        %2793 = vrot.lane.b32.xlu0 %v1827, 120
        %v2794 = vpop.permute.xlu0 %2793
        %2795 = vrot.lane.b32.xlu0 %v1829, 120
        %v2796 = vpop.permute.xlu0 %2795
        %2797 = vrot.lane.b32.xlu0 %v1830, 120
        %v2798 = vpop.permute.xlu0 %2797
        %2799 = vrot.lane.b32.xlu0 %v1832, 120
        %v2800 = vpop.permute.xlu0 %2799
        %2801 = vrot.lane.b32.xlu0 %v1834, 120
        %v2802 = vpop.permute.xlu0 %2801
        %2803 = vrot.lane.b32.xlu0 %v1835, 120
        %v2804 = vpop.permute.xlu0 %2803
        %2805 = vrot.lane.b32.xlu0 %v1837, 120
        %v2806 = vpop.permute.xlu0 %2805
        %2807 = vrot.lane.b32.xlu0 %v1839, 120
        %v2808 = vpop.permute.xlu0 %2807
        %2809 = vrot.lane.b32.xlu0 %v1840, 120
        %v2810 = vpop.permute.xlu0 %2809
        %2811 = vrot.lane.b32.xlu0 %v1842, 120
        %v2812 = vpop.permute.xlu0 %2811
        %2813 = vrot.lane.b32.xlu0 %v1844, 120
        %v2814 = vpop.permute.xlu0 %2813
        %2815 = vrot.lane.b32.xlu0 %v1845, 120
        %v2816 = vpop.permute.xlu0 %2815
        %2817 = vrot.lane.b32.xlu0 %v1847, 120
        %v2818 = vpop.permute.xlu0 %2817
        %2819 = vrot.lane.b32.xlu0 %v1849, 120
        %v2820 = vpop.permute.xlu0 %2819
        %2821 = vrot.lane.b32.xlu0 %v1850, 120
        %v2822 = vpop.permute.xlu0 %2821
        %2823 = vrot.lane.b32.xlu0 %v1852, 120
        %v2824 = vpop.permute.xlu0 %2823
        %2825 = vrot.lane.b32.xlu0 %v1854, 120
        %v2826 = vpop.permute.xlu0 %2825
        %2827 = vrot.lane.b32.xlu0 %v1855, 120
        %v2828 = vpop.permute.xlu0 %2827
        %2829 = vrot.lane.b32.xlu0 %v1857, 120
        %v2830 = vpop.permute.xlu0 %2829
        %2831 = vrot.lane.b32.xlu0 %v1859, 120
        %v2832 = vpop.permute.xlu0 %2831
        %2833 = vrot.lane.b32.xlu0 %v1860, 120
        %v2834 = vpop.permute.xlu0 %2833
        %2835 = vrot.lane.b32.xlu0 %v1862, 120
        %v2836 = vpop.permute.xlu0 %2835
        %2837 = vrot.lane.b32.xlu0 %v1864, 120
        %v2838 = vpop.permute.xlu0 %2837
        %2839 = vrot.lane.b32.xlu0 %v2312, 120
        %v2840 = vpop.permute.xlu0 %2839
        %2841 = vrot.lane.b32.xlu0 %v2314, 120
        %v2842 = vpop.permute.xlu0 %2841
        %2843 = vrot.lane.b32.xlu0 %v2316, 120
        %v2844 = vpop.permute.xlu0 %2843
        %2845 = vrot.lane.b32.xlu0 %v2317, 120
        %v2846 = vpop.permute.xlu0 %2845
        %2847 = vrot.lane.b32.xlu0 %v2319, 120
        %v2848 = vpop.permute.xlu0 %2847
        %2849 = vrot.lane.b32.xlu0 %v2321, 120
        %v2850 = vpop.permute.xlu0 %2849
        %2851 = vrot.lane.b32.xlu0 %v2757, 120
        %v2852 = vpop.permute.xlu0 %2851
        %2853 = vrot.lane.b32.xlu0 %v2759, 120
        %v2854 = vpop.permute.xlu0 %2853
        %2855 = vrot.lane.b32.xlu0 %v2761, 120
        %v2856 = vpop.permute.xlu0 %2855
        %2857 = vrot.lane.b32.xlu0 %v2762, 120
        %v2858 = vpop.permute.xlu0 %2857
        %2859 = vrot.lane.b32.xlu0 %v2764, 120
        %v2860 = vpop.permute.xlu0 %2859
        %2861 = vrot.lane.b32.xlu0 %v2766, 120
        %v2862 = vpop.permute.xlu0 %2861
        %vm2911 = vcmask 64512
        %v2912 = vsel %vm2911, %v220, %v526
        %v2913 = vsel %vm2911, %v221, %v528
        %v2914 = vsel %vm2911, %v222, %v530
        %v2915 = vsel %vm2911, %v223, %v532
        %v2916 = vsel %vm2911, %v224, %v534
        %v2917 = vsel %vm2911, %v225, %v536
        %v2918 = vsel %vm2911, %v226, %v538
        %v2919 = vsel %vm2911, %v227, %v540
        %v2920 = vsel %vm2911, %v228, %v542
        %v2921 = vsel %vm2911, %v229, %v544
        %v2922 = vsel %vm2911, %v230, %v546
        %v2923 = vsel %vm2911, %v231, %v548
        %v2924 = vsel %vm2911, %v232, %v550
        %v2925 = vsel %vm2911, %v233, %v552
        %v2926 = vsel %vm2911, %v234, %v554
        %v2927 = vsel %vm2911, %v235, %v556
        %v2928 = vsel %vm2911, %v236, %v558
        %v2929 = vsel %vm2911, %v237, %v560
        %v2930 = vsel %vm2911, %v238, %v562
        %v2931 = vsel %vm2911, %v239, %v564
        %v2932 = vsel %vm2911, %v240, %v566
        %v2933 = vsel %vm2911, %v241, %v568
        %v2934 = vsel %vm2911, %v242, %v570
        %v2935 = vsel %vm2911, %v243, %v572
        %v2936 = vsel %vm2911, %v244, %v574
        %v2937 = vsel %vm2911, %v245, %v576
        %v2938 = vsel %vm2911, %v246, %v578
        %v2939 = vsel %vm2911, %v247, %v580
        %v2940 = vsel %vm2911, %v248, %v582
        %v2941 = vsel %vm2911, %v249, %v584
        %v2942 = vsel %vm2911, %v250, %v586
        %v2943 = vsel %vm2911, %v251, %v588
        %v2944 = vsel %vm2911, %v252, %v590
        %v2945 = vsel %vm2911, %v253, %v592
        %v2946 = vsel %vm2911, %v254, %v594
        %v2947 = vsel %vm2911, %v255, %v596
        %v2948 = vsel %vm2911, %v256, %v598
        %v2949 = vsel %vm2911, %v257, %v600
        %v2950 = vsel %vm2911, %v258, %v602
        %v2951 = vsel %vm2911, %v259, %v604
        %v2952 = vsel %vm2911, %v260, %v606
        %v2953 = vsel %vm2911, %v261, %v608
        %v2954 = vsel %vm2911, %v262, %v610
        %v2955 = vsel %vm2911, %v263, %v612
        %v2956 = vsel %vm2911, %v264, %v614
        %v2957 = vsel %vm2911, %v265, %v616
        %v2958 = vsel %vm2911, %v266, %v618
        %v2959 = vsel %vm2911, %v267, %v620
        %vm2960 = vcmask 130048
        %v2961 = vsel %vm2960, %v2912, %v751
        %v2962 = vsel %vm2960, %v2913, %v753
        %v2963 = vsel %vm2960, %v2914, %v755
        %v2964 = vsel %vm2960, %v2915, %v757
        %v2965 = vsel %vm2960, %v2916, %v759
        %v2966 = vsel %vm2960, %v2917, %v761
        %v2967 = vsel %vm2960, %v2918, %v763
        %v2968 = vsel %vm2960, %v2919, %v765
        %v2969 = vsel %vm2960, %v2920, %v767
        %v2970 = vsel %vm2960, %v2921, %v769
        %v2971 = vsel %vm2960, %v2922, %v771
        %v2972 = vsel %vm2960, %v2923, %v773
        %v2973 = vsel %vm2960, %v2924, %v775
        %v2974 = vsel %vm2960, %v2925, %v777
        %v2975 = vsel %vm2960, %v2926, %v779
        %v2976 = vsel %vm2960, %v2927, %v781
        %v2977 = vsel %vm2960, %v2928, %v783
        %v2978 = vsel %vm2960, %v2929, %v785
        %v2979 = vsel %vm2960, %v2930, %v787
        %v2980 = vsel %vm2960, %v2931, %v789
        %v2981 = vsel %vm2960, %v2932, %v791
        %v2982 = vsel %vm2960, %v2933, %v793
        %v2983 = vsel %vm2960, %v2934, %v795
        %v2984 = vsel %vm2960, %v2935, %v797
        %v2985 = vsel %vm2960, %v2936, %v799
        %v2986 = vsel %vm2960, %v2937, %v801
        %v2987 = vsel %vm2960, %v2938, %v803
        %v2988 = vsel %vm2960, %v2939, %v805
        %v2989 = vsel %vm2960, %v2940, %v807
        %v2990 = vsel %vm2960, %v2941, %v809
        %v2991 = vsel %vm2960, %v2942, %v811
        %v2992 = vsel %vm2960, %v2943, %v813
        %v2993 = vsel %vm2960, %v2944, %v815
        %v2994 = vsel %vm2960, %v2945, %v817
        %v2995 = vsel %vm2960, %v2946, %v819
        %v2996 = vsel %vm2960, %v2947, %v821
        %v2997 = vsel %vm2960, %v2948, %v823
        %v2998 = vsel %vm2960, %v2949, %v825
        %v2999 = vsel %vm2960, %v2950, %v827
        %v3000 = vsel %vm2960, %v2951, %v829
        %v3001 = vsel %vm2960, %v2952, %v831
        %v3002 = vsel %vm2960, %v2953, %v833
        %v3003 = vsel %vm2960, %v2954, %v835
        %v3004 = vsel %vm2960, %v2955, %v837
        %v3005 = vsel %vm2960, %v2956, %v839
        %v3006 = vsel %vm2960, %v2957, %v841
        %v3007 = vsel %vm2960, %v2958, %v843
        %v3008 = vsel %vm2960, %v2959, %v845
        %vm3009 = vcmask 195584
        %v3010 = vsel %vm3009, %v2961, %v895
        %v3011 = vsel %vm3009, %v2962, %v897
        %v3012 = vsel %vm3009, %v2963, %v899
        %v3013 = vsel %vm3009, %v2964, %v901
        %v3014 = vsel %vm3009, %v2965, %v903
        %v3015 = vsel %vm3009, %v2966, %v905
        %v3016 = vsel %vm3009, %v2967, %v907
        %v3017 = vsel %vm3009, %v2968, %v909
        %v3018 = vsel %vm3009, %v2969, %v911
        %v3019 = vsel %vm3009, %v2970, %v913
        %v3020 = vsel %vm3009, %v2971, %v915
        %v3021 = vsel %vm3009, %v2972, %v917
        %v3022 = vsel %vm3009, %v2973, %v919
        %v3023 = vsel %vm3009, %v2974, %v921
        %v3024 = vsel %vm3009, %v2975, %v923
        %v3025 = vsel %vm3009, %v2976, %v925
        %v3026 = vsel %vm3009, %v2977, %v927
        %v3027 = vsel %vm3009, %v2978, %v929
        %v3028 = vsel %vm3009, %v2979, %v931
        %v3029 = vsel %vm3009, %v2980, %v933
        %v3030 = vsel %vm3009, %v2981, %v935
        %v3031 = vsel %vm3009, %v2982, %v937
        %v3032 = vsel %vm3009, %v2983, %v939
        %v3033 = vsel %vm3009, %v2984, %v941
        %v3034 = vsel %vm3009, %v2985, %v943
        %v3035 = vsel %vm3009, %v2986, %v945
        %v3036 = vsel %vm3009, %v2987, %v947
        %v3037 = vsel %vm3009, %v2988, %v949
        %v3038 = vsel %vm3009, %v2989, %v951
        %v3039 = vsel %vm3009, %v2990, %v953
        %v3040 = vsel %vm3009, %v2991, %v955
        %v3041 = vsel %vm3009, %v2992, %v957
        %v3042 = vsel %vm3009, %v2993, %v959
        %v3043 = vsel %vm3009, %v2994, %v961
        %v3044 = vsel %vm3009, %v2995, %v963
        %v3045 = vsel %vm3009, %v2996, %v965
        %v3046 = vsel %vm3009, %v2997, %v967
        %v3047 = vsel %vm3009, %v2998, %v969
        %v3048 = vsel %vm3009, %v2999, %v971
        %v3049 = vsel %vm3009, %v3000, %v973
        %v3050 = vsel %vm3009, %v3001, %v975
        %v3051 = vsel %vm3009, %v3002, %v977
        %v3052 = vsel %vm3009, %v3003, %v979
        %v3053 = vsel %vm3009, %v3004, %v981
        %v3054 = vsel %vm3009, %v3005, %v983
        %v3055 = vsel %vm3009, %v3006, %v985
        %v3056 = vsel %vm3009, %v3007, %v987
        %v3057 = vsel %vm3009, %v3008, %v989
        %vm3058 = vcmask 261120
        %v3059 = vsel %vm3058, %v3010, %v1044
        %v3060 = vsel %vm3058, %v3011, %v1046
        %v3061 = vsel %vm3058, %v3012, %v1048
        %v3062 = vsel %vm3058, %v3013, %v1050
        %v3063 = vsel %vm3058, %v3014, %v1052
        %v3064 = vsel %vm3058, %v3015, %v1054
        %v3065 = vsel %vm3058, %v3016, %v1056
        %v3066 = vsel %vm3058, %v3017, %v1058
        %v3067 = vsel %vm3058, %v3018, %v1060
        %v3068 = vsel %vm3058, %v3019, %v1062
        %v3069 = vsel %vm3058, %v3020, %v1064
        %v3070 = vsel %vm3058, %v3021, %v1066
        %v3071 = vsel %vm3058, %v3022, %v1068
        %v3072 = vsel %vm3058, %v3023, %v1070
        %v3073 = vsel %vm3058, %v3024, %v1072
        %v3074 = vsel %vm3058, %v3025, %v1074
        %v3075 = vsel %vm3058, %v3026, %v1076
        %v3076 = vsel %vm3058, %v3027, %v1078
        %v3077 = vsel %vm3058, %v3028, %v1080
        %v3078 = vsel %vm3058, %v3029, %v1082
        %v3079 = vsel %vm3058, %v3030, %v1084
        %v3080 = vsel %vm3058, %v3031, %v1086
        %v3081 = vsel %vm3058, %v3032, %v1088
        %v3082 = vsel %vm3058, %v3033, %v1090
        %v3083 = vsel %vm3058, %v3034, %v1092
        %v3084 = vsel %vm3058, %v3035, %v1094
        %v3085 = vsel %vm3058, %v3036, %v1096
        %v3086 = vsel %vm3058, %v3037, %v1098
        %v3087 = vsel %vm3058, %v3038, %v1100
        %v3088 = vsel %vm3058, %v3039, %v1102
        %v3089 = vsel %vm3058, %v3040, %v1104
        %v3090 = vsel %vm3058, %v3041, %v1106
        %v3091 = vsel %vm3058, %v3042, %v1108
        %v3092 = vsel %vm3058, %v3043, %v1110
        %v3093 = vsel %vm3058, %v3044, %v1112
        %v3094 = vsel %vm3058, %v3045, %v1114
        %v3095 = vsel %vm3058, %v3046, %v1116
        %v3096 = vsel %vm3058, %v3047, %v1118
        %v3097 = vsel %vm3058, %v3048, %v1120
        %v3098 = vsel %vm3058, %v3049, %v1122
        %v3099 = vsel %vm3058, %v3050, %v1124
        %v3100 = vsel %vm3058, %v3051, %v1126
        %v3101 = vsel %vm3058, %v3052, %v1128
        %v3102 = vsel %vm3058, %v3053, %v1130
        %v3103 = vsel %vm3058, %v3054, %v1132
        %v3104 = vsel %vm3058, %v3055, %v1134
        %v3105 = vsel %vm3058, %v3056, %v1136
        %v3106 = vsel %vm3058, %v3057, %v1138
        %vm3107 = vcmask 326656
        %v3108 = vsel %vm3107, %v3059, %v1193
        %v3109 = vsel %vm3107, %v3060, %v1195
        %v3110 = vsel %vm3107, %v3061, %v1197
        %v3111 = vsel %vm3107, %v3062, %v1199
        %v3112 = vsel %vm3107, %v3063, %v1201
        %v3113 = vsel %vm3107, %v3064, %v1203
        %v3114 = vsel %vm3107, %v3065, %v1205
        %v3115 = vsel %vm3107, %v3066, %v1207
        %v3116 = vsel %vm3107, %v3067, %v1209
        %v3117 = vsel %vm3107, %v3068, %v1211
        %v3118 = vsel %vm3107, %v3069, %v1213
        %v3119 = vsel %vm3107, %v3070, %v1215
        %v3120 = vsel %vm3107, %v3071, %v1217
        %v3121 = vsel %vm3107, %v3072, %v1219
        %v3122 = vsel %vm3107, %v3073, %v1221
        %v3123 = vsel %vm3107, %v3074, %v1223
        %v3124 = vsel %vm3107, %v3075, %v1225
        %v3125 = vsel %vm3107, %v3076, %v1227
        %v3126 = vsel %vm3107, %v3077, %v1229
        %v3127 = vsel %vm3107, %v3078, %v1231
        %v3128 = vsel %vm3107, %v3079, %v1233
        %v3129 = vsel %vm3107, %v3080, %v1235
        %v3130 = vsel %vm3107, %v3081, %v1237
        %v3131 = vsel %vm3107, %v3082, %v1239
        %v3132 = vsel %vm3107, %v3083, %v1241
        %v3133 = vsel %vm3107, %v3084, %v1243
        %v3134 = vsel %vm3107, %v3085, %v1245
        %v3135 = vsel %vm3107, %v3086, %v1247
        %v3136 = vsel %vm3107, %v3087, %v1249
        %v3137 = vsel %vm3107, %v3088, %v1251
        %v3138 = vsel %vm3107, %v3089, %v1253
        %v3139 = vsel %vm3107, %v3090, %v1255
        %v3140 = vsel %vm3107, %v3091, %v1257
        %v3141 = vsel %vm3107, %v3092, %v1259
        %v3142 = vsel %vm3107, %v3093, %v1261
        %v3143 = vsel %vm3107, %v3094, %v1263
        %v3144 = vsel %vm3107, %v3095, %v1265
        %v3145 = vsel %vm3107, %v3096, %v1267
        %v3146 = vsel %vm3107, %v3097, %v1269
        %v3147 = vsel %vm3107, %v3098, %v1271
        %v3148 = vsel %vm3107, %v3099, %v1273
        %v3149 = vsel %vm3107, %v3100, %v1275
        %v3150 = vsel %vm3107, %v3101, %v1277
        %v3151 = vsel %vm3107, %v3102, %v1279
        %v3152 = vsel %vm3107, %v3103, %v1281
        %v3153 = vsel %vm3107, %v3104, %v1283
        %v3154 = vsel %vm3107, %v3105, %v1285
        %v3155 = vsel %vm3107, %v3106, %v1287
        %vm3156 = vcmask 392192
        %v3157 = vsel %vm3156, %v3108, %v1340
        %v3158 = vsel %vm3156, %v3109, %v1342
        %v3159 = vsel %vm3156, %v3110, %v1344
        %v3160 = vsel %vm3156, %v3111, %v1346
        %v3161 = vsel %vm3156, %v3112, %v1348
        %v3162 = vsel %vm3156, %v3113, %v1350
        %v3163 = vsel %vm3156, %v3114, %v1352
        %v3164 = vsel %vm3156, %v3115, %v1354
        %v3165 = vsel %vm3156, %v3116, %v1356
        %v3166 = vsel %vm3156, %v3117, %v1358
        %v3167 = vsel %vm3156, %v3118, %v1360
        %v3168 = vsel %vm3156, %v3119, %v1362
        %v3169 = vsel %vm3156, %v3120, %v1364
        %v3170 = vsel %vm3156, %v3121, %v1366
        %v3171 = vsel %vm3156, %v3122, %v1368
        %v3172 = vsel %vm3156, %v3123, %v1370
        %v3173 = vsel %vm3156, %v3124, %v1372
        %v3174 = vsel %vm3156, %v3125, %v1374
        %v3175 = vsel %vm3156, %v3126, %v1376
        %v3176 = vsel %vm3156, %v3127, %v1378
        %v3177 = vsel %vm3156, %v3128, %v1380
        %v3178 = vsel %vm3156, %v3129, %v1382
        %v3179 = vsel %vm3156, %v3130, %v1384
        %v3180 = vsel %vm3156, %v3131, %v1386
        %v3181 = vsel %vm3156, %v3132, %v1388
        %v3182 = vsel %vm3156, %v3133, %v1390
        %v3183 = vsel %vm3156, %v3134, %v1392
        %v3184 = vsel %vm3156, %v3135, %v1394
        %v3185 = vsel %vm3156, %v3136, %v1396
        %v3186 = vsel %vm3156, %v3137, %v1398
        %v3187 = vsel %vm3156, %v3138, %v1400
        %v3188 = vsel %vm3156, %v3139, %v1402
        %v3189 = vsel %vm3156, %v3140, %v1404
        %v3190 = vsel %vm3156, %v3141, %v1406
        %v3191 = vsel %vm3156, %v3142, %v1408
        %v3192 = vsel %vm3156, %v3143, %v1410
        %v3193 = vsel %vm3156, %v3144, %v1412
        %v3194 = vsel %vm3156, %v3145, %v1414
        %v3195 = vsel %vm3156, %v3146, %v1416
        %v3196 = vsel %vm3156, %v3147, %v1418
        %v3197 = vsel %vm3156, %v3148, %v1420
        %v3198 = vsel %vm3156, %v3149, %v1422
        %v3199 = vsel %vm3156, %v3150, %v1424
        %v3200 = vsel %vm3156, %v3151, %v1426
        %v3201 = vsel %vm3156, %v3152, %v1428
        %v3202 = vsel %vm3156, %v3153, %v1430
        %v3203 = vsel %vm3156, %v3154, %v1432
        %v3204 = vsel %vm3156, %v3155, %v1434
        %vm3205 = vcmask 457728
        %v3206 = vsel %vm3205, %v3157, %v1489
        %v3207 = vsel %vm3205, %v3158, %v1491
        %v3208 = vsel %vm3205, %v3159, %v1493
        %v3209 = vsel %vm3205, %v3160, %v1495
        %v3210 = vsel %vm3205, %v3161, %v1497
        %v3211 = vsel %vm3205, %v3162, %v1499
        %v3212 = vsel %vm3205, %v3163, %v1501
        %v3213 = vsel %vm3205, %v3164, %v1503
        %v3214 = vsel %vm3205, %v3165, %v1505
        %v3215 = vsel %vm3205, %v3166, %v1507
        %v3216 = vsel %vm3205, %v3167, %v1509
        %v3217 = vsel %vm3205, %v3168, %v1511
        %v3218 = vsel %vm3205, %v3169, %v1513
        %v3219 = vsel %vm3205, %v3170, %v1515
        %v3220 = vsel %vm3205, %v3171, %v1517
        %v3221 = vsel %vm3205, %v3172, %v1519
        %v3222 = vsel %vm3205, %v3173, %v1521
        %v3223 = vsel %vm3205, %v3174, %v1523
        %v3224 = vsel %vm3205, %v3175, %v1525
        %v3225 = vsel %vm3205, %v3176, %v1527
        %v3226 = vsel %vm3205, %v3177, %v1529
        %v3227 = vsel %vm3205, %v3178, %v1531
        %v3228 = vsel %vm3205, %v3179, %v1533
        %v3229 = vsel %vm3205, %v3180, %v1535
        %v3230 = vsel %vm3205, %v3181, %v1537
        %v3231 = vsel %vm3205, %v3182, %v1539
        %v3232 = vsel %vm3205, %v3183, %v1541
        %v3233 = vsel %vm3205, %v3184, %v1543
        %v3234 = vsel %vm3205, %v3185, %v1545
        %v3235 = vsel %vm3205, %v3186, %v1547
        %v3236 = vsel %vm3205, %v3187, %v1549
        %v3237 = vsel %vm3205, %v3188, %v1551
        %v3238 = vsel %vm3205, %v3189, %v1553
        %v3239 = vsel %vm3205, %v3190, %v1555
        %v3240 = vsel %vm3205, %v3191, %v1557
        %v3241 = vsel %vm3205, %v3192, %v1559
        %v3242 = vsel %vm3205, %v3193, %v1561
        %v3243 = vsel %vm3205, %v3194, %v1563
        %v3244 = vsel %vm3205, %v3195, %v1565
        %v3245 = vsel %vm3205, %v3196, %v1567
        %v3246 = vsel %vm3205, %v3197, %v1569
        %v3247 = vsel %vm3205, %v3198, %v1571
        %v3248 = vsel %vm3205, %v3199, %v1573
        %v3249 = vsel %vm3205, %v3200, %v1575
        %v3250 = vsel %vm3205, %v3201, %v1577
        %v3251 = vsel %vm3205, %v3202, %v1579
        %v3252 = vsel %vm3205, %v3203, %v1581
        %v3253 = vsel %vm3205, %v3204, %v1583
        %vm3254 = vcmask 523264
        %v3255 = vsel %vm3254, %v3206, %v1638
        %v3256 = vsel %vm3254, %v3207, %v1640
        %v3257 = vsel %vm3254, %v3208, %v1642
        %v3258 = vsel %vm3254, %v3209, %v1644
        %v3259 = vsel %vm3254, %v3210, %v1646
        %v3260 = vsel %vm3254, %v3211, %v1648
        %v3261 = vsel %vm3254, %v3212, %v1650
        %v3262 = vsel %vm3254, %v3213, %v1652
        %v3263 = vsel %vm3254, %v3214, %v1654
        %v3264 = vsel %vm3254, %v3215, %v1656
        %v3265 = vsel %vm3254, %v3216, %v1658
        %v3266 = vsel %vm3254, %v3217, %v1660
        %v3267 = vsel %vm3254, %v3218, %v1662
        %v3268 = vsel %vm3254, %v3219, %v1664
        %v3269 = vsel %vm3254, %v3220, %v1666
        %v3270 = vsel %vm3254, %v3221, %v1668
        %v3271 = vsel %vm3254, %v3222, %v1670
        %v3272 = vsel %vm3254, %v3223, %v1672
        %v3273 = vsel %vm3254, %v3224, %v1674
        %v3274 = vsel %vm3254, %v3225, %v1676
        %v3275 = vsel %vm3254, %v3226, %v1678
        %v3276 = vsel %vm3254, %v3227, %v1680
        %v3277 = vsel %vm3254, %v3228, %v1682
        %v3278 = vsel %vm3254, %v3229, %v1684
        %v3279 = vsel %vm3254, %v3230, %v1686
        %v3280 = vsel %vm3254, %v3231, %v1688
        %v3281 = vsel %vm3254, %v3232, %v1690
        %v3282 = vsel %vm3254, %v3233, %v1692
        %v3283 = vsel %vm3254, %v3234, %v1694
        %v3284 = vsel %vm3254, %v3235, %v1696
        %v3285 = vsel %vm3254, %v3236, %v1698
        %v3286 = vsel %vm3254, %v3237, %v1700
        %v3287 = vsel %vm3254, %v3238, %v1702
        %v3288 = vsel %vm3254, %v3239, %v1704
        %v3289 = vsel %vm3254, %v3240, %v1706
        %v3290 = vsel %vm3254, %v3241, %v1708
        %v3291 = vsel %vm3254, %v3242, %v1710
        %v3292 = vsel %vm3254, %v3243, %v1712
        %v3293 = vsel %vm3254, %v3244, %v1714
        %v3294 = vsel %vm3254, %v3245, %v1716
        %v3295 = vsel %vm3254, %v3246, %v1718
        %v3296 = vsel %vm3254, %v3247, %v1720
        %v3297 = vsel %vm3254, %v3248, %v1722
        %v3298 = vsel %vm3254, %v3249, %v1724
        %v3299 = vsel %vm3254, %v3250, %v1726
        %v3300 = vsel %vm3254, %v3251, %v1728
        %v3301 = vsel %vm3254, %v3252, %v1730
        %v3302 = vsel %vm3254, %v3253, %v1732
        %vm3303 = vcmask 588800
        %v3304 = vsel %vm3303, %v3255, %v1866
        %v3305 = vsel %vm3303, %v3256, %v1868
        %v3306 = vsel %vm3303, %v3257, %v1870
        %v3307 = vsel %vm3303, %v3258, %v1872
        %v3308 = vsel %vm3303, %v3259, %v1874
        %v3309 = vsel %vm3303, %v3260, %v1876
        %v3310 = vsel %vm3303, %v3261, %v1878
        %v3311 = vsel %vm3303, %v3262, %v1880
        %v3312 = vsel %vm3303, %v3263, %v1882
        %v3313 = vsel %vm3303, %v3264, %v1884
        %v3314 = vsel %vm3303, %v3265, %v1886
        %v3315 = vsel %vm3303, %v3266, %v1888
        %v3316 = vsel %vm3303, %v3267, %v1890
        %v3317 = vsel %vm3303, %v3268, %v1892
        %v3318 = vsel %vm3303, %v3269, %v1894
        %v3319 = vsel %vm3303, %v3270, %v1896
        %v3320 = vsel %vm3303, %v3271, %v1898
        %v3321 = vsel %vm3303, %v3272, %v1900
        %v3322 = vsel %vm3303, %v3273, %v1902
        %v3323 = vsel %vm3303, %v3274, %v1904
        %v3324 = vsel %vm3303, %v3275, %v1906
        %v3325 = vsel %vm3303, %v3276, %v1908
        %v3326 = vsel %vm3303, %v3277, %v1910
        %v3327 = vsel %vm3303, %v3278, %v1912
        %v3328 = vsel %vm3303, %v3279, %v1914
        %v3329 = vsel %vm3303, %v3280, %v1916
        %v3330 = vsel %vm3303, %v3281, %v1918
        %v3331 = vsel %vm3303, %v3282, %v1920
        %v3332 = vsel %vm3303, %v3283, %v1922
        %v3333 = vsel %vm3303, %v3284, %v1924
        %v3334 = vsel %vm3303, %v3285, %v1926
        %v3335 = vsel %vm3303, %v3286, %v1928
        %v3336 = vsel %vm3303, %v3287, %v1930
        %v3337 = vsel %vm3303, %v3288, %v1932
        %v3338 = vsel %vm3303, %v3289, %v1934
        %v3339 = vsel %vm3303, %v3290, %v1936
        %v3340 = vsel %vm3303, %v3291, %v1938
        %v3341 = vsel %vm3303, %v3292, %v1940
        %v3342 = vsel %vm3303, %v3293, %v1942
        %v3343 = vsel %vm3303, %v3294, %v1944
        %v3344 = vsel %vm3303, %v3295, %v1946
        %v3345 = vsel %vm3303, %v3296, %v1948
        %v3346 = vsel %vm3303, %v3297, %v1950
        %v3347 = vsel %vm3303, %v3298, %v1952
        %v3348 = vsel %vm3303, %v3299, %v1954
        %v3349 = vsel %vm3303, %v3300, %v1956
        %v3350 = vsel %vm3303, %v3301, %v1958
        %v3351 = vsel %vm3303, %v3302, %v1960
        %vm3352 = vcmask 654336
        %v3353 = vsel %vm3352, %v3304, %v2015
        %v3354 = vsel %vm3352, %v3305, %v2017
        %v3355 = vsel %vm3352, %v3306, %v2019
        %v3356 = vsel %vm3352, %v3307, %v2021
        %v3357 = vsel %vm3352, %v3308, %v2023
        %v3358 = vsel %vm3352, %v3309, %v2025
        %v3359 = vsel %vm3352, %v3310, %v2027
        %v3360 = vsel %vm3352, %v3311, %v2029
        %v3361 = vsel %vm3352, %v3312, %v2031
        %v3362 = vsel %vm3352, %v3313, %v2033
        %v3363 = vsel %vm3352, %v3314, %v2035
        %v3364 = vsel %vm3352, %v3315, %v2037
        %v3365 = vsel %vm3352, %v3316, %v2039
        %v3366 = vsel %vm3352, %v3317, %v2041
        %v3367 = vsel %vm3352, %v3318, %v2043
        %v3368 = vsel %vm3352, %v3319, %v2045
        %v3369 = vsel %vm3352, %v3320, %v2047
        %v3370 = vsel %vm3352, %v3321, %v2049
        %v3371 = vsel %vm3352, %v3322, %v2051
        %v3372 = vsel %vm3352, %v3323, %v2053
        %v3373 = vsel %vm3352, %v3324, %v2055
        %v3374 = vsel %vm3352, %v3325, %v2057
        %v3375 = vsel %vm3352, %v3326, %v2059
        %v3376 = vsel %vm3352, %v3327, %v2061
        %v3377 = vsel %vm3352, %v3328, %v2063
        %v3378 = vsel %vm3352, %v3329, %v2065
        %v3379 = vsel %vm3352, %v3330, %v2067
        %v3380 = vsel %vm3352, %v3331, %v2069
        %v3381 = vsel %vm3352, %v3332, %v2071
        %v3382 = vsel %vm3352, %v3333, %v2073
        %v3383 = vsel %vm3352, %v3334, %v2075
        %v3384 = vsel %vm3352, %v3335, %v2077
        %v3385 = vsel %vm3352, %v3336, %v2079
        %v3386 = vsel %vm3352, %v3337, %v2081
        %v3387 = vsel %vm3352, %v3338, %v2083
        %v3388 = vsel %vm3352, %v3339, %v2085
        %v3389 = vsel %vm3352, %v3340, %v2087
        %v3390 = vsel %vm3352, %v3341, %v2089
        %v3391 = vsel %vm3352, %v3342, %v2091
        %v3392 = vsel %vm3352, %v3343, %v2093
        %v3393 = vsel %vm3352, %v3344, %v2095
        %v3394 = vsel %vm3352, %v3345, %v2097
        %v3395 = vsel %vm3352, %v3346, %v2099
        %v3396 = vsel %vm3352, %v3347, %v2101
        %v3397 = vsel %vm3352, %v3348, %v2103
        %v3398 = vsel %vm3352, %v3349, %v2105
        %v3399 = vsel %vm3352, %v3350, %v2107
        %v3400 = vsel %vm3352, %v3351, %v2109
        %vm3401 = vcmask 719872
        %v3402 = vsel %vm3401, %v3353, %v2169
        %v3403 = vsel %vm3401, %v3354, %v2171
        %v3404 = vsel %vm3401, %v3355, %v2173
        %v3405 = vsel %vm3401, %v3356, %v2175
        %v3406 = vsel %vm3401, %v3357, %v2177
        %v3407 = vsel %vm3401, %v3358, %v2179
        %v3408 = vsel %vm3401, %v3359, %v2181
        %v3409 = vsel %vm3401, %v3360, %v2183
        %v3410 = vsel %vm3401, %v3361, %v2185
        %v3411 = vsel %vm3401, %v3362, %v2187
        %v3412 = vsel %vm3401, %v3363, %v2189
        %v3413 = vsel %vm3401, %v3364, %v2191
        %v3414 = vsel %vm3401, %v3365, %v2193
        %v3415 = vsel %vm3401, %v3366, %v2195
        %v3416 = vsel %vm3401, %v3367, %v2197
        %v3417 = vsel %vm3401, %v3368, %v2199
        %v3418 = vsel %vm3401, %v3369, %v2201
        %v3419 = vsel %vm3401, %v3370, %v2203
        %v3420 = vsel %vm3401, %v3371, %v2205
        %v3421 = vsel %vm3401, %v3372, %v2207
        %v3422 = vsel %vm3401, %v3373, %v2209
        %v3423 = vsel %vm3401, %v3374, %v2211
        %v3424 = vsel %vm3401, %v3375, %v2213
        %v3425 = vsel %vm3401, %v3376, %v2215
        %v3426 = vsel %vm3401, %v3377, %v2217
        %v3427 = vsel %vm3401, %v3378, %v2219
        %v3428 = vsel %vm3401, %v3379, %v2221
        %v3429 = vsel %vm3401, %v3380, %v2223
        %v3430 = vsel %vm3401, %v3381, %v2225
        %v3431 = vsel %vm3401, %v3382, %v2227
        %v3432 = vsel %vm3401, %v3383, %v2229
        %v3433 = vsel %vm3401, %v3384, %v2231
        %v3434 = vsel %vm3401, %v3385, %v2233
        %v3435 = vsel %vm3401, %v3386, %v2235
        %v3436 = vsel %vm3401, %v3387, %v2237
        %v3437 = vsel %vm3401, %v3388, %v2239
        %v3438 = vsel %vm3401, %v3389, %v2241
        %v3439 = vsel %vm3401, %v3390, %v2243
        %v3440 = vsel %vm3401, %v3391, %v2245
        %v3441 = vsel %vm3401, %v3392, %v2247
        %v3442 = vsel %vm3401, %v3393, %v2249
        %v3443 = vsel %vm3401, %v3394, %v2251
        %v3444 = vsel %vm3401, %v3395, %v2253
        %v3445 = vsel %vm3401, %v3396, %v2255
        %v3446 = vsel %vm3401, %v3397, %v2257
        %v3447 = vsel %vm3401, %v3398, %v2259
        %v3448 = vsel %vm3401, %v3399, %v2261
        %v3449 = vsel %vm3401, %v3400, %v2263
        %vm3450 = vcmask 785408
        %v3451 = vsel %vm3450, %v3402, %v2323
        %v3452 = vsel %vm3450, %v3403, %v2325
        %v3453 = vsel %vm3450, %v3404, %v2327
        %v3454 = vsel %vm3450, %v3405, %v2329
        %v3455 = vsel %vm3450, %v3406, %v2331
        %v3456 = vsel %vm3450, %v3407, %v2333
        %v3457 = vsel %vm3450, %v3408, %v2335
        %v3458 = vsel %vm3450, %v3409, %v2337
        %v3459 = vsel %vm3450, %v3410, %v2339
        %v3460 = vsel %vm3450, %v3411, %v2341
        %v3461 = vsel %vm3450, %v3412, %v2343
        %v3462 = vsel %vm3450, %v3413, %v2345
        %v3463 = vsel %vm3450, %v3414, %v2347
        %v3464 = vsel %vm3450, %v3415, %v2349
        %v3465 = vsel %vm3450, %v3416, %v2351
        %v3466 = vsel %vm3450, %v3417, %v2353
        %v3467 = vsel %vm3450, %v3418, %v2355
        %v3468 = vsel %vm3450, %v3419, %v2357
        %v3469 = vsel %vm3450, %v3420, %v2359
        %v3470 = vsel %vm3450, %v3421, %v2361
        %v3471 = vsel %vm3450, %v3422, %v2363
        %v3472 = vsel %vm3450, %v3423, %v2365
        %v3473 = vsel %vm3450, %v3424, %v2367
        %v3474 = vsel %vm3450, %v3425, %v2369
        %v3475 = vsel %vm3450, %v3426, %v2371
        %v3476 = vsel %vm3450, %v3427, %v2373
        %v3477 = vsel %vm3450, %v3428, %v2375
        %v3478 = vsel %vm3450, %v3429, %v2377
        %v3479 = vsel %vm3450, %v3430, %v2379
        %v3480 = vsel %vm3450, %v3431, %v2381
        %v3481 = vsel %vm3450, %v3432, %v2383
        %v3482 = vsel %vm3450, %v3433, %v2385
        %v3483 = vsel %vm3450, %v3434, %v2387
        %v3484 = vsel %vm3450, %v3435, %v2389
        %v3485 = vsel %vm3450, %v3436, %v2391
        %v3486 = vsel %vm3450, %v3437, %v2393
        %v3487 = vsel %vm3450, %v3438, %v2395
        %v3488 = vsel %vm3450, %v3439, %v2397
        %v3489 = vsel %vm3450, %v3440, %v2399
        %v3490 = vsel %vm3450, %v3441, %v2401
        %v3491 = vsel %vm3450, %v3442, %v2403
        %v3492 = vsel %vm3450, %v3443, %v2405
        %v3493 = vsel %vm3450, %v3444, %v2407
        %v3494 = vsel %vm3450, %v3445, %v2409
        %v3495 = vsel %vm3450, %v3446, %v2411
        %v3496 = vsel %vm3450, %v3447, %v2413
        %v3497 = vsel %vm3450, %v3448, %v2415
        %v3498 = vsel %vm3450, %v3449, %v2417
        %vm3499 = vcmask 850944
        %v3500 = vsel %vm3499, %v3451, %v2467
        %v3501 = vsel %vm3499, %v3452, %v2469
        %v3502 = vsel %vm3499, %v3453, %v2471
        %v3503 = vsel %vm3499, %v3454, %v2473
        %v3504 = vsel %vm3499, %v3455, %v2475
        %v3505 = vsel %vm3499, %v3456, %v2477
        %v3506 = vsel %vm3499, %v3457, %v2479
        %v3507 = vsel %vm3499, %v3458, %v2481
        %v3508 = vsel %vm3499, %v3459, %v2483
        %v3509 = vsel %vm3499, %v3460, %v2485
        %v3510 = vsel %vm3499, %v3461, %v2487
        %v3511 = vsel %vm3499, %v3462, %v2489
        %v3512 = vsel %vm3499, %v3463, %v2491
        %v3513 = vsel %vm3499, %v3464, %v2493
        %v3514 = vsel %vm3499, %v3465, %v2495
        %v3515 = vsel %vm3499, %v3466, %v2497
        %v3516 = vsel %vm3499, %v3467, %v2499
        %v3517 = vsel %vm3499, %v3468, %v2501
        %v3518 = vsel %vm3499, %v3469, %v2503
        %v3519 = vsel %vm3499, %v3470, %v2505
        %v3520 = vsel %vm3499, %v3471, %v2507
        %v3521 = vsel %vm3499, %v3472, %v2509
        %v3522 = vsel %vm3499, %v3473, %v2511
        %v3523 = vsel %vm3499, %v3474, %v2513
        %v3524 = vsel %vm3499, %v3475, %v2515
        %v3525 = vsel %vm3499, %v3476, %v2517
        %v3526 = vsel %vm3499, %v3477, %v2519
        %v3527 = vsel %vm3499, %v3478, %v2521
        %v3528 = vsel %vm3499, %v3479, %v2523
        %v3529 = vsel %vm3499, %v3480, %v2525
        %v3530 = vsel %vm3499, %v3481, %v2527
        %v3531 = vsel %vm3499, %v3482, %v2529
        %v3532 = vsel %vm3499, %v3483, %v2531
        %v3533 = vsel %vm3499, %v3484, %v2533
        %v3534 = vsel %vm3499, %v3485, %v2535
        %v3535 = vsel %vm3499, %v3486, %v2537
        %v3536 = vsel %vm3499, %v3487, %v2539
        %v3537 = vsel %vm3499, %v3488, %v2541
        %v3538 = vsel %vm3499, %v3489, %v2543
        %v3539 = vsel %vm3499, %v3490, %v2545
        %v3540 = vsel %vm3499, %v3491, %v2547
        %v3541 = vsel %vm3499, %v3492, %v2549
        %v3542 = vsel %vm3499, %v3493, %v2551
        %v3543 = vsel %vm3499, %v3494, %v2553
        %v3544 = vsel %vm3499, %v3495, %v2555
        %v3545 = vsel %vm3499, %v3496, %v2557
        %v3546 = vsel %vm3499, %v3497, %v2559
        %v3547 = vsel %vm3499, %v3498, %v2561
        %vm3548 = vcmask 916480
        %v3549 = vsel %vm3548, %v3500, %v2611
        %v3550 = vsel %vm3548, %v3501, %v2613
        %v3551 = vsel %vm3548, %v3502, %v2615
        %v3552 = vsel %vm3548, %v3503, %v2617
        %v3553 = vsel %vm3548, %v3504, %v2619
        %v3554 = vsel %vm3548, %v3505, %v2621
        %v3555 = vsel %vm3548, %v3506, %v2623
        %v3556 = vsel %vm3548, %v3507, %v2625
        %v3557 = vsel %vm3548, %v3508, %v2627
        %v3558 = vsel %vm3548, %v3509, %v2629
        %v3559 = vsel %vm3548, %v3510, %v2631
        %v3560 = vsel %vm3548, %v3511, %v2633
        %v3561 = vsel %vm3548, %v3512, %v2635
        %v3562 = vsel %vm3548, %v3513, %v2637
        %v3563 = vsel %vm3548, %v3514, %v2639
        %v3564 = vsel %vm3548, %v3515, %v2641
        %v3565 = vsel %vm3548, %v3516, %v2643
        %v3566 = vsel %vm3548, %v3517, %v2645
        %v3567 = vsel %vm3548, %v3518, %v2647
        %v3568 = vsel %vm3548, %v3519, %v2649
        %v3569 = vsel %vm3548, %v3520, %v2651
        %v3570 = vsel %vm3548, %v3521, %v2653
        %v3571 = vsel %vm3548, %v3522, %v2655
        %v3572 = vsel %vm3548, %v3523, %v2657
        %v3573 = vsel %vm3548, %v3524, %v2659
        %v3574 = vsel %vm3548, %v3525, %v2661
        %v3575 = vsel %vm3548, %v3526, %v2663
        %v3576 = vsel %vm3548, %v3527, %v2665
        %v3577 = vsel %vm3548, %v3528, %v2667
        %v3578 = vsel %vm3548, %v3529, %v2669
        %v3579 = vsel %vm3548, %v3530, %v2671
        %v3580 = vsel %vm3548, %v3531, %v2673
        %v3581 = vsel %vm3548, %v3532, %v2675
        %v3582 = vsel %vm3548, %v3533, %v2677
        %v3583 = vsel %vm3548, %v3534, %v2679
        %v3584 = vsel %vm3548, %v3535, %v2681
        %v3585 = vsel %vm3548, %v3536, %v2683
        %v3586 = vsel %vm3548, %v3537, %v2685
        %v3587 = vsel %vm3548, %v3538, %v2687
        %v3588 = vsel %vm3548, %v3539, %v2689
        %v3589 = vsel %vm3548, %v3540, %v2691
        %v3590 = vsel %vm3548, %v3541, %v2693
        %v3591 = vsel %vm3548, %v3542, %v2695
        %v3592 = vsel %vm3548, %v3543, %v2697
        %v3593 = vsel %vm3548, %v3544, %v2699
        %v3594 = vsel %vm3548, %v3545, %v2701
        %v3595 = vsel %vm3548, %v3546, %v2703
        %v3596 = vsel %vm3548, %v3547, %v2705
        %vm3597 = vcmask 982016
        %v3598 = vsel %vm3597, %v3549, %v2768
        %v3599 = vsel %vm3597, %v3550, %v2770
        %v3600 = vsel %vm3597, %v3551, %v2772
        %v3601 = vsel %vm3597, %v3552, %v2774
        %v3602 = vsel %vm3597, %v3553, %v2776
        %v3603 = vsel %vm3597, %v3554, %v2778
        %v3604 = vsel %vm3597, %v3555, %v2780
        %v3605 = vsel %vm3597, %v3556, %v2782
        %v3606 = vsel %vm3597, %v3557, %v2784
        %v3607 = vsel %vm3597, %v3558, %v2786
        %v3608 = vsel %vm3597, %v3559, %v2788
        %v3609 = vsel %vm3597, %v3560, %v2790
        %v3610 = vsel %vm3597, %v3561, %v2792
        %v3611 = vsel %vm3597, %v3562, %v2794
        %v3612 = vsel %vm3597, %v3563, %v2796
        %v3613 = vsel %vm3597, %v3564, %v2798
        %v3614 = vsel %vm3597, %v3565, %v2800
        %v3615 = vsel %vm3597, %v3566, %v2802
        %v3616 = vsel %vm3597, %v3567, %v2804
        %v3617 = vsel %vm3597, %v3568, %v2806
        %v3618 = vsel %vm3597, %v3569, %v2808
        %v3619 = vsel %vm3597, %v3570, %v2810
        %v3620 = vsel %vm3597, %v3571, %v2812
        %v3621 = vsel %vm3597, %v3572, %v2814
        %v3622 = vsel %vm3597, %v3573, %v2816
        %v3623 = vsel %vm3597, %v3574, %v2818
        %v3624 = vsel %vm3597, %v3575, %v2820
        %v3625 = vsel %vm3597, %v3576, %v2822
        %v3626 = vsel %vm3597, %v3577, %v2824
        %v3627 = vsel %vm3597, %v3578, %v2826
        %v3628 = vsel %vm3597, %v3579, %v2828
        %v3629 = vsel %vm3597, %v3580, %v2830
        %v3630 = vsel %vm3597, %v3581, %v2832
        %v3631 = vsel %vm3597, %v3582, %v2834
        %v3632 = vsel %vm3597, %v3583, %v2836
        %v3633 = vsel %vm3597, %v3584, %v2838
        %v3634 = vsel %vm3597, %v3585, %v2840
        %v3635 = vsel %vm3597, %v3586, %v2842
        %v3636 = vsel %vm3597, %v3587, %v2844
        %v3637 = vsel %vm3597, %v3588, %v2846
        %v3638 = vsel %vm3597, %v3589, %v2848
        %v3639 = vsel %vm3597, %v3590, %v2850
        %v3640 = vsel %vm3597, %v3591, %v2852
        %v3641 = vsel %vm3597, %v3592, %v2854
        %v3642 = vsel %vm3597, %v3593, %v2856
        %v3643 = vsel %vm3597, %v3594, %v2858
        %v3644 = vsel %vm3597, %v3595, %v2860
        %v3645 = vsel %vm3597, %v3596, %v2862
        %v3646 = vrot.slane %v274, 2
        %v3647 = vrot.slane %v275, 2
        %v3648 = vsel %vm669, %v3646, %v3647
        %v3649 = vrot.slane %v276, 2
        %v3650 = vsel %vm669, %v3647, %v3649
        %3651 = vrot.lane.b32.xlu0 %v687, 8
        %v3652 = vpop.permute.xlu0 %3651
        %3653 = vrot.lane.b32.xlu0 %v689, 8
        %v3654 = vpop.permute.xlu0 %3653
        %3655 = vrot.lane.b32.xlu0 %v688, 8
        %v3656 = vpop.permute.xlu0 %3655
        %3657 = vrot.lane.b32.xlu0 %v692, 8
        %v3658 = vpop.permute.xlu0 %3657
        %3659 = vrot.lane.b32.xlu0 %v694, 8
        %v3660 = vpop.permute.xlu0 %3659
        %3661 = vrot.lane.b32.xlu0 %v693, 8
        %v3662 = vpop.permute.xlu0 %3661
        %3663 = vrot.lane.b32.xlu0 %v697, 8
        %v3664 = vpop.permute.xlu0 %3663
        %3665 = vrot.lane.b32.xlu0 %v699, 8
        %v3666 = vpop.permute.xlu0 %3665
        %3667 = vrot.lane.b32.xlu0 %v698, 8
        %v3668 = vpop.permute.xlu0 %3667
        %3669 = vrot.lane.b32.xlu0 %v702, 8
        %v3670 = vpop.permute.xlu0 %3669
        %3671 = vrot.lane.b32.xlu0 %v704, 8
        %v3672 = vpop.permute.xlu0 %3671
        %3673 = vrot.lane.b32.xlu0 %v703, 8
        %v3674 = vpop.permute.xlu0 %3673
        %3675 = vrot.lane.b32.xlu0 %v707, 8
        %v3676 = vpop.permute.xlu0 %3675
        %3677 = vrot.lane.b32.xlu0 %v709, 8
        %v3678 = vpop.permute.xlu0 %3677
        %3679 = vrot.lane.b32.xlu0 %v708, 8
        %v3680 = vpop.permute.xlu0 %3679
        %3681 = vrot.lane.b32.xlu0 %v712, 8
        %v3682 = vpop.permute.xlu0 %3681
        %3683 = vrot.lane.b32.xlu0 %v714, 8
        %v3684 = vpop.permute.xlu0 %3683
        %3685 = vrot.lane.b32.xlu0 %v713, 8
        %v3686 = vpop.permute.xlu0 %3685
        %3687 = vrot.lane.b32.xlu0 %v717, 8
        %v3688 = vpop.permute.xlu0 %3687
        %3689 = vrot.lane.b32.xlu0 %v719, 8
        %v3690 = vpop.permute.xlu0 %3689
        %3691 = vrot.lane.b32.xlu0 %v718, 8
        %v3692 = vpop.permute.xlu0 %3691
        %3693 = vrot.lane.b32.xlu0 %v722, 8
        %v3694 = vpop.permute.xlu0 %3693
        %3695 = vrot.lane.b32.xlu0 %v724, 8
        %v3696 = vpop.permute.xlu0 %3695
        %3697 = vrot.lane.b32.xlu0 %v723, 8
        %v3698 = vpop.permute.xlu0 %3697
        %3699 = vrot.lane.b32.xlu0 %v727, 8
        %v3700 = vpop.permute.xlu0 %3699
        %3701 = vrot.lane.b32.xlu0 %v729, 8
        %v3702 = vpop.permute.xlu0 %3701
        %3703 = vrot.lane.b32.xlu0 %v728, 8
        %v3704 = vpop.permute.xlu0 %3703
        %3705 = vrot.lane.b32.xlu0 %v732, 8
        %v3706 = vpop.permute.xlu0 %3705
        %3707 = vrot.lane.b32.xlu0 %v734, 8
        %v3708 = vpop.permute.xlu0 %3707
        %3709 = vrot.lane.b32.xlu0 %v733, 8
        %v3710 = vpop.permute.xlu0 %3709
        %3711 = vrot.lane.b32.xlu0 %v737, 8
        %v3712 = vpop.permute.xlu0 %3711
        %3713 = vrot.lane.b32.xlu0 %v739, 8
        %v3714 = vpop.permute.xlu0 %3713
        %3715 = vrot.lane.b32.xlu0 %v738, 8
        %v3716 = vpop.permute.xlu0 %3715
        %3717 = vrot.lane.b32.xlu0 %v742, 8
        %v3718 = vpop.permute.xlu0 %3717
        %3719 = vrot.lane.b32.xlu0 %v744, 8
        %v3720 = vpop.permute.xlu0 %3719
        %3721 = vrot.lane.b32.xlu0 %v743, 8
        %v3722 = vpop.permute.xlu0 %3721
        %3723 = vrot.lane.b32.xlu0 %v747, 8
        %v3724 = vpop.permute.xlu0 %3723
        %3725 = vrot.lane.b32.xlu0 %v749, 8
        %v3726 = vpop.permute.xlu0 %3725
        %3727 = vrot.lane.b32.xlu0 %v748, 8
        %v3728 = vpop.permute.xlu0 %3727
        %3729 = vrot.lane.b32.xlu0 %v1189, 8
        %v3730 = vpop.permute.xlu0 %3729
        %3731 = vrot.lane.b32.xlu0 %v1191, 8
        %v3732 = vpop.permute.xlu0 %3731
        %3733 = vrot.lane.b32.xlu0 %v1190, 8
        %v3734 = vpop.permute.xlu0 %3733
        %3735 = vrot.lane.b32.xlu0 %v1634, 8
        %v3736 = vpop.permute.xlu0 %3735
        %3737 = vrot.lane.b32.xlu0 %v1636, 8
        %v3738 = vpop.permute.xlu0 %3737
        %3739 = vrot.lane.b32.xlu0 %v1635, 8
        %v3740 = vpop.permute.xlu0 %3739
        %3741 = vrot.lane.b32.xlu0 %v3648, 8
        %v3742 = vpop.permute.xlu0 %3741
        %3743 = vrot.lane.b32.xlu0 %v3650, 8
        %v3744 = vpop.permute.xlu0 %3743
        %3745 = vrot.lane.b32.xlu0 %v3649, 8
        %v3746 = vpop.permute.xlu0 %3745
        %vm3797 = vcmask 1042432
        %v3798 = vrot.slane %v214, 5
        %v3799 = vrot.slane %v215, 5
        %v3800 = vsel %vm3797, %v3798, %v3799
        %v3801 = vrot.slane %v217, 5
        %v3802 = vrot.slane %v218, 5
        %v3803 = vsel %vm3797, %v3801, %v3802
        %v3804 = vrot.slane %v220, 5
        %v3805 = vrot.slane %v221, 5
        %v3806 = vsel %vm3797, %v3804, %v3805
        %v3807 = vrot.slane %v223, 5
        %v3808 = vrot.slane %v224, 5
        %v3809 = vsel %vm3797, %v3807, %v3808
        %v3810 = vrot.slane %v226, 5
        %v3811 = vrot.slane %v227, 5
        %v3812 = vsel %vm3797, %v3810, %v3811
        %v3813 = vrot.slane %v229, 5
        %v3814 = vrot.slane %v230, 5
        %v3815 = vsel %vm3797, %v3813, %v3814
        %v3816 = vrot.slane %v232, 5
        %v3817 = vrot.slane %v233, 5
        %v3818 = vsel %vm3797, %v3816, %v3817
        %v3819 = vrot.slane %v235, 5
        %v3820 = vrot.slane %v236, 5
        %v3821 = vsel %vm3797, %v3819, %v3820
        %v3822 = vrot.slane %v238, 5
        %v3823 = vrot.slane %v239, 5
        %v3824 = vsel %vm3797, %v3822, %v3823
        %v3825 = vrot.slane %v241, 5
        %v3826 = vrot.slane %v242, 5
        %v3827 = vsel %vm3797, %v3825, %v3826
        %v3828 = vrot.slane %v244, 5
        %v3829 = vrot.slane %v245, 5
        %v3830 = vsel %vm3797, %v3828, %v3829
        %v3831 = vrot.slane %v247, 5
        %v3832 = vrot.slane %v248, 5
        %v3833 = vsel %vm3797, %v3831, %v3832
        %v3834 = vrot.slane %v250, 5
        %v3835 = vrot.slane %v251, 5
        %v3836 = vsel %vm3797, %v3834, %v3835
        %v3837 = vrot.slane %v253, 5
        %v3838 = vrot.slane %v254, 5
        %v3839 = vsel %vm3797, %v3837, %v3838
        %v3840 = vrot.slane %v256, 5
        %v3841 = vrot.slane %v257, 5
        %v3842 = vsel %vm3797, %v3840, %v3841
        %v3843 = vrot.slane %v259, 5
        %v3844 = vrot.slane %v260, 5
        %v3845 = vsel %vm3797, %v3843, %v3844
        %3846 = vrot.lane.b32.xlu0 %v3798, 16
        %v3847 = vpop.permute.xlu0 %3846
        %3848 = vrot.lane.b32.xlu0 %v3800, 16
        %v3849 = vpop.permute.xlu0 %3848
        %3850 = vrot.lane.b32.xlu0 %v3799, 16
        %v3851 = vpop.permute.xlu0 %3850
        %3852 = vrot.lane.b32.xlu0 %v3801, 16
        %v3853 = vpop.permute.xlu0 %3852
        %3854 = vrot.lane.b32.xlu0 %v3803, 16
        %v3855 = vpop.permute.xlu0 %3854
        %3856 = vrot.lane.b32.xlu0 %v3802, 16
        %v3857 = vpop.permute.xlu0 %3856
        %3858 = vrot.lane.b32.xlu0 %v3804, 16
        %v3859 = vpop.permute.xlu0 %3858
        %3860 = vrot.lane.b32.xlu0 %v3806, 16
        %v3861 = vpop.permute.xlu0 %3860
        %3862 = vrot.lane.b32.xlu0 %v3805, 16
        %v3863 = vpop.permute.xlu0 %3862
        %3864 = vrot.lane.b32.xlu0 %v3807, 16
        %v3865 = vpop.permute.xlu0 %3864
        %3866 = vrot.lane.b32.xlu0 %v3809, 16
        %v3867 = vpop.permute.xlu0 %3866
        %3868 = vrot.lane.b32.xlu0 %v3808, 16
        %v3869 = vpop.permute.xlu0 %3868
        %3870 = vrot.lane.b32.xlu0 %v3810, 16
        %v3871 = vpop.permute.xlu0 %3870
        %3872 = vrot.lane.b32.xlu0 %v3812, 16
        %v3873 = vpop.permute.xlu0 %3872
        %3874 = vrot.lane.b32.xlu0 %v3811, 16
        %v3875 = vpop.permute.xlu0 %3874
        %3876 = vrot.lane.b32.xlu0 %v3813, 16
        %v3877 = vpop.permute.xlu0 %3876
        %3878 = vrot.lane.b32.xlu0 %v3815, 16
        %v3879 = vpop.permute.xlu0 %3878
        %3880 = vrot.lane.b32.xlu0 %v3814, 16
        %v3881 = vpop.permute.xlu0 %3880
        %3882 = vrot.lane.b32.xlu0 %v3816, 16
        %v3883 = vpop.permute.xlu0 %3882
        %3884 = vrot.lane.b32.xlu0 %v3818, 16
        %v3885 = vpop.permute.xlu0 %3884
        %3886 = vrot.lane.b32.xlu0 %v3817, 16
        %v3887 = vpop.permute.xlu0 %3886
        %3888 = vrot.lane.b32.xlu0 %v3819, 16
        %v3889 = vpop.permute.xlu0 %3888
        %3890 = vrot.lane.b32.xlu0 %v3821, 16
        %v3891 = vpop.permute.xlu0 %3890
        %3892 = vrot.lane.b32.xlu0 %v3820, 16
        %v3893 = vpop.permute.xlu0 %3892
        %3894 = vrot.lane.b32.xlu0 %v3822, 16
        %v3895 = vpop.permute.xlu0 %3894
        %3896 = vrot.lane.b32.xlu0 %v3824, 16
        %v3897 = vpop.permute.xlu0 %3896
        %3898 = vrot.lane.b32.xlu0 %v3823, 16
        %v3899 = vpop.permute.xlu0 %3898
        %3900 = vrot.lane.b32.xlu0 %v3825, 16
        %v3901 = vpop.permute.xlu0 %3900
        %3902 = vrot.lane.b32.xlu0 %v3827, 16
        %v3903 = vpop.permute.xlu0 %3902
        %3904 = vrot.lane.b32.xlu0 %v3826, 16
        %v3905 = vpop.permute.xlu0 %3904
        %3906 = vrot.lane.b32.xlu0 %v3828, 16
        %v3907 = vpop.permute.xlu0 %3906
        %3908 = vrot.lane.b32.xlu0 %v3830, 16
        %v3909 = vpop.permute.xlu0 %3908
        %3910 = vrot.lane.b32.xlu0 %v3829, 16
        %v3911 = vpop.permute.xlu0 %3910
        %3912 = vrot.lane.b32.xlu0 %v3831, 16
        %v3913 = vpop.permute.xlu0 %3912
        %3914 = vrot.lane.b32.xlu0 %v3833, 16
        %v3915 = vpop.permute.xlu0 %3914
        %3916 = vrot.lane.b32.xlu0 %v3832, 16
        %v3917 = vpop.permute.xlu0 %3916
        %3918 = vrot.lane.b32.xlu0 %v3834, 16
        %v3919 = vpop.permute.xlu0 %3918
        %3920 = vrot.lane.b32.xlu0 %v3836, 16
        %v3921 = vpop.permute.xlu0 %3920
        %3922 = vrot.lane.b32.xlu0 %v3835, 16
        %v3923 = vpop.permute.xlu0 %3922
        %3924 = vrot.lane.b32.xlu0 %v3837, 16
        %v3925 = vpop.permute.xlu0 %3924
        %3926 = vrot.lane.b32.xlu0 %v3839, 16
        %v3927 = vpop.permute.xlu0 %3926
        %3928 = vrot.lane.b32.xlu0 %v3838, 16
        %v3929 = vpop.permute.xlu0 %3928
        %3930 = vrot.lane.b32.xlu0 %v3840, 16
        %v3931 = vpop.permute.xlu0 %3930
        %3932 = vrot.lane.b32.xlu0 %v3842, 16
        %v3933 = vpop.permute.xlu0 %3932
        %3934 = vrot.lane.b32.xlu0 %v3841, 16
        %v3935 = vpop.permute.xlu0 %3934
        %3936 = vrot.lane.b32.xlu0 %v3843, 16
        %v3937 = vpop.permute.xlu0 %3936
        %3938 = vrot.lane.b32.xlu0 %v3845, 16
        %v3939 = vpop.permute.xlu0 %3938
        %3940 = vrot.lane.b32.xlu0 %v3844, 16
        %v3941 = vpop.permute.xlu0 %3940
        %3991 = vrot.lane.b32.xlu0 %v214, 24
        %v3992 = vpop.permute.xlu0 %3991
        %3993 = vrot.lane.b32.xlu0 %v215, 24
        %v3994 = vpop.permute.xlu0 %3993
        %3995 = vrot.lane.b32.xlu0 %v216, 24
        %v3996 = vpop.permute.xlu0 %3995
        %3997 = vrot.lane.b32.xlu0 %v217, 24
        %v3998 = vpop.permute.xlu0 %3997
        %3999 = vrot.lane.b32.xlu0 %v218, 24
        %v4000 = vpop.permute.xlu0 %3999
        %4001 = vrot.lane.b32.xlu0 %v219, 24
        %v4002 = vpop.permute.xlu0 %4001
        %4003 = vrot.lane.b32.xlu0 %v220, 24
        %v4004 = vpop.permute.xlu0 %4003
        %4005 = vrot.lane.b32.xlu0 %v221, 24
        %v4006 = vpop.permute.xlu0 %4005
        %4007 = vrot.lane.b32.xlu0 %v222, 24
        %v4008 = vpop.permute.xlu0 %4007
        %v4018 = vrot.slane %v214, 3
        %v4019 = vrot.slane %v215, 3
        %v4020 = vsel %vm328, %v4018, %v4019
        %v4021 = vrot.slane %v216, 3
        %v4022 = vsel %vm328, %v4019, %v4021
        %4023 = vrot.lane.b32.xlu0 %v4020, 32
        %v4024 = vpop.permute.xlu0 %4023
        %4025 = vrot.lane.b32.xlu0 %v4022, 32
        %v4026 = vpop.permute.xlu0 %4025
        %4027 = vrot.lane.b32.xlu0 %v4021, 32
        %v4028 = vpop.permute.xlu0 %4027
        %4029 = vrot.lane.b32.xlu0 %v2160, 32
        %v4030 = vpop.permute.xlu0 %4029
        %4031 = vrot.lane.b32.xlu0 %v2162, 32
        %v4032 = vpop.permute.xlu0 %4031
        %4033 = vrot.lane.b32.xlu0 %v2161, 32
        %v4034 = vpop.permute.xlu0 %4033
        %4035 = vrot.lane.b32.xlu0 %v2165, 32
        %v4036 = vpop.permute.xlu0 %4035
        %4037 = vrot.lane.b32.xlu0 %v2167, 32
        %v4038 = vpop.permute.xlu0 %4037
        %4039 = vrot.lane.b32.xlu0 %v2166, 32
        %v4040 = vpop.permute.xlu0 %4039
        %4041 = vrot.lane.b32.xlu0 %v331, 32
        %v4042 = vpop.permute.xlu0 %4041
        %4043 = vrot.lane.b32.xlu0 %v333, 32
        %v4044 = vpop.permute.xlu0 %4043
        %4045 = vrot.lane.b32.xlu0 %v332, 32
        %v4046 = vpop.permute.xlu0 %4045
        %4047 = vrot.lane.b32.xlu0 %v336, 32
        %v4048 = vpop.permute.xlu0 %4047
        %4049 = vrot.lane.b32.xlu0 %v338, 32
        %v4050 = vpop.permute.xlu0 %4049
        %4051 = vrot.lane.b32.xlu0 %v337, 32
        %v4052 = vpop.permute.xlu0 %4051
        %4053 = vrot.lane.b32.xlu0 %v341, 32
        %v4054 = vpop.permute.xlu0 %4053
        %4055 = vrot.lane.b32.xlu0 %v343, 32
        %v4056 = vpop.permute.xlu0 %4055
        %4057 = vrot.lane.b32.xlu0 %v342, 32
        %v4058 = vpop.permute.xlu0 %4057
        %4059 = vrot.lane.b32.xlu0 %v346, 32
        %v4060 = vpop.permute.xlu0 %4059
        %4061 = vrot.lane.b32.xlu0 %v348, 32
        %v4062 = vpop.permute.xlu0 %4061
        %4063 = vrot.lane.b32.xlu0 %v347, 32
        %v4064 = vpop.permute.xlu0 %4063
        %4065 = vrot.lane.b32.xlu0 %v351, 32
        %v4066 = vpop.permute.xlu0 %4065
        %4067 = vrot.lane.b32.xlu0 %v353, 32
        %v4068 = vpop.permute.xlu0 %4067
        %4069 = vrot.lane.b32.xlu0 %v352, 32
        %v4070 = vpop.permute.xlu0 %4069
        %4071 = vrot.lane.b32.xlu0 %v356, 32
        %v4072 = vpop.permute.xlu0 %4071
        %4073 = vrot.lane.b32.xlu0 %v358, 32
        %v4074 = vpop.permute.xlu0 %4073
        %4075 = vrot.lane.b32.xlu0 %v357, 32
        %v4076 = vpop.permute.xlu0 %4075
        %4077 = vrot.lane.b32.xlu0 %v361, 32
        %v4078 = vpop.permute.xlu0 %4077
        %4079 = vrot.lane.b32.xlu0 %v363, 32
        %v4080 = vpop.permute.xlu0 %4079
        %4081 = vrot.lane.b32.xlu0 %v362, 32
        %v4082 = vpop.permute.xlu0 %4081
        %4083 = vrot.lane.b32.xlu0 %v366, 32
        %v4084 = vpop.permute.xlu0 %4083
        %4085 = vrot.lane.b32.xlu0 %v368, 32
        %v4086 = vpop.permute.xlu0 %4085
        %4087 = vrot.lane.b32.xlu0 %v367, 32
        %v4088 = vpop.permute.xlu0 %4087
        %4089 = vrot.lane.b32.xlu0 %v371, 32
        %v4090 = vpop.permute.xlu0 %4089
        %4091 = vrot.lane.b32.xlu0 %v373, 32
        %v4092 = vpop.permute.xlu0 %4091
        %4093 = vrot.lane.b32.xlu0 %v372, 32
        %v4094 = vpop.permute.xlu0 %4093
        %4095 = vrot.lane.b32.xlu0 %v376, 32
        %v4096 = vpop.permute.xlu0 %4095
        %4097 = vrot.lane.b32.xlu0 %v378, 32
        %v4098 = vpop.permute.xlu0 %4097
        %4099 = vrot.lane.b32.xlu0 %v377, 32
        %v4100 = vpop.permute.xlu0 %4099
        %4101 = vrot.lane.b32.xlu0 %v381, 32
        %v4102 = vpop.permute.xlu0 %4101
        %4103 = vrot.lane.b32.xlu0 %v383, 32
        %v4104 = vpop.permute.xlu0 %4103
        %4105 = vrot.lane.b32.xlu0 %v382, 32
        %v4106 = vpop.permute.xlu0 %4105
        %4107 = vrot.lane.b32.xlu0 %v386, 32
        %v4108 = vpop.permute.xlu0 %4107
        %4109 = vrot.lane.b32.xlu0 %v388, 32
        %v4110 = vpop.permute.xlu0 %4109
        %4111 = vrot.lane.b32.xlu0 %v387, 32
        %v4112 = vpop.permute.xlu0 %4111
        %4113 = vrot.lane.b32.xlu0 %v391, 32
        %v4114 = vpop.permute.xlu0 %4113
        %4115 = vrot.lane.b32.xlu0 %v393, 32
        %v4116 = vpop.permute.xlu0 %4115
        %4117 = vrot.lane.b32.xlu0 %v392, 32
        %v4118 = vpop.permute.xlu0 %4117
        %v4167 = vrot.slane %v262, 5
        %v4168 = vrot.slane %v263, 5
        %v4169 = vsel %vm3797, %v4167, %v4168
        %v4170 = vrot.slane %v265, 5
        %v4171 = vrot.slane %v266, 5
        %v4172 = vsel %vm3797, %v4170, %v4171
        %v4173 = vrot.slane %v268, 5
        %v4174 = vrot.slane %v269, 5
        %v4175 = vsel %vm3797, %v4173, %v4174
        %4176 = vrot.lane.b32.xlu0 %v3807, 40
        %v4177 = vpop.permute.xlu0 %4176
        %4178 = vrot.lane.b32.xlu0 %v3809, 40
        %v4179 = vpop.permute.xlu0 %4178
        %4180 = vrot.lane.b32.xlu0 %v3808, 40
        %v4181 = vpop.permute.xlu0 %4180
        %4182 = vrot.lane.b32.xlu0 %v3810, 40
        %v4183 = vpop.permute.xlu0 %4182
        %4184 = vrot.lane.b32.xlu0 %v3812, 40
        %v4185 = vpop.permute.xlu0 %4184
        %4186 = vrot.lane.b32.xlu0 %v3811, 40
        %v4187 = vpop.permute.xlu0 %4186
        %4188 = vrot.lane.b32.xlu0 %v3813, 40
        %v4189 = vpop.permute.xlu0 %4188
        %4190 = vrot.lane.b32.xlu0 %v3815, 40
        %v4191 = vpop.permute.xlu0 %4190
        %4192 = vrot.lane.b32.xlu0 %v3814, 40
        %v4193 = vpop.permute.xlu0 %4192
        %4194 = vrot.lane.b32.xlu0 %v3816, 40
        %v4195 = vpop.permute.xlu0 %4194
        %4196 = vrot.lane.b32.xlu0 %v3818, 40
        %v4197 = vpop.permute.xlu0 %4196
        %4198 = vrot.lane.b32.xlu0 %v3817, 40
        %v4199 = vpop.permute.xlu0 %4198
        %4200 = vrot.lane.b32.xlu0 %v3819, 40
        %v4201 = vpop.permute.xlu0 %4200
        %4202 = vrot.lane.b32.xlu0 %v3821, 40
        %v4203 = vpop.permute.xlu0 %4202
        %4204 = vrot.lane.b32.xlu0 %v3820, 40
        %v4205 = vpop.permute.xlu0 %4204
        %4206 = vrot.lane.b32.xlu0 %v3822, 40
        %v4207 = vpop.permute.xlu0 %4206
        %4208 = vrot.lane.b32.xlu0 %v3824, 40
        %v4209 = vpop.permute.xlu0 %4208
        %4210 = vrot.lane.b32.xlu0 %v3823, 40
        %v4211 = vpop.permute.xlu0 %4210
        %4212 = vrot.lane.b32.xlu0 %v3825, 40
        %v4213 = vpop.permute.xlu0 %4212
        %4214 = vrot.lane.b32.xlu0 %v3827, 40
        %v4215 = vpop.permute.xlu0 %4214
        %4216 = vrot.lane.b32.xlu0 %v3826, 40
        %v4217 = vpop.permute.xlu0 %4216
        %4218 = vrot.lane.b32.xlu0 %v3828, 40
        %v4219 = vpop.permute.xlu0 %4218
        %4220 = vrot.lane.b32.xlu0 %v3830, 40
        %v4221 = vpop.permute.xlu0 %4220
        %4222 = vrot.lane.b32.xlu0 %v3829, 40
        %v4223 = vpop.permute.xlu0 %4222
        %4224 = vrot.lane.b32.xlu0 %v3831, 40
        %v4225 = vpop.permute.xlu0 %4224
        %4226 = vrot.lane.b32.xlu0 %v3833, 40
        %v4227 = vpop.permute.xlu0 %4226
        %4228 = vrot.lane.b32.xlu0 %v3832, 40
        %v4229 = vpop.permute.xlu0 %4228
        %4230 = vrot.lane.b32.xlu0 %v3834, 40
        %v4231 = vpop.permute.xlu0 %4230
        %4232 = vrot.lane.b32.xlu0 %v3836, 40
        %v4233 = vpop.permute.xlu0 %4232
        %4234 = vrot.lane.b32.xlu0 %v3835, 40
        %v4235 = vpop.permute.xlu0 %4234
        %4236 = vrot.lane.b32.xlu0 %v3837, 40
        %v4237 = vpop.permute.xlu0 %4236
        %4238 = vrot.lane.b32.xlu0 %v3839, 40
        %v4239 = vpop.permute.xlu0 %4238
        %4240 = vrot.lane.b32.xlu0 %v3838, 40
        %v4241 = vpop.permute.xlu0 %4240
        %4242 = vrot.lane.b32.xlu0 %v3840, 40
        %v4243 = vpop.permute.xlu0 %4242
        %4244 = vrot.lane.b32.xlu0 %v3842, 40
        %v4245 = vpop.permute.xlu0 %4244
        %4246 = vrot.lane.b32.xlu0 %v3841, 40
        %v4247 = vpop.permute.xlu0 %4246
        %4248 = vrot.lane.b32.xlu0 %v3843, 40
        %v4249 = vpop.permute.xlu0 %4248
        %4250 = vrot.lane.b32.xlu0 %v3845, 40
        %v4251 = vpop.permute.xlu0 %4250
        %4252 = vrot.lane.b32.xlu0 %v3844, 40
        %v4253 = vpop.permute.xlu0 %4252
        %4254 = vrot.lane.b32.xlu0 %v4167, 40
        %v4255 = vpop.permute.xlu0 %4254
        %4256 = vrot.lane.b32.xlu0 %v4169, 40
        %v4257 = vpop.permute.xlu0 %4256
        %4258 = vrot.lane.b32.xlu0 %v4168, 40
        %v4259 = vpop.permute.xlu0 %4258
        %4260 = vrot.lane.b32.xlu0 %v4170, 40
        %v4261 = vpop.permute.xlu0 %4260
        %4262 = vrot.lane.b32.xlu0 %v4172, 40
        %v4263 = vpop.permute.xlu0 %4262
        %4264 = vrot.lane.b32.xlu0 %v4171, 40
        %v4265 = vpop.permute.xlu0 %4264
        %4266 = vrot.lane.b32.xlu0 %v4173, 40
        %v4267 = vpop.permute.xlu0 %4266
        %4268 = vrot.lane.b32.xlu0 %v4175, 40
        %v4269 = vpop.permute.xlu0 %4268
        %4270 = vrot.lane.b32.xlu0 %v4174, 40
        %v4271 = vpop.permute.xlu0 %4270
        %4320 = vrot.lane.b32.xlu0 %v223, 48
        %v4321 = vpop.permute.xlu0 %4320
        %4322 = vrot.lane.b32.xlu0 %v224, 48
        %v4323 = vpop.permute.xlu0 %4322
        %4324 = vrot.lane.b32.xlu0 %v225, 48
        %v4325 = vpop.permute.xlu0 %4324
        %4329 = vrot.lane.b32.xlu0 %v331, 56
        %v4330 = vpop.permute.xlu0 %4329
        %4331 = vrot.lane.b32.xlu0 %v333, 56
        %v4332 = vpop.permute.xlu0 %4331
        %4333 = vrot.lane.b32.xlu0 %v332, 56
        %v4334 = vpop.permute.xlu0 %4333
        %4335 = vrot.lane.b32.xlu0 %v336, 56
        %v4336 = vpop.permute.xlu0 %4335
        %4337 = vrot.lane.b32.xlu0 %v338, 56
        %v4338 = vpop.permute.xlu0 %4337
        %4339 = vrot.lane.b32.xlu0 %v337, 56
        %v4340 = vpop.permute.xlu0 %4339
        %4341 = vrot.lane.b32.xlu0 %v341, 56
        %v4342 = vpop.permute.xlu0 %4341
        %4343 = vrot.lane.b32.xlu0 %v343, 56
        %v4344 = vpop.permute.xlu0 %4343
        %4345 = vrot.lane.b32.xlu0 %v342, 56
        %v4346 = vpop.permute.xlu0 %4345
        %4347 = vrot.lane.b32.xlu0 %v346, 56
        %v4348 = vpop.permute.xlu0 %4347
        %4349 = vrot.lane.b32.xlu0 %v348, 56
        %v4350 = vpop.permute.xlu0 %4349
        %4351 = vrot.lane.b32.xlu0 %v347, 56
        %v4352 = vpop.permute.xlu0 %4351
        %4353 = vrot.lane.b32.xlu0 %v351, 56
        %v4354 = vpop.permute.xlu0 %4353
        %4355 = vrot.lane.b32.xlu0 %v353, 56
        %v4356 = vpop.permute.xlu0 %4355
        %4357 = vrot.lane.b32.xlu0 %v352, 56
        %v4358 = vpop.permute.xlu0 %4357
        %4359 = vrot.lane.b32.xlu0 %v356, 56
        %v4360 = vpop.permute.xlu0 %4359
        %4361 = vrot.lane.b32.xlu0 %v358, 56
        %v4362 = vpop.permute.xlu0 %4361
        %4363 = vrot.lane.b32.xlu0 %v357, 56
        %v4364 = vpop.permute.xlu0 %4363
        %4365 = vrot.lane.b32.xlu0 %v361, 56
        %v4366 = vpop.permute.xlu0 %4365
        %4367 = vrot.lane.b32.xlu0 %v363, 56
        %v4368 = vpop.permute.xlu0 %4367
        %4369 = vrot.lane.b32.xlu0 %v362, 56
        %v4370 = vpop.permute.xlu0 %4369
        %4371 = vrot.lane.b32.xlu0 %v366, 56
        %v4372 = vpop.permute.xlu0 %4371
        %4373 = vrot.lane.b32.xlu0 %v368, 56
        %v4374 = vpop.permute.xlu0 %4373
        %4375 = vrot.lane.b32.xlu0 %v367, 56
        %v4376 = vpop.permute.xlu0 %4375
        %4377 = vrot.lane.b32.xlu0 %v371, 56
        %v4378 = vpop.permute.xlu0 %4377
        %4379 = vrot.lane.b32.xlu0 %v373, 56
        %v4380 = vpop.permute.xlu0 %4379
        %4381 = vrot.lane.b32.xlu0 %v372, 56
        %v4382 = vpop.permute.xlu0 %4381
        %4383 = vrot.lane.b32.xlu0 %v376, 56
        %v4384 = vpop.permute.xlu0 %4383
        %4385 = vrot.lane.b32.xlu0 %v378, 56
        %v4386 = vpop.permute.xlu0 %4385
        %4387 = vrot.lane.b32.xlu0 %v377, 56
        %v4388 = vpop.permute.xlu0 %4387
        %4389 = vrot.lane.b32.xlu0 %v381, 56
        %v4390 = vpop.permute.xlu0 %4389
        %4391 = vrot.lane.b32.xlu0 %v383, 56
        %v4392 = vpop.permute.xlu0 %4391
        %4393 = vrot.lane.b32.xlu0 %v382, 56
        %v4394 = vpop.permute.xlu0 %4393
        %4395 = vrot.lane.b32.xlu0 %v386, 56
        %v4396 = vpop.permute.xlu0 %4395
        %4397 = vrot.lane.b32.xlu0 %v388, 56
        %v4398 = vpop.permute.xlu0 %4397
        %4399 = vrot.lane.b32.xlu0 %v387, 56
        %v4400 = vpop.permute.xlu0 %4399
        %4401 = vrot.lane.b32.xlu0 %v391, 56
        %v4402 = vpop.permute.xlu0 %4401
        %4403 = vrot.lane.b32.xlu0 %v393, 56
        %v4404 = vpop.permute.xlu0 %4403
        %4405 = vrot.lane.b32.xlu0 %v392, 56
        %v4406 = vpop.permute.xlu0 %4405
        %4407 = vrot.lane.b32.xlu0 %v396, 56
        %v4408 = vpop.permute.xlu0 %4407
        %4409 = vrot.lane.b32.xlu0 %v398, 56
        %v4410 = vpop.permute.xlu0 %4409
        %4411 = vrot.lane.b32.xlu0 %v397, 56
        %v4412 = vpop.permute.xlu0 %4411
        %4413 = vrot.lane.b32.xlu0 %v401, 56
        %v4414 = vpop.permute.xlu0 %4413
        %4415 = vrot.lane.b32.xlu0 %v403, 56
        %v4416 = vpop.permute.xlu0 %4415
        %4417 = vrot.lane.b32.xlu0 %v402, 56
        %v4418 = vpop.permute.xlu0 %4417
        %4419 = vrot.lane.b32.xlu0 %v406, 56
        %v4420 = vpop.permute.xlu0 %4419
        %4421 = vrot.lane.b32.xlu0 %v408, 56
        %v4422 = vpop.permute.xlu0 %4421
        %4423 = vrot.lane.b32.xlu0 %v407, 56
        %v4424 = vpop.permute.xlu0 %4423
        %v4475 = vrot.slane %v271, 5
        %v4476 = vrot.slane %v272, 5
        %v4477 = vsel %vm3797, %v4475, %v4476
        %v4478 = vrot.slane %v274, 5
        %v4479 = vrot.slane %v275, 5
        %v4480 = vsel %vm3797, %v4478, %v4479
        %v4481 = vrot.slane %v277, 5
        %v4482 = vrot.slane %v278, 5
        %v4483 = vsel %vm3797, %v4481, %v4482
        %4484 = vrot.lane.b32.xlu0 %v3816, 64
        %v4485 = vpop.permute.xlu0 %4484
        %4486 = vrot.lane.b32.xlu0 %v3818, 64
        %v4487 = vpop.permute.xlu0 %4486
        %4488 = vrot.lane.b32.xlu0 %v3817, 64
        %v4489 = vpop.permute.xlu0 %4488
        %4490 = vrot.lane.b32.xlu0 %v3819, 64
        %v4491 = vpop.permute.xlu0 %4490
        %4492 = vrot.lane.b32.xlu0 %v3821, 64
        %v4493 = vpop.permute.xlu0 %4492
        %4494 = vrot.lane.b32.xlu0 %v3820, 64
        %v4495 = vpop.permute.xlu0 %4494
        %4496 = vrot.lane.b32.xlu0 %v3822, 64
        %v4497 = vpop.permute.xlu0 %4496
        %4498 = vrot.lane.b32.xlu0 %v3824, 64
        %v4499 = vpop.permute.xlu0 %4498
        %4500 = vrot.lane.b32.xlu0 %v3823, 64
        %v4501 = vpop.permute.xlu0 %4500
        %4502 = vrot.lane.b32.xlu0 %v3825, 64
        %v4503 = vpop.permute.xlu0 %4502
        %4504 = vrot.lane.b32.xlu0 %v3827, 64
        %v4505 = vpop.permute.xlu0 %4504
        %4506 = vrot.lane.b32.xlu0 %v3826, 64
        %v4507 = vpop.permute.xlu0 %4506
        %4508 = vrot.lane.b32.xlu0 %v3828, 64
        %v4509 = vpop.permute.xlu0 %4508
        %4510 = vrot.lane.b32.xlu0 %v3830, 64
        %v4511 = vpop.permute.xlu0 %4510
        %4512 = vrot.lane.b32.xlu0 %v3829, 64
        %v4513 = vpop.permute.xlu0 %4512
        %4514 = vrot.lane.b32.xlu0 %v3831, 64
        %v4515 = vpop.permute.xlu0 %4514
        %4516 = vrot.lane.b32.xlu0 %v3833, 64
        %v4517 = vpop.permute.xlu0 %4516
        %4518 = vrot.lane.b32.xlu0 %v3832, 64
        %v4519 = vpop.permute.xlu0 %4518
        %4520 = vrot.lane.b32.xlu0 %v3834, 64
        %v4521 = vpop.permute.xlu0 %4520
        %4522 = vrot.lane.b32.xlu0 %v3836, 64
        %v4523 = vpop.permute.xlu0 %4522
        %4524 = vrot.lane.b32.xlu0 %v3835, 64
        %v4525 = vpop.permute.xlu0 %4524
        %4526 = vrot.lane.b32.xlu0 %v3837, 64
        %v4527 = vpop.permute.xlu0 %4526
        %4528 = vrot.lane.b32.xlu0 %v3839, 64
        %v4529 = vpop.permute.xlu0 %4528
        %4530 = vrot.lane.b32.xlu0 %v3838, 64
        %v4531 = vpop.permute.xlu0 %4530
        %4532 = vrot.lane.b32.xlu0 %v3840, 64
        %v4533 = vpop.permute.xlu0 %4532
        %4534 = vrot.lane.b32.xlu0 %v3842, 64
        %v4535 = vpop.permute.xlu0 %4534
        %4536 = vrot.lane.b32.xlu0 %v3841, 64
        %v4537 = vpop.permute.xlu0 %4536
        %4538 = vrot.lane.b32.xlu0 %v3843, 64
        %v4539 = vpop.permute.xlu0 %4538
        %4540 = vrot.lane.b32.xlu0 %v3845, 64
        %v4541 = vpop.permute.xlu0 %4540
        %4542 = vrot.lane.b32.xlu0 %v3844, 64
        %v4543 = vpop.permute.xlu0 %4542
        %4544 = vrot.lane.b32.xlu0 %v4167, 64
        %v4545 = vpop.permute.xlu0 %4544
        %4546 = vrot.lane.b32.xlu0 %v4169, 64
        %v4547 = vpop.permute.xlu0 %4546
        %4548 = vrot.lane.b32.xlu0 %v4168, 64
        %v4549 = vpop.permute.xlu0 %4548
        %4550 = vrot.lane.b32.xlu0 %v4170, 64
        %v4551 = vpop.permute.xlu0 %4550
        %4552 = vrot.lane.b32.xlu0 %v4172, 64
        %v4553 = vpop.permute.xlu0 %4552
        %4554 = vrot.lane.b32.xlu0 %v4171, 64
        %v4555 = vpop.permute.xlu0 %4554
        %4556 = vrot.lane.b32.xlu0 %v4173, 64
        %v4557 = vpop.permute.xlu0 %4556
        %4558 = vrot.lane.b32.xlu0 %v4175, 64
        %v4559 = vpop.permute.xlu0 %4558
        %4560 = vrot.lane.b32.xlu0 %v4174, 64
        %v4561 = vpop.permute.xlu0 %4560
        %4562 = vrot.lane.b32.xlu0 %v4475, 64
        %v4563 = vpop.permute.xlu0 %4562
        %4564 = vrot.lane.b32.xlu0 %v4477, 64
        %v4565 = vpop.permute.xlu0 %4564
        %4566 = vrot.lane.b32.xlu0 %v4476, 64
        %v4567 = vpop.permute.xlu0 %4566
        %4568 = vrot.lane.b32.xlu0 %v4478, 64
        %v4569 = vpop.permute.xlu0 %4568
        %4570 = vrot.lane.b32.xlu0 %v4480, 64
        %v4571 = vpop.permute.xlu0 %4570
        %4572 = vrot.lane.b32.xlu0 %v4479, 64
        %v4573 = vpop.permute.xlu0 %4572
        %4574 = vrot.lane.b32.xlu0 %v4481, 64
        %v4575 = vpop.permute.xlu0 %4574
        %4576 = vrot.lane.b32.xlu0 %v4483, 64
        %v4577 = vpop.permute.xlu0 %4576
        %4578 = vrot.lane.b32.xlu0 %v4482, 64
        %v4579 = vpop.permute.xlu0 %4578
        %4629 = vrot.lane.b32.xlu0 %v232, 72
        %v4630 = vpop.permute.xlu0 %4629
        %4631 = vrot.lane.b32.xlu0 %v233, 72
        %v4632 = vpop.permute.xlu0 %4631
        %4633 = vrot.lane.b32.xlu0 %v234, 72
        %v4634 = vpop.permute.xlu0 %4633
        %4635 = vrot.lane.b32.xlu0 %v235, 72
        %v4636 = vpop.permute.xlu0 %4635
        %4637 = vrot.lane.b32.xlu0 %v236, 72
        %v4638 = vpop.permute.xlu0 %4637
        %4639 = vrot.lane.b32.xlu0 %v237, 72
        %v4640 = vpop.permute.xlu0 %4639
        %4641 = vrot.lane.b32.xlu0 %v238, 72
        %v4642 = vpop.permute.xlu0 %4641
        %4643 = vrot.lane.b32.xlu0 %v239, 72
        %v4644 = vpop.permute.xlu0 %4643
        %4645 = vrot.lane.b32.xlu0 %v240, 72
        %v4646 = vpop.permute.xlu0 %4645
        %4647 = vrot.lane.b32.xlu0 %v241, 72
        %v4648 = vpop.permute.xlu0 %4647
        %4649 = vrot.lane.b32.xlu0 %v242, 72
        %v4650 = vpop.permute.xlu0 %4649
        %4651 = vrot.lane.b32.xlu0 %v243, 72
        %v4652 = vpop.permute.xlu0 %4651
        %4653 = vrot.lane.b32.xlu0 %v244, 72
        %v4654 = vpop.permute.xlu0 %4653
        %4655 = vrot.lane.b32.xlu0 %v245, 72
        %v4656 = vpop.permute.xlu0 %4655
        %4657 = vrot.lane.b32.xlu0 %v246, 72
        %v4658 = vpop.permute.xlu0 %4657
        %4659 = vrot.lane.b32.xlu0 %v247, 72
        %v4660 = vpop.permute.xlu0 %4659
        %4661 = vrot.lane.b32.xlu0 %v248, 72
        %v4662 = vpop.permute.xlu0 %4661
        %4663 = vrot.lane.b32.xlu0 %v249, 72
        %v4664 = vpop.permute.xlu0 %4663
        %4665 = vrot.lane.b32.xlu0 %v250, 72
        %v4666 = vpop.permute.xlu0 %4665
        %4667 = vrot.lane.b32.xlu0 %v251, 72
        %v4668 = vpop.permute.xlu0 %4667
        %4669 = vrot.lane.b32.xlu0 %v252, 72
        %v4670 = vpop.permute.xlu0 %4669
        %4671 = vrot.lane.b32.xlu0 %v253, 72
        %v4672 = vpop.permute.xlu0 %4671
        %4673 = vrot.lane.b32.xlu0 %v254, 72
        %v4674 = vpop.permute.xlu0 %4673
        %4675 = vrot.lane.b32.xlu0 %v255, 72
        %v4676 = vpop.permute.xlu0 %4675
        %4677 = vrot.lane.b32.xlu0 %v256, 72
        %v4678 = vpop.permute.xlu0 %4677
        %4679 = vrot.lane.b32.xlu0 %v257, 72
        %v4680 = vpop.permute.xlu0 %4679
        %4681 = vrot.lane.b32.xlu0 %v258, 72
        %v4682 = vpop.permute.xlu0 %4681
        %4683 = vrot.lane.b32.xlu0 %v259, 72
        %v4684 = vpop.permute.xlu0 %4683
        %4685 = vrot.lane.b32.xlu0 %v260, 72
        %v4686 = vpop.permute.xlu0 %4685
        %4687 = vrot.lane.b32.xlu0 %v261, 72
        %v4688 = vpop.permute.xlu0 %4687
        %4689 = vrot.lane.b32.xlu0 %v262, 72
        %v4690 = vpop.permute.xlu0 %4689
        %4691 = vrot.lane.b32.xlu0 %v263, 72
        %v4692 = vpop.permute.xlu0 %4691
        %4693 = vrot.lane.b32.xlu0 %v264, 72
        %v4694 = vpop.permute.xlu0 %4693
        %4695 = vrot.lane.b32.xlu0 %v265, 72
        %v4696 = vpop.permute.xlu0 %4695
        %4697 = vrot.lane.b32.xlu0 %v266, 72
        %v4698 = vpop.permute.xlu0 %4697
        %4699 = vrot.lane.b32.xlu0 %v267, 72
        %v4700 = vpop.permute.xlu0 %4699
        %4701 = vrot.lane.b32.xlu0 %v268, 72
        %v4702 = vpop.permute.xlu0 %4701
        %4703 = vrot.lane.b32.xlu0 %v269, 72
        %v4704 = vpop.permute.xlu0 %4703
        %4705 = vrot.lane.b32.xlu0 %v270, 72
        %v4706 = vpop.permute.xlu0 %4705
        %4707 = vrot.lane.b32.xlu0 %v271, 72
        %v4708 = vpop.permute.xlu0 %4707
        %4709 = vrot.lane.b32.xlu0 %v272, 72
        %v4710 = vpop.permute.xlu0 %4709
        %4711 = vrot.lane.b32.xlu0 %v273, 72
        %v4712 = vpop.permute.xlu0 %4711
        %4713 = vrot.lane.b32.xlu0 %v274, 72
        %v4714 = vpop.permute.xlu0 %4713
        %4715 = vrot.lane.b32.xlu0 %v275, 72
        %v4716 = vpop.permute.xlu0 %4715
        %4717 = vrot.lane.b32.xlu0 %v276, 72
        %v4718 = vpop.permute.xlu0 %4717
        %4719 = vrot.lane.b32.xlu0 %v277, 72
        %v4720 = vpop.permute.xlu0 %4719
        %4721 = vrot.lane.b32.xlu0 %v278, 72
        %v4722 = vpop.permute.xlu0 %4721
        %4723 = vrot.lane.b32.xlu0 %v279, 72
        %v4724 = vpop.permute.xlu0 %4723
        %v4773 = vrot.slane %v271, 3
        %v4774 = vrot.slane %v272, 3
        %v4775 = vsel %vm328, %v4773, %v4774
        %v4776 = vrot.slane %v273, 3
        %v4777 = vsel %vm328, %v4774, %v4776
        %v4778 = vrot.slane %v274, 3
        %v4779 = vrot.slane %v275, 3
        %v4780 = vsel %vm328, %v4778, %v4779
        %v4781 = vrot.slane %v276, 3
        %v4782 = vsel %vm328, %v4779, %v4781
        %v4783 = vrot.slane %v277, 3
        %v4784 = vrot.slane %v278, 3
        %v4785 = vsel %vm328, %v4783, %v4784
        %v4786 = vrot.slane %v279, 3
        %v4787 = vsel %vm328, %v4784, %v4786
        %4788 = vrot.lane.b32.xlu0 %v346, 80
        %v4789 = vpop.permute.xlu0 %4788
        %4790 = vrot.lane.b32.xlu0 %v348, 80
        %v4791 = vpop.permute.xlu0 %4790
        %4792 = vrot.lane.b32.xlu0 %v347, 80
        %v4793 = vpop.permute.xlu0 %4792
        %4794 = vrot.lane.b32.xlu0 %v351, 80
        %v4795 = vpop.permute.xlu0 %4794
        %4796 = vrot.lane.b32.xlu0 %v353, 80
        %v4797 = vpop.permute.xlu0 %4796
        %4798 = vrot.lane.b32.xlu0 %v352, 80
        %v4799 = vpop.permute.xlu0 %4798
        %4800 = vrot.lane.b32.xlu0 %v356, 80
        %v4801 = vpop.permute.xlu0 %4800
        %4802 = vrot.lane.b32.xlu0 %v358, 80
        %v4803 = vpop.permute.xlu0 %4802
        %4804 = vrot.lane.b32.xlu0 %v357, 80
        %v4805 = vpop.permute.xlu0 %4804
        %4806 = vrot.lane.b32.xlu0 %v361, 80
        %v4807 = vpop.permute.xlu0 %4806
        %4808 = vrot.lane.b32.xlu0 %v363, 80
        %v4809 = vpop.permute.xlu0 %4808
        %4810 = vrot.lane.b32.xlu0 %v362, 80
        %v4811 = vpop.permute.xlu0 %4810
        %4812 = vrot.lane.b32.xlu0 %v366, 80
        %v4813 = vpop.permute.xlu0 %4812
        %4814 = vrot.lane.b32.xlu0 %v368, 80
        %v4815 = vpop.permute.xlu0 %4814
        %4816 = vrot.lane.b32.xlu0 %v367, 80
        %v4817 = vpop.permute.xlu0 %4816
        %4818 = vrot.lane.b32.xlu0 %v371, 80
        %v4819 = vpop.permute.xlu0 %4818
        %4820 = vrot.lane.b32.xlu0 %v373, 80
        %v4821 = vpop.permute.xlu0 %4820
        %4822 = vrot.lane.b32.xlu0 %v372, 80
        %v4823 = vpop.permute.xlu0 %4822
        %4824 = vrot.lane.b32.xlu0 %v376, 80
        %v4825 = vpop.permute.xlu0 %4824
        %4826 = vrot.lane.b32.xlu0 %v378, 80
        %v4827 = vpop.permute.xlu0 %4826
        %4828 = vrot.lane.b32.xlu0 %v377, 80
        %v4829 = vpop.permute.xlu0 %4828
        %4830 = vrot.lane.b32.xlu0 %v381, 80
        %v4831 = vpop.permute.xlu0 %4830
        %4832 = vrot.lane.b32.xlu0 %v383, 80
        %v4833 = vpop.permute.xlu0 %4832
        %4834 = vrot.lane.b32.xlu0 %v382, 80
        %v4835 = vpop.permute.xlu0 %4834
        %4836 = vrot.lane.b32.xlu0 %v386, 80
        %v4837 = vpop.permute.xlu0 %4836
        %4838 = vrot.lane.b32.xlu0 %v388, 80
        %v4839 = vpop.permute.xlu0 %4838
        %4840 = vrot.lane.b32.xlu0 %v387, 80
        %v4841 = vpop.permute.xlu0 %4840
        %4842 = vrot.lane.b32.xlu0 %v391, 80
        %v4843 = vpop.permute.xlu0 %4842
        %4844 = vrot.lane.b32.xlu0 %v393, 80
        %v4845 = vpop.permute.xlu0 %4844
        %4846 = vrot.lane.b32.xlu0 %v392, 80
        %v4847 = vpop.permute.xlu0 %4846
        %4848 = vrot.lane.b32.xlu0 %v396, 80
        %v4849 = vpop.permute.xlu0 %4848
        %4850 = vrot.lane.b32.xlu0 %v398, 80
        %v4851 = vpop.permute.xlu0 %4850
        %4852 = vrot.lane.b32.xlu0 %v397, 80
        %v4853 = vpop.permute.xlu0 %4852
        %4854 = vrot.lane.b32.xlu0 %v401, 80
        %v4855 = vpop.permute.xlu0 %4854
        %4856 = vrot.lane.b32.xlu0 %v403, 80
        %v4857 = vpop.permute.xlu0 %4856
        %4858 = vrot.lane.b32.xlu0 %v402, 80
        %v4859 = vpop.permute.xlu0 %4858
        %4860 = vrot.lane.b32.xlu0 %v406, 80
        %v4861 = vpop.permute.xlu0 %4860
        %4862 = vrot.lane.b32.xlu0 %v408, 80
        %v4863 = vpop.permute.xlu0 %4862
        %4864 = vrot.lane.b32.xlu0 %v407, 80
        %v4865 = vpop.permute.xlu0 %4864
        %4866 = vrot.lane.b32.xlu0 %v4775, 80
        %v4867 = vpop.permute.xlu0 %4866
        %4868 = vrot.lane.b32.xlu0 %v4777, 80
        %v4869 = vpop.permute.xlu0 %4868
        %4870 = vrot.lane.b32.xlu0 %v4776, 80
        %v4871 = vpop.permute.xlu0 %4870
        %4872 = vrot.lane.b32.xlu0 %v4780, 80
        %v4873 = vpop.permute.xlu0 %4872
        %4874 = vrot.lane.b32.xlu0 %v4782, 80
        %v4875 = vpop.permute.xlu0 %4874
        %4876 = vrot.lane.b32.xlu0 %v4781, 80
        %v4877 = vpop.permute.xlu0 %4876
        %4878 = vrot.lane.b32.xlu0 %v4785, 80
        %v4879 = vpop.permute.xlu0 %4878
        %4880 = vrot.lane.b32.xlu0 %v4787, 80
        %v4881 = vpop.permute.xlu0 %4880
        %4882 = vrot.lane.b32.xlu0 %v4786, 80
        %v4883 = vpop.permute.xlu0 %4882
        %v4932 = vsel %vm2911, %v229, %v3652
        %v4933 = vsel %vm2911, %v230, %v3654
        %v4934 = vsel %vm2911, %v231, %v3656
        %v4935 = vsel %vm2911, %v232, %v3658
        %v4936 = vsel %vm2911, %v233, %v3660
        %v4937 = vsel %vm2911, %v234, %v3662
        %v4938 = vsel %vm2911, %v235, %v3664
        %v4939 = vsel %vm2911, %v236, %v3666
        %v4940 = vsel %vm2911, %v237, %v3668
        %v4941 = vsel %vm2911, %v238, %v3670
        %v4942 = vsel %vm2911, %v239, %v3672
        %v4943 = vsel %vm2911, %v240, %v3674
        %v4944 = vsel %vm2911, %v241, %v3676
        %v4945 = vsel %vm2911, %v242, %v3678
        %v4946 = vsel %vm2911, %v243, %v3680
        %v4947 = vsel %vm2911, %v244, %v3682
        %v4948 = vsel %vm2911, %v245, %v3684
        %v4949 = vsel %vm2911, %v246, %v3686
        %v4950 = vsel %vm2911, %v247, %v3688
        %v4951 = vsel %vm2911, %v248, %v3690
        %v4952 = vsel %vm2911, %v249, %v3692
        %v4953 = vsel %vm2911, %v250, %v3694
        %v4954 = vsel %vm2911, %v251, %v3696
        %v4955 = vsel %vm2911, %v252, %v3698
        %v4956 = vsel %vm2911, %v253, %v3700
        %v4957 = vsel %vm2911, %v254, %v3702
        %v4958 = vsel %vm2911, %v255, %v3704
        %v4959 = vsel %vm2911, %v256, %v3706
        %v4960 = vsel %vm2911, %v257, %v3708
        %v4961 = vsel %vm2911, %v258, %v3710
        %v4962 = vsel %vm2911, %v259, %v3712
        %v4963 = vsel %vm2911, %v260, %v3714
        %v4964 = vsel %vm2911, %v261, %v3716
        %v4965 = vsel %vm2911, %v262, %v3718
        %v4966 = vsel %vm2911, %v263, %v3720
        %v4967 = vsel %vm2911, %v264, %v3722
        %v4968 = vsel %vm2911, %v265, %v3724
        %v4969 = vsel %vm2911, %v266, %v3726
        %v4970 = vsel %vm2911, %v267, %v3728
        %v4971 = vsel %vm2911, %v268, %v3730
        %v4972 = vsel %vm2911, %v269, %v3732
        %v4973 = vsel %vm2911, %v270, %v3734
        %v4974 = vsel %vm2911, %v271, %v3736
        %v4975 = vsel %vm2911, %v272, %v3738
        %v4976 = vsel %vm2911, %v273, %v3740
        %v4977 = vsel %vm2911, %v274, %v3742
        %v4978 = vsel %vm2911, %v275, %v3744
        %v4979 = vsel %vm2911, %v276, %v3746
        %v4980 = vsel %vm2960, %v4932, %v3847
        %v4981 = vsel %vm2960, %v4933, %v3849
        %v4982 = vsel %vm2960, %v4934, %v3851
        %v4983 = vsel %vm2960, %v4935, %v3853
        %v4984 = vsel %vm2960, %v4936, %v3855
        %v4985 = vsel %vm2960, %v4937, %v3857
        %v4986 = vsel %vm2960, %v4938, %v3859
        %v4987 = vsel %vm2960, %v4939, %v3861
        %v4988 = vsel %vm2960, %v4940, %v3863
        %v4989 = vsel %vm2960, %v4941, %v3865
        %v4990 = vsel %vm2960, %v4942, %v3867
        %v4991 = vsel %vm2960, %v4943, %v3869
        %v4992 = vsel %vm2960, %v4944, %v3871
        %v4993 = vsel %vm2960, %v4945, %v3873
        %v4994 = vsel %vm2960, %v4946, %v3875
        %v4995 = vsel %vm2960, %v4947, %v3877
        %v4996 = vsel %vm2960, %v4948, %v3879
        %v4997 = vsel %vm2960, %v4949, %v3881
        %v4998 = vsel %vm2960, %v4950, %v3883
        %v4999 = vsel %vm2960, %v4951, %v3885
        %v5000 = vsel %vm2960, %v4952, %v3887
        %v5001 = vsel %vm2960, %v4953, %v3889
        %v5002 = vsel %vm2960, %v4954, %v3891
        %v5003 = vsel %vm2960, %v4955, %v3893
        %v5004 = vsel %vm2960, %v4956, %v3895
        %v5005 = vsel %vm2960, %v4957, %v3897
        %v5006 = vsel %vm2960, %v4958, %v3899
        %v5007 = vsel %vm2960, %v4959, %v3901
        %v5008 = vsel %vm2960, %v4960, %v3903
        %v5009 = vsel %vm2960, %v4961, %v3905
        %v5010 = vsel %vm2960, %v4962, %v3907
        %v5011 = vsel %vm2960, %v4963, %v3909
        %v5012 = vsel %vm2960, %v4964, %v3911
        %v5013 = vsel %vm2960, %v4965, %v3913
        %v5014 = vsel %vm2960, %v4966, %v3915
        %v5015 = vsel %vm2960, %v4967, %v3917
        %v5016 = vsel %vm2960, %v4968, %v3919
        %v5017 = vsel %vm2960, %v4969, %v3921
        %v5018 = vsel %vm2960, %v4970, %v3923
        %v5019 = vsel %vm2960, %v4971, %v3925
        %v5020 = vsel %vm2960, %v4972, %v3927
        %v5021 = vsel %vm2960, %v4973, %v3929
        %v5022 = vsel %vm2960, %v4974, %v3931
        %v5023 = vsel %vm2960, %v4975, %v3933
        %v5024 = vsel %vm2960, %v4976, %v3935
        %v5025 = vsel %vm2960, %v4977, %v3937
        %v5026 = vsel %vm2960, %v4978, %v3939
        %v5027 = vsel %vm2960, %v4979, %v3941
        %v5028 = vsel %vm3009, %v4980, %v3992
        %v5029 = vsel %vm3009, %v4981, %v3994
        %v5030 = vsel %vm3009, %v4982, %v3996
        %v5031 = vsel %vm3009, %v4983, %v3998
        %v5032 = vsel %vm3009, %v4984, %v4000
        %v5033 = vsel %vm3009, %v4985, %v4002
        %v5034 = vsel %vm3009, %v4986, %v4004
        %v5035 = vsel %vm3009, %v4987, %v4006
        %v5036 = vsel %vm3009, %v4988, %v4008
        %v5037 = vsel %vm3009, %v4989, %v895
        %v5038 = vsel %vm3009, %v4990, %v897
        %v5039 = vsel %vm3009, %v4991, %v899
        %v5040 = vsel %vm3009, %v4992, %v901
        %v5041 = vsel %vm3009, %v4993, %v903
        %v5042 = vsel %vm3009, %v4994, %v905
        %v5043 = vsel %vm3009, %v4995, %v907
        %v5044 = vsel %vm3009, %v4996, %v909
        %v5045 = vsel %vm3009, %v4997, %v911
        %v5046 = vsel %vm3009, %v4998, %v913
        %v5047 = vsel %vm3009, %v4999, %v915
        %v5048 = vsel %vm3009, %v5000, %v917
        %v5049 = vsel %vm3009, %v5001, %v919
        %v5050 = vsel %vm3009, %v5002, %v921
        %v5051 = vsel %vm3009, %v5003, %v923
        %v5052 = vsel %vm3009, %v5004, %v925
        %v5053 = vsel %vm3009, %v5005, %v927
        %v5054 = vsel %vm3009, %v5006, %v929
        %v5055 = vsel %vm3009, %v5007, %v931
        %v5056 = vsel %vm3009, %v5008, %v933
        %v5057 = vsel %vm3009, %v5009, %v935
        %v5058 = vsel %vm3009, %v5010, %v937
        %v5059 = vsel %vm3009, %v5011, %v939
        %v5060 = vsel %vm3009, %v5012, %v941
        %v5061 = vsel %vm3009, %v5013, %v943
        %v5062 = vsel %vm3009, %v5014, %v945
        %v5063 = vsel %vm3009, %v5015, %v947
        %v5064 = vsel %vm3009, %v5016, %v949
        %v5065 = vsel %vm3009, %v5017, %v951
        %v5066 = vsel %vm3009, %v5018, %v953
        %v5067 = vsel %vm3009, %v5019, %v955
        %v5068 = vsel %vm3009, %v5020, %v957
        %v5069 = vsel %vm3009, %v5021, %v959
        %v5070 = vsel %vm3009, %v5022, %v961
        %v5071 = vsel %vm3009, %v5023, %v963
        %v5072 = vsel %vm3009, %v5024, %v965
        %v5073 = vsel %vm3009, %v5025, %v967
        %v5074 = vsel %vm3009, %v5026, %v969
        %v5075 = vsel %vm3009, %v5027, %v971
        %v5076 = vsel %vm3058, %v5028, %v4024
        %v5077 = vsel %vm3058, %v5029, %v4026
        %v5078 = vsel %vm3058, %v5030, %v4028
        %v5079 = vsel %vm3058, %v5031, %v4030
        %v5080 = vsel %vm3058, %v5032, %v4032
        %v5081 = vsel %vm3058, %v5033, %v4034
        %v5082 = vsel %vm3058, %v5034, %v4036
        %v5083 = vsel %vm3058, %v5035, %v4038
        %v5084 = vsel %vm3058, %v5036, %v4040
        %v5085 = vsel %vm3058, %v5037, %v4042
        %v5086 = vsel %vm3058, %v5038, %v4044
        %v5087 = vsel %vm3058, %v5039, %v4046
        %v5088 = vsel %vm3058, %v5040, %v4048
        %v5089 = vsel %vm3058, %v5041, %v4050
        %v5090 = vsel %vm3058, %v5042, %v4052
        %v5091 = vsel %vm3058, %v5043, %v4054
        %v5092 = vsel %vm3058, %v5044, %v4056
        %v5093 = vsel %vm3058, %v5045, %v4058
        %v5094 = vsel %vm3058, %v5046, %v4060
        %v5095 = vsel %vm3058, %v5047, %v4062
        %v5096 = vsel %vm3058, %v5048, %v4064
        %v5097 = vsel %vm3058, %v5049, %v4066
        %v5098 = vsel %vm3058, %v5050, %v4068
        %v5099 = vsel %vm3058, %v5051, %v4070
        %v5100 = vsel %vm3058, %v5052, %v4072
        %v5101 = vsel %vm3058, %v5053, %v4074
        %v5102 = vsel %vm3058, %v5054, %v4076
        %v5103 = vsel %vm3058, %v5055, %v4078
        %v5104 = vsel %vm3058, %v5056, %v4080
        %v5105 = vsel %vm3058, %v5057, %v4082
        %v5106 = vsel %vm3058, %v5058, %v4084
        %v5107 = vsel %vm3058, %v5059, %v4086
        %v5108 = vsel %vm3058, %v5060, %v4088
        %v5109 = vsel %vm3058, %v5061, %v4090
        %v5110 = vsel %vm3058, %v5062, %v4092
        %v5111 = vsel %vm3058, %v5063, %v4094
        %v5112 = vsel %vm3058, %v5064, %v4096
        %v5113 = vsel %vm3058, %v5065, %v4098
        %v5114 = vsel %vm3058, %v5066, %v4100
        %v5115 = vsel %vm3058, %v5067, %v4102
        %v5116 = vsel %vm3058, %v5068, %v4104
        %v5117 = vsel %vm3058, %v5069, %v4106
        %v5118 = vsel %vm3058, %v5070, %v4108
        %v5119 = vsel %vm3058, %v5071, %v4110
        %v5120 = vsel %vm3058, %v5072, %v4112
        %v5121 = vsel %vm3058, %v5073, %v4114
        %v5122 = vsel %vm3058, %v5074, %v4116
        %v5123 = vsel %vm3058, %v5075, %v4118
        %v5124 = vsel %vm3107, %v5076, %v4177
        %v5125 = vsel %vm3107, %v5077, %v4179
        %v5126 = vsel %vm3107, %v5078, %v4181
        %v5127 = vsel %vm3107, %v5079, %v4183
        %v5128 = vsel %vm3107, %v5080, %v4185
        %v5129 = vsel %vm3107, %v5081, %v4187
        %v5130 = vsel %vm3107, %v5082, %v4189
        %v5131 = vsel %vm3107, %v5083, %v4191
        %v5132 = vsel %vm3107, %v5084, %v4193
        %v5133 = vsel %vm3107, %v5085, %v4195
        %v5134 = vsel %vm3107, %v5086, %v4197
        %v5135 = vsel %vm3107, %v5087, %v4199
        %v5136 = vsel %vm3107, %v5088, %v4201
        %v5137 = vsel %vm3107, %v5089, %v4203
        %v5138 = vsel %vm3107, %v5090, %v4205
        %v5139 = vsel %vm3107, %v5091, %v4207
        %v5140 = vsel %vm3107, %v5092, %v4209
        %v5141 = vsel %vm3107, %v5093, %v4211
        %v5142 = vsel %vm3107, %v5094, %v4213
        %v5143 = vsel %vm3107, %v5095, %v4215
        %v5144 = vsel %vm3107, %v5096, %v4217
        %v5145 = vsel %vm3107, %v5097, %v4219
        %v5146 = vsel %vm3107, %v5098, %v4221
        %v5147 = vsel %vm3107, %v5099, %v4223
        %v5148 = vsel %vm3107, %v5100, %v4225
        %v5149 = vsel %vm3107, %v5101, %v4227
        %v5150 = vsel %vm3107, %v5102, %v4229
        %v5151 = vsel %vm3107, %v5103, %v4231
        %v5152 = vsel %vm3107, %v5104, %v4233
        %v5153 = vsel %vm3107, %v5105, %v4235
        %v5154 = vsel %vm3107, %v5106, %v4237
        %v5155 = vsel %vm3107, %v5107, %v4239
        %v5156 = vsel %vm3107, %v5108, %v4241
        %v5157 = vsel %vm3107, %v5109, %v4243
        %v5158 = vsel %vm3107, %v5110, %v4245
        %v5159 = vsel %vm3107, %v5111, %v4247
        %v5160 = vsel %vm3107, %v5112, %v4249
        %v5161 = vsel %vm3107, %v5113, %v4251
        %v5162 = vsel %vm3107, %v5114, %v4253
        %v5163 = vsel %vm3107, %v5115, %v4255
        %v5164 = vsel %vm3107, %v5116, %v4257
        %v5165 = vsel %vm3107, %v5117, %v4259
        %v5166 = vsel %vm3107, %v5118, %v4261
        %v5167 = vsel %vm3107, %v5119, %v4263
        %v5168 = vsel %vm3107, %v5120, %v4265
        %v5169 = vsel %vm3107, %v5121, %v4267
        %v5170 = vsel %vm3107, %v5122, %v4269
        %v5171 = vsel %vm3107, %v5123, %v4271
        %v5172 = vsel %vm3156, %v5124, %v4321
        %v5173 = vsel %vm3156, %v5125, %v4323
        %v5174 = vsel %vm3156, %v5126, %v4325
        %v5175 = vsel %vm3156, %v5127, %v1340
        %v5176 = vsel %vm3156, %v5128, %v1342
        %v5177 = vsel %vm3156, %v5129, %v1344
        %v5178 = vsel %vm3156, %v5130, %v1346
        %v5179 = vsel %vm3156, %v5131, %v1348
        %v5180 = vsel %vm3156, %v5132, %v1350
        %v5181 = vsel %vm3156, %v5133, %v1352
        %v5182 = vsel %vm3156, %v5134, %v1354
        %v5183 = vsel %vm3156, %v5135, %v1356
        %v5184 = vsel %vm3156, %v5136, %v1358
        %v5185 = vsel %vm3156, %v5137, %v1360
        %v5186 = vsel %vm3156, %v5138, %v1362
        %v5187 = vsel %vm3156, %v5139, %v1364
        %v5188 = vsel %vm3156, %v5140, %v1366
        %v5189 = vsel %vm3156, %v5141, %v1368
        %v5190 = vsel %vm3156, %v5142, %v1370
        %v5191 = vsel %vm3156, %v5143, %v1372
        %v5192 = vsel %vm3156, %v5144, %v1374
        %v5193 = vsel %vm3156, %v5145, %v1376
        %v5194 = vsel %vm3156, %v5146, %v1378
        %v5195 = vsel %vm3156, %v5147, %v1380
        %v5196 = vsel %vm3156, %v5148, %v1382
        %v5197 = vsel %vm3156, %v5149, %v1384
        %v5198 = vsel %vm3156, %v5150, %v1386
        %v5199 = vsel %vm3156, %v5151, %v1388
        %v5200 = vsel %vm3156, %v5152, %v1390
        %v5201 = vsel %vm3156, %v5153, %v1392
        %v5202 = vsel %vm3156, %v5154, %v1394
        %v5203 = vsel %vm3156, %v5155, %v1396
        %v5204 = vsel %vm3156, %v5156, %v1398
        %v5205 = vsel %vm3156, %v5157, %v1400
        %v5206 = vsel %vm3156, %v5158, %v1402
        %v5207 = vsel %vm3156, %v5159, %v1404
        %v5208 = vsel %vm3156, %v5160, %v1406
        %v5209 = vsel %vm3156, %v5161, %v1408
        %v5210 = vsel %vm3156, %v5162, %v1410
        %v5211 = vsel %vm3156, %v5163, %v1412
        %v5212 = vsel %vm3156, %v5164, %v1414
        %v5213 = vsel %vm3156, %v5165, %v1416
        %v5214 = vsel %vm3156, %v5166, %v1418
        %v5215 = vsel %vm3156, %v5167, %v1420
        %v5216 = vsel %vm3156, %v5168, %v1422
        %v5217 = vsel %vm3156, %v5169, %v1424
        %v5218 = vsel %vm3156, %v5170, %v1426
        %v5219 = vsel %vm3156, %v5171, %v1428
        %v5220 = vsel %vm3205, %v5172, %v4330
        %v5221 = vsel %vm3205, %v5173, %v4332
        %v5222 = vsel %vm3205, %v5174, %v4334
        %v5223 = vsel %vm3205, %v5175, %v4336
        %v5224 = vsel %vm3205, %v5176, %v4338
        %v5225 = vsel %vm3205, %v5177, %v4340
        %v5226 = vsel %vm3205, %v5178, %v4342
        %v5227 = vsel %vm3205, %v5179, %v4344
        %v5228 = vsel %vm3205, %v5180, %v4346
        %v5229 = vsel %vm3205, %v5181, %v4348
        %v5230 = vsel %vm3205, %v5182, %v4350
        %v5231 = vsel %vm3205, %v5183, %v4352
        %v5232 = vsel %vm3205, %v5184, %v4354
        %v5233 = vsel %vm3205, %v5185, %v4356
        %v5234 = vsel %vm3205, %v5186, %v4358
        %v5235 = vsel %vm3205, %v5187, %v4360
        %v5236 = vsel %vm3205, %v5188, %v4362
        %v5237 = vsel %vm3205, %v5189, %v4364
        %v5238 = vsel %vm3205, %v5190, %v4366
        %v5239 = vsel %vm3205, %v5191, %v4368
        %v5240 = vsel %vm3205, %v5192, %v4370
        %v5241 = vsel %vm3205, %v5193, %v4372
        %v5242 = vsel %vm3205, %v5194, %v4374
        %v5243 = vsel %vm3205, %v5195, %v4376
        %v5244 = vsel %vm3205, %v5196, %v4378
        %v5245 = vsel %vm3205, %v5197, %v4380
        %v5246 = vsel %vm3205, %v5198, %v4382
        %v5247 = vsel %vm3205, %v5199, %v4384
        %v5248 = vsel %vm3205, %v5200, %v4386
        %v5249 = vsel %vm3205, %v5201, %v4388
        %v5250 = vsel %vm3205, %v5202, %v4390
        %v5251 = vsel %vm3205, %v5203, %v4392
        %v5252 = vsel %vm3205, %v5204, %v4394
        %v5253 = vsel %vm3205, %v5205, %v4396
        %v5254 = vsel %vm3205, %v5206, %v4398
        %v5255 = vsel %vm3205, %v5207, %v4400
        %v5256 = vsel %vm3205, %v5208, %v4402
        %v5257 = vsel %vm3205, %v5209, %v4404
        %v5258 = vsel %vm3205, %v5210, %v4406
        %v5259 = vsel %vm3205, %v5211, %v4408
        %v5260 = vsel %vm3205, %v5212, %v4410
        %v5261 = vsel %vm3205, %v5213, %v4412
        %v5262 = vsel %vm3205, %v5214, %v4414
        %v5263 = vsel %vm3205, %v5215, %v4416
        %v5264 = vsel %vm3205, %v5216, %v4418
        %v5265 = vsel %vm3205, %v5217, %v4420
        %v5266 = vsel %vm3205, %v5218, %v4422
        %v5267 = vsel %vm3205, %v5219, %v4424
        %v5268 = vsel %vm3254, %v5220, %v4485
        %v5269 = vsel %vm3254, %v5221, %v4487
        %v5270 = vsel %vm3254, %v5222, %v4489
        %v5271 = vsel %vm3254, %v5223, %v4491
        %v5272 = vsel %vm3254, %v5224, %v4493
        %v5273 = vsel %vm3254, %v5225, %v4495
        %v5274 = vsel %vm3254, %v5226, %v4497
        %v5275 = vsel %vm3254, %v5227, %v4499
        %v5276 = vsel %vm3254, %v5228, %v4501
        %v5277 = vsel %vm3254, %v5229, %v4503
        %v5278 = vsel %vm3254, %v5230, %v4505
        %v5279 = vsel %vm3254, %v5231, %v4507
        %v5280 = vsel %vm3254, %v5232, %v4509
        %v5281 = vsel %vm3254, %v5233, %v4511
        %v5282 = vsel %vm3254, %v5234, %v4513
        %v5283 = vsel %vm3254, %v5235, %v4515
        %v5284 = vsel %vm3254, %v5236, %v4517
        %v5285 = vsel %vm3254, %v5237, %v4519
        %v5286 = vsel %vm3254, %v5238, %v4521
        %v5287 = vsel %vm3254, %v5239, %v4523
        %v5288 = vsel %vm3254, %v5240, %v4525
        %v5289 = vsel %vm3254, %v5241, %v4527
        %v5290 = vsel %vm3254, %v5242, %v4529
        %v5291 = vsel %vm3254, %v5243, %v4531
        %v5292 = vsel %vm3254, %v5244, %v4533
        %v5293 = vsel %vm3254, %v5245, %v4535
        %v5294 = vsel %vm3254, %v5246, %v4537
        %v5295 = vsel %vm3254, %v5247, %v4539
        %v5296 = vsel %vm3254, %v5248, %v4541
        %v5297 = vsel %vm3254, %v5249, %v4543
        %v5298 = vsel %vm3254, %v5250, %v4545
        %v5299 = vsel %vm3254, %v5251, %v4547
        %v5300 = vsel %vm3254, %v5252, %v4549
        %v5301 = vsel %vm3254, %v5253, %v4551
        %v5302 = vsel %vm3254, %v5254, %v4553
        %v5303 = vsel %vm3254, %v5255, %v4555
        %v5304 = vsel %vm3254, %v5256, %v4557
        %v5305 = vsel %vm3254, %v5257, %v4559
        %v5306 = vsel %vm3254, %v5258, %v4561
        %v5307 = vsel %vm3254, %v5259, %v4563
        %v5308 = vsel %vm3254, %v5260, %v4565
        %v5309 = vsel %vm3254, %v5261, %v4567
        %v5310 = vsel %vm3254, %v5262, %v4569
        %v5311 = vsel %vm3254, %v5263, %v4571
        %v5312 = vsel %vm3254, %v5264, %v4573
        %v5313 = vsel %vm3254, %v5265, %v4575
        %v5314 = vsel %vm3254, %v5266, %v4577
        %v5315 = vsel %vm3254, %v5267, %v4579
        %v5316 = vsel %vm3303, %v5268, %v4630
        %v5317 = vsel %vm3303, %v5269, %v4632
        %v5318 = vsel %vm3303, %v5270, %v4634
        %v5319 = vsel %vm3303, %v5271, %v4636
        %v5320 = vsel %vm3303, %v5272, %v4638
        %v5321 = vsel %vm3303, %v5273, %v4640
        %v5322 = vsel %vm3303, %v5274, %v4642
        %v5323 = vsel %vm3303, %v5275, %v4644
        %v5324 = vsel %vm3303, %v5276, %v4646
        %v5325 = vsel %vm3303, %v5277, %v4648
        %v5326 = vsel %vm3303, %v5278, %v4650
        %v5327 = vsel %vm3303, %v5279, %v4652
        %v5328 = vsel %vm3303, %v5280, %v4654
        %v5329 = vsel %vm3303, %v5281, %v4656
        %v5330 = vsel %vm3303, %v5282, %v4658
        %v5331 = vsel %vm3303, %v5283, %v4660
        %v5332 = vsel %vm3303, %v5284, %v4662
        %v5333 = vsel %vm3303, %v5285, %v4664
        %v5334 = vsel %vm3303, %v5286, %v4666
        %v5335 = vsel %vm3303, %v5287, %v4668
        %v5336 = vsel %vm3303, %v5288, %v4670
        %v5337 = vsel %vm3303, %v5289, %v4672
        %v5338 = vsel %vm3303, %v5290, %v4674
        %v5339 = vsel %vm3303, %v5291, %v4676
        %v5340 = vsel %vm3303, %v5292, %v4678
        %v5341 = vsel %vm3303, %v5293, %v4680
        %v5342 = vsel %vm3303, %v5294, %v4682
        %v5343 = vsel %vm3303, %v5295, %v4684
        %v5344 = vsel %vm3303, %v5296, %v4686
        %v5345 = vsel %vm3303, %v5297, %v4688
        %v5346 = vsel %vm3303, %v5298, %v4690
        %v5347 = vsel %vm3303, %v5299, %v4692
        %v5348 = vsel %vm3303, %v5300, %v4694
        %v5349 = vsel %vm3303, %v5301, %v4696
        %v5350 = vsel %vm3303, %v5302, %v4698
        %v5351 = vsel %vm3303, %v5303, %v4700
        %v5352 = vsel %vm3303, %v5304, %v4702
        %v5353 = vsel %vm3303, %v5305, %v4704
        %v5354 = vsel %vm3303, %v5306, %v4706
        %v5355 = vsel %vm3303, %v5307, %v4708
        %v5356 = vsel %vm3303, %v5308, %v4710
        %v5357 = vsel %vm3303, %v5309, %v4712
        %v5358 = vsel %vm3303, %v5310, %v4714
        %v5359 = vsel %vm3303, %v5311, %v4716
        %v5360 = vsel %vm3303, %v5312, %v4718
        %v5361 = vsel %vm3303, %v5313, %v4720
        %v5362 = vsel %vm3303, %v5314, %v4722
        %v5363 = vsel %vm3303, %v5315, %v4724
        %v5364 = vsel %vm3352, %v5316, %v4789
        %v5365 = vsel %vm3352, %v5317, %v4791
        %v5366 = vsel %vm3352, %v5318, %v4793
        %v5367 = vsel %vm3352, %v5319, %v4795
        %v5368 = vsel %vm3352, %v5320, %v4797
        %v5369 = vsel %vm3352, %v5321, %v4799
        %v5370 = vsel %vm3352, %v5322, %v4801
        %v5371 = vsel %vm3352, %v5323, %v4803
        %v5372 = vsel %vm3352, %v5324, %v4805
        %v5373 = vsel %vm3352, %v5325, %v4807
        %v5374 = vsel %vm3352, %v5326, %v4809
        %v5375 = vsel %vm3352, %v5327, %v4811
        %v5376 = vsel %vm3352, %v5328, %v4813
        %v5377 = vsel %vm3352, %v5329, %v4815
        %v5378 = vsel %vm3352, %v5330, %v4817
        %v5379 = vsel %vm3352, %v5331, %v4819
        %v5380 = vsel %vm3352, %v5332, %v4821
        %v5381 = vsel %vm3352, %v5333, %v4823
        %v5382 = vsel %vm3352, %v5334, %v4825
        %v5383 = vsel %vm3352, %v5335, %v4827
        %v5384 = vsel %vm3352, %v5336, %v4829
        %v5385 = vsel %vm3352, %v5337, %v4831
        %v5386 = vsel %vm3352, %v5338, %v4833
        %v5387 = vsel %vm3352, %v5339, %v4835
        %v5388 = vsel %vm3352, %v5340, %v4837
        %v5389 = vsel %vm3352, %v5341, %v4839
        %v5390 = vsel %vm3352, %v5342, %v4841
        %v5391 = vsel %vm3352, %v5343, %v4843
        %v5392 = vsel %vm3352, %v5344, %v4845
        %v5393 = vsel %vm3352, %v5345, %v4847
        %v5394 = vsel %vm3352, %v5346, %v4849
        %v5395 = vsel %vm3352, %v5347, %v4851
        %v5396 = vsel %vm3352, %v5348, %v4853
        %v5397 = vsel %vm3352, %v5349, %v4855
        %v5398 = vsel %vm3352, %v5350, %v4857
        %v5399 = vsel %vm3352, %v5351, %v4859
        %v5400 = vsel %vm3352, %v5352, %v4861
        %v5401 = vsel %vm3352, %v5353, %v4863
        %v5402 = vsel %vm3352, %v5354, %v4865
        %v5403 = vsel %vm3352, %v5355, %v4867
        %v5404 = vsel %vm3352, %v5356, %v4869
        %v5405 = vsel %vm3352, %v5357, %v4871
        %v5406 = vsel %vm3352, %v5358, %v4873
        %v5407 = vsel %vm3352, %v5359, %v4875
        %v5408 = vsel %vm3352, %v5360, %v4877
        %v5409 = vsel %vm3352, %v5361, %v4879
        %v5410 = vsel %vm3352, %v5362, %v4881
        %v5411 = vsel %vm3352, %v5363, %v4883
        %v5460 = vrot.slane %v5364, 1
        %v5461 = vrot.slane %v5365, 1
        %v5462 = vsel %vm444, %v5460, %v5461
        %v5463 = vrot.slane %v5366, 1
        %v5464 = vsel %vm444, %v5461, %v5463
        %v5465 = vrot.slane %v5367, 1
        %v5466 = vrot.slane %v5368, 1
        %v5467 = vsel %vm444, %v5465, %v5466
        %v5468 = vrot.slane %v5369, 1
        %v5469 = vsel %vm444, %v5466, %v5468
        %v5470 = vrot.slane %v5370, 1
        %v5471 = vrot.slane %v5371, 1
        %v5472 = vsel %vm444, %v5470, %v5471
        %v5473 = vrot.slane %v5372, 1
        %v5474 = vsel %vm444, %v5471, %v5473
        %v5475 = vrot.slane %v5373, 1
        %v5476 = vrot.slane %v5374, 1
        %v5477 = vsel %vm444, %v5475, %v5476
        %v5478 = vrot.slane %v5375, 1
        %v5479 = vsel %vm444, %v5476, %v5478
        %v5480 = vrot.slane %v5376, 1
        %v5481 = vrot.slane %v5377, 1
        %v5482 = vsel %vm444, %v5480, %v5481
        %v5483 = vrot.slane %v5378, 1
        %v5484 = vsel %vm444, %v5481, %v5483
        %v5485 = vrot.slane %v5379, 1
        %v5486 = vrot.slane %v5380, 1
        %v5487 = vsel %vm444, %v5485, %v5486
        %v5488 = vrot.slane %v5381, 1
        %v5489 = vsel %vm444, %v5486, %v5488
        %v5490 = vrot.slane %v5382, 1
        %v5491 = vrot.slane %v5383, 1
        %v5492 = vsel %vm444, %v5490, %v5491
        %v5493 = vrot.slane %v5384, 1
        %v5494 = vsel %vm444, %v5491, %v5493
        %v5495 = vrot.slane %v5385, 1
        %v5496 = vrot.slane %v5386, 1
        %v5497 = vsel %vm444, %v5495, %v5496
        %v5498 = vrot.slane %v5387, 1
        %v5499 = vsel %vm444, %v5496, %v5498
        %v5500 = vrot.slane %v5388, 1
        %v5501 = vrot.slane %v5389, 1
        %v5502 = vsel %vm444, %v5500, %v5501
        %v5503 = vrot.slane %v5390, 1
        %v5504 = vsel %vm444, %v5501, %v5503
        %v5505 = vrot.slane %v5391, 1
        %v5506 = vrot.slane %v5392, 1
        %v5507 = vsel %vm444, %v5505, %v5506
        %v5508 = vrot.slane %v5393, 1
        %v5509 = vsel %vm444, %v5506, %v5508
        %v5510 = vrot.slane %v5394, 1
        %v5511 = vrot.slane %v5395, 1
        %v5512 = vsel %vm444, %v5510, %v5511
        %v5513 = vrot.slane %v5396, 1
        %v5514 = vsel %vm444, %v5511, %v5513
        %v5515 = vrot.slane %v5397, 1
        %v5516 = vrot.slane %v5398, 1
        %v5517 = vsel %vm444, %v5515, %v5516
        %v5518 = vrot.slane %v5399, 1
        %v5519 = vsel %vm444, %v5516, %v5518
        %v5520 = vrot.slane %v5400, 1
        %v5521 = vrot.slane %v5401, 1
        %v5522 = vsel %vm444, %v5520, %v5521
        %v5523 = vrot.slane %v5402, 1
        %v5524 = vsel %vm444, %v5521, %v5523
        %v5525 = vrot.slane %v5403, 1
        %v5526 = vrot.slane %v5404, 1
        %v5527 = vsel %vm444, %v5525, %v5526
        %v5528 = vrot.slane %v5405, 1
        %v5529 = vsel %vm444, %v5526, %v5528
        %v5530 = vrot.slane %v5406, 1
        %v5531 = vrot.slane %v5407, 1
        %v5532 = vsel %vm444, %v5530, %v5531
        %v5533 = vrot.slane %v5408, 1
        %v5534 = vsel %vm444, %v5531, %v5533
        %v5535 = vrot.slane %v5409, 1
        %v5536 = vrot.slane %v5410, 1
        %v5537 = vsel %vm444, %v5535, %v5536
        %v5538 = vrot.slane %v5411, 1
        %v5539 = vsel %vm444, %v5536, %v5538
        %v5588 = vrot.slane %v3598, 2
        %v5589 = vrot.slane %v3599, 2
        %v5590 = vsel %vm669, %v5588, %v5589
        %v5591 = vrot.slane %v5462, 2
        %v5592 = vrot.slane %v5464, 2
        %v5593 = vsel %vm669, %v5591, %v5592
        %v5594 = vrot.slane %v3600, 2
        %v5595 = vsel %vm669, %v5589, %v5594
        %v5596 = vrot.slane %v5463, 2
        %v5597 = vsel %vm669, %v5592, %v5596
        %v5598 = vrot.slane %v3601, 2
        %v5599 = vrot.slane %v3602, 2
        %v5600 = vsel %vm669, %v5598, %v5599
        %v5601 = vrot.slane %v5467, 2
        %v5602 = vrot.slane %v5469, 2
        %v5603 = vsel %vm669, %v5601, %v5602
        %v5604 = vrot.slane %v3603, 2
        %v5605 = vsel %vm669, %v5599, %v5604
        %v5606 = vrot.slane %v5468, 2
        %v5607 = vsel %vm669, %v5602, %v5606
        %v5608 = vrot.slane %v3604, 2
        %v5609 = vrot.slane %v3605, 2
        %v5610 = vsel %vm669, %v5608, %v5609
        %v5611 = vrot.slane %v5472, 2
        %v5612 = vrot.slane %v5474, 2
        %v5613 = vsel %vm669, %v5611, %v5612
        %v5614 = vrot.slane %v3606, 2
        %v5615 = vsel %vm669, %v5609, %v5614
        %v5616 = vrot.slane %v5473, 2
        %v5617 = vsel %vm669, %v5612, %v5616
        %v5618 = vrot.slane %v3607, 2
        %v5619 = vrot.slane %v3608, 2
        %v5620 = vsel %vm669, %v5618, %v5619
        %v5621 = vrot.slane %v5477, 2
        %v5622 = vrot.slane %v5479, 2
        %v5623 = vsel %vm669, %v5621, %v5622
        %v5624 = vrot.slane %v3609, 2
        %v5625 = vsel %vm669, %v5619, %v5624
        %v5626 = vrot.slane %v5478, 2
        %v5627 = vsel %vm669, %v5622, %v5626
        %v5628 = vrot.slane %v3610, 2
        %v5629 = vrot.slane %v3611, 2
        %v5630 = vsel %vm669, %v5628, %v5629
        %v5631 = vrot.slane %v5482, 2
        %v5632 = vrot.slane %v5484, 2
        %v5633 = vsel %vm669, %v5631, %v5632
        %v5634 = vrot.slane %v3612, 2
        %v5635 = vsel %vm669, %v5629, %v5634
        %v5636 = vrot.slane %v5483, 2
        %v5637 = vsel %vm669, %v5632, %v5636
        %v5638 = vrot.slane %v3613, 2
        %v5639 = vrot.slane %v3614, 2
        %v5640 = vsel %vm669, %v5638, %v5639
        %v5641 = vrot.slane %v5487, 2
        %v5642 = vrot.slane %v5489, 2
        %v5643 = vsel %vm669, %v5641, %v5642
        %v5644 = vrot.slane %v3615, 2
        %v5645 = vsel %vm669, %v5639, %v5644
        %v5646 = vrot.slane %v5488, 2
        %v5647 = vsel %vm669, %v5642, %v5646
        %v5648 = vrot.slane %v3616, 2
        %v5649 = vrot.slane %v3617, 2
        %v5650 = vsel %vm669, %v5648, %v5649
        %v5651 = vrot.slane %v5492, 2
        %v5652 = vrot.slane %v5494, 2
        %v5653 = vsel %vm669, %v5651, %v5652
        %v5654 = vrot.slane %v3618, 2
        %v5655 = vsel %vm669, %v5649, %v5654
        %v5656 = vrot.slane %v5493, 2
        %v5657 = vsel %vm669, %v5652, %v5656
        %v5658 = vrot.slane %v3619, 2
        %v5659 = vrot.slane %v3620, 2
        %v5660 = vsel %vm669, %v5658, %v5659
        %v5661 = vrot.slane %v5497, 2
        %v5662 = vrot.slane %v5499, 2
        %v5663 = vsel %vm669, %v5661, %v5662
        %v5664 = vrot.slane %v3621, 2
        %v5665 = vsel %vm669, %v5659, %v5664
        %v5666 = vrot.slane %v5498, 2
        %v5667 = vsel %vm669, %v5662, %v5666
        %v5668 = vrot.slane %v3622, 2
        %v5669 = vrot.slane %v3623, 2
        %v5670 = vsel %vm669, %v5668, %v5669
        %v5671 = vrot.slane %v5502, 2
        %v5672 = vrot.slane %v5504, 2
        %v5673 = vsel %vm669, %v5671, %v5672
        %v5674 = vrot.slane %v3624, 2
        %v5675 = vsel %vm669, %v5669, %v5674
        %v5676 = vrot.slane %v5503, 2
        %v5677 = vsel %vm669, %v5672, %v5676
        %v5678 = vrot.slane %v3625, 2
        %v5679 = vrot.slane %v3626, 2
        %v5680 = vsel %vm669, %v5678, %v5679
        %v5681 = vrot.slane %v5507, 2
        %v5682 = vrot.slane %v5509, 2
        %v5683 = vsel %vm669, %v5681, %v5682
        %v5684 = vrot.slane %v3627, 2
        %v5685 = vsel %vm669, %v5679, %v5684
        %v5686 = vrot.slane %v5508, 2
        %v5687 = vsel %vm669, %v5682, %v5686
        %v5688 = vrot.slane %v3628, 2
        %v5689 = vrot.slane %v3629, 2
        %v5690 = vsel %vm669, %v5688, %v5689
        %v5691 = vrot.slane %v5512, 2
        %v5692 = vrot.slane %v5514, 2
        %v5693 = vsel %vm669, %v5691, %v5692
        %v5694 = vrot.slane %v3630, 2
        %v5695 = vsel %vm669, %v5689, %v5694
        %v5696 = vrot.slane %v5513, 2
        %v5697 = vsel %vm669, %v5692, %v5696
        %v5698 = vrot.slane %v3631, 2
        %v5699 = vrot.slane %v3632, 2
        %v5700 = vsel %vm669, %v5698, %v5699
        %v5701 = vrot.slane %v5517, 2
        %v5702 = vrot.slane %v5519, 2
        %v5703 = vsel %vm669, %v5701, %v5702
        %v5704 = vrot.slane %v3633, 2
        %v5705 = vsel %vm669, %v5699, %v5704
        %v5706 = vrot.slane %v5518, 2
        %v5707 = vsel %vm669, %v5702, %v5706
        %v5708 = vrot.slane %v3634, 2
        %v5709 = vrot.slane %v3635, 2
        %v5710 = vsel %vm669, %v5708, %v5709
        %v5711 = vrot.slane %v5522, 2
        %v5712 = vrot.slane %v5524, 2
        %v5713 = vsel %vm669, %v5711, %v5712
        %v5714 = vrot.slane %v3636, 2
        %v5715 = vsel %vm669, %v5709, %v5714
        %v5716 = vrot.slane %v5523, 2
        %v5717 = vsel %vm669, %v5712, %v5716
        %v5718 = vrot.slane %v3637, 2
        %v5719 = vrot.slane %v3638, 2
        %v5720 = vsel %vm669, %v5718, %v5719
        %v5721 = vrot.slane %v5527, 2
        %v5722 = vrot.slane %v5529, 2
        %v5723 = vsel %vm669, %v5721, %v5722
        %v5724 = vrot.slane %v3639, 2
        %v5725 = vsel %vm669, %v5719, %v5724
        %v5726 = vrot.slane %v5528, 2
        %v5727 = vsel %vm669, %v5722, %v5726
        %v5728 = vrot.slane %v3640, 2
        %v5729 = vrot.slane %v3641, 2
        %v5730 = vsel %vm669, %v5728, %v5729
        %v5731 = vrot.slane %v5532, 2
        %v5732 = vrot.slane %v5534, 2
        %v5733 = vsel %vm669, %v5731, %v5732
        %v5734 = vrot.slane %v3642, 2
        %v5735 = vsel %vm669, %v5729, %v5734
        %v5736 = vrot.slane %v5533, 2
        %v5737 = vsel %vm669, %v5732, %v5736
        %v5738 = vrot.slane %v3643, 2
        %v5739 = vrot.slane %v3644, 2
        %v5740 = vsel %vm669, %v5738, %v5739
        %v5741 = vrot.slane %v5537, 2
        %v5742 = vrot.slane %v5539, 2
        %v5743 = vsel %vm669, %v5741, %v5742
        %v5744 = vrot.slane %v3645, 2
        %v5745 = vsel %vm669, %v5739, %v5744
        %v5746 = vrot.slane %v5538, 2
        %v5747 = vsel %vm669, %v5742, %v5746
        %v5780 = vld [vmem:[%s1] sm:$0xff]
        %v5781 = vld [vmem:[%s1 + $0x8] sm:$0xff]
        %v5782 = vld [vmem:[%s1 + $0x10] sm:$0xff]
        %v5783 = vld [vmem:[%s1 + $0x18] sm:$0xff]
        %v5784 = vld [vmem:[%s1 + $0x20] sm:$0xff]
        %v5785 = vld [vmem:[%s1 + $0x28] sm:$0xff]
        %v5786 = vld [vmem:[%s1 + $0x30] sm:$0xff]
        %v5787 = vld [vmem:[%s1 + $0x38] sm:$0xff]
        %v5788 = vld [vmem:[%s1 + $0x40] sm:$0xff]
        %v5789 = vld [vmem:[%s1 + $0x48] sm:$0xff]
        %v5790 = vld [vmem:[%s1 + $0x50] sm:$0xff]
        %v5791 = vld [vmem:[%s1 + $0x58] sm:$0xff]
        %v5792 = vld [vmem:[%s1 + $0x60] sm:$0xff]
        %v5793 = vld [vmem:[%s1 + $0x68] sm:$0xff]
        %v5794 = vld [vmem:[%s1 + $0x70] sm:$0xff]
        %v5795 = vld [vmem:[%s1 + $0x78] sm:$0xff]
        %v5796 = vld [vmem:[%s1 + $0x80] sm:$0xff]
        %v5797 = vld [vmem:[%s1 + $0x88] sm:$0xff]
        %v5798 = vld [vmem:[%s1 + $0x90] sm:$0xff]
        %v5799 = vld [vmem:[%s1 + $0x98] sm:$0xff]
        %v5800 = vld [vmem:[%s1 + $0xa0] sm:$0xff]
        %v5801 = vld [vmem:[%s1 + $0xa8] sm:$0xff]
        %v5802 = vld [vmem:[%s1 + $0xb0] sm:$0xff]
        %v5803 = vld [vmem:[%s1 + $0xb8] sm:$0xff]
        %v5804 = vld [vmem:[%s1 + $0xc0] sm:$0xff]
        %v5805 = vld [vmem:[%s1 + $0xc8] sm:$0xff]
        %v5806 = vld [vmem:[%s1 + $0xd0] sm:$0xff]
        %v5807 = vsel %vm3401, %v5593, 0
        %v5809 = vsel %vm3401, %v5597, 0
        %v5811 = vsel %vm3401, %v5603, 0
        %v5813 = vsel %vm3401, %v5607, 0
        %v5815 = vsel %vm3401, %v5613, 0
        %v5817 = vsel %vm3401, %v5617, 0
        %v5819 = vsel %vm3401, %v5623, 0
        %v5821 = vsel %vm3401, %v5627, 0
        %v5823 = vsel %vm3401, %v5633, 0
        %v5825 = vsel %vm3401, %v5637, 0
        %v5827 = vsel %vm3401, %v5643, 0
        %v5829 = vsel %vm3401, %v5647, 0
        %v5831 = vsel %vm3401, %v5653, 0
        %v5833 = vsel %vm3401, %v5657, 0
        %v5835 = vsel %vm3401, %v5663, 0
        %v5837 = vsel %vm3401, %v5667, 0
        %v5839 = vsel %vm3401, %v5673, 0
        %v5841 = vsel %vm3401, %v5677, 0
        %v5843 = vsel %vm3401, %v5683, 0
        %v5845 = vsel %vm3401, %v5687, 0
        %v5847 = vsel %vm3401, %v5693, 0
        %v5849 = vsel %vm3401, %v5697, 0
        %v5851 = vsel %vm3401, %v5703, 0
        %v5853 = vsel %vm3401, %v5707, 0
        %v5855 = vsel %vm3401, %v5713, 0
        %v5857 = vsel %vm3401, %v5717, 0
        %v5859 = vsel %vm3401, %v5723, 0
        %v5861 = vsel %vm3401, %v5727, 0
        %v5863 = vsel %vm3401, %v5733, 0
        %v5865 = vsel %vm3401, %v5737, 0
        %v5867 = vsel %vm3401, %v5743, 0
        %v5869 = vsel %vm3401, %v5747, 0
        %5871 = vmatprep.subr.mxu0 0.0
        %5872 = vmatpush1.msra.mxu0 %v5780
        %5873 = vmatprep.subr.mxu0 0.0
        %5874 = vmatpush1.msra.mxu0 %v5781
        %5875 = vmatprep.subr.mxu0 0.0
        %5876 = vmatpush1.msra.mxu0 %v5782
        %5877 = vmatprep.subr.mxu0 0.0
        %5878 = vmatpush1.msra.mxu0 %v5783
        %5879 = vmatprep.subr.mxu0 0.0
        %5880 = vmatpush1.msra.mxu0 %v5784
        %5881 = vmatprep.subr.mxu0 0.0
        %5882 = vmatpush1.msra.mxu0 %v5785
        %5883 = vmatprep.subr.mxu0 0.0
        %5884 = vmatpush1.msra.mxu0 %v5786
        %5885 = vmatprep.subr.mxu0 0.0
        %5886 = vmatpush1.msra.mxu0 %v5787
        %5887 = vmatprep.subr.mxu0 0.0
        %5888 = vmatpush1.msra.mxu0 %v5788
        %5889 = vmatprep.subr.mxu0 0.0
        %5890 = vmatpush1.msra.mxu0 %v5789
        %5891 = vmatprep.subr.mxu0 0.0
        %5892 = vmatpush1.msra.mxu0 %v5790
        %5893 = vmatprep.subr.mxu0 0.0
        %5894 = vmatpush1.msra.mxu0 %v5791
        %5895 = vmatprep.subr.mxu0 0.0
        %5896 = vmatpush1.msra.mxu0 %v5792
        %5897 = vmatprep.subr.mxu0 0.0
        %5898 = vmatpush1.msra.mxu0 %v5793
        %5899 = vmatprep.subr.mxu0 0.0
        %5900 = vmatpush1.msra.mxu0 %v5794
        %5901 = vmatprep.subr.mxu0 0.0
        %5902 = vmatpush1.msra.mxu0 %v5795
        %5903 = vmatprep.subr.mxu0 0.0
        %5904 = vmatpush1.msra.mxu0 %v5796
        %5905 = vmatprep.subr.mxu0 0.0
        %5906 = vmatpush1.msra.mxu0 %v5797
        %5907 = vmatprep.subr.mxu0 0.0
        %5908 = vmatpush1.msra.mxu0 %v5798
        %5909 = vmatprep.subr.mxu0 0.0
        %5910 = vmatpush1.msra.mxu0 %v5799
        %5911 = vmatprep.subr.mxu0 0.0
        %5912 = vmatpush1.msra.mxu0 %v5800
        %5913 = vmatprep.subr.mxu0 0.0
        %5914 = vmatpush1.msra.mxu0 %v5801
        %5915 = vmatprep.subr.mxu0 0.0
        %5916 = vmatpush1.msra.mxu0 %v5802
        %5917 = vmatprep.subr.mxu0 0.0
        %5918 = vmatpush1.msra.mxu0 %v5803
        %5919 = vmatprep.subr.mxu0 0.0
        %5920 = vmatpush1.msra.mxu0 %v5804
        %5921 = vmatprep.subr.mxu0 0.0
        %5922 = vmatpush1.msra.mxu0 %v5805
        %5923 = vmatprep.subr.mxu0 0.0
        %5924 = vmatpush1.msra.mxu0 %v5806
        %5925 = vmatprep.subr.mxu0 0.0
        %5926 = vmatpush1.msra.mxu0 0.0
        %5927 = vmatprep.subr.mxu0 0.0
        %5928 = vmatpush1.msra.mxu0 0.0
        %5929 = vmatprep.subr.mxu0 0.0
        %5930 = vmatpush1.msra.mxu0 0.0
        %5931 = vmatprep.subr.mxu0 0.0
        %5932 = vmatpush1.msra.mxu0 0.0
        %5933 = vmatprep.subr.mxu0 0.0
        %5934 = vmatpush1.msra.mxu0 0.0
        %5935 = vmatprep.mubr.f32.mxu0 %v5807
        %5936 = vmatmul.mubr.f32.gmra.mrb[0].mxu0 %v5590
        %v5937 = vpop.f32.mrb[0].mxu0
        %v5938 = vadd.f32 0.0, %v5937
        %v5939 = vpop.f32.mrb[0].mxu0
        %5940 = vmatprep.mubr.f32.mxu0 %v5809
        %5941 = vmatmul.mubr.f32.gmra.mrb[0].mxu0 %v5595
        %v5942 = vpop.f32.mrb[0].mxu0
        %v5943 = vadd.f32 0.0, %v5942
        %v5944 = vpop.f32.mrb[0].mxu0
        %5945 = vmatprep.mubr.f32.mxu0 %v5811
        %5946 = vmatmul.mubr.f32.gmra.mrb[0].mxu0 %v5600
        %v5947 = vpop.f32.mrb[0].mxu0
        %v5948 = vadd.f32 0.0, %v5947
        %v5949 = vpop.f32.mrb[0].mxu0
        %5950 = vmatprep.mubr.f32.mxu0 %v5813
        %5951 = vmatmul.mubr.f32.gmra.mrb[0].mxu0 %v5605
        %v5952 = vpop.f32.mrb[0].mxu0
        %v5953 = vadd.f32 0.0, %v5952
        %v5954 = vpop.f32.mrb[0].mxu0
        %5955 = vmatprep.mubr.f32.mxu0 %v5815
        %5956 = vmatmul.mubr.f32.gmra.mrb[0].mxu0 %v5610
        %v5957 = vpop.f32.mrb[0].mxu0
        %v5958 = vadd.f32 0.0, %v5957
        %v5959 = vpop.f32.mrb[0].mxu0
        %5960 = vmatprep.mubr.f32.mxu0 %v5817
        %5961 = vmatmul.mubr.f32.gmra.mrb[0].mxu0 %v5615
        %v5962 = vpop.f32.mrb[0].mxu0
        %v5963 = vadd.f32 0.0, %v5962
        %v5964 = vpop.f32.mrb[0].mxu0
        %5965 = vmatprep.mubr.f32.mxu0 %v5819
        %5966 = vmatmul.mubr.f32.gmra.mrb[0].mxu0 %v5620
        %v5967 = vpop.f32.mrb[0].mxu0
        %v5968 = vadd.f32 0.0, %v5967
        %v5969 = vpop.f32.mrb[0].mxu0
        %5970 = vmatprep.mubr.f32.mxu0 %v5821
        %5971 = vmatmul.mubr.f32.gmra.mrb[0].mxu0 %v5625
        %v5972 = vpop.f32.mrb[0].mxu0
        %v5973 = vadd.f32 0.0, %v5972
        %v5974 = vpop.f32.mrb[0].mxu0
        %5975 = vmatprep.mubr.f32.mxu0 %v5823
        %5976 = vmatmul.mubr.f32.gmra.mrb[0].mxu0 %v5630
        %v5977 = vpop.f32.mrb[0].mxu0
        %v5978 = vadd.f32 0.0, %v5977
        %v5979 = vpop.f32.mrb[0].mxu0
        %5980 = vmatprep.mubr.f32.mxu0 %v5825
        %5981 = vmatmul.mubr.f32.gmra.mrb[0].mxu0 %v5635
        %v5982 = vpop.f32.mrb[0].mxu0
        %v5983 = vadd.f32 0.0, %v5982
        %v5984 = vpop.f32.mrb[0].mxu0
        %5985 = vmatprep.mubr.f32.mxu0 %v5827
        %5986 = vmatmul.mubr.f32.gmra.mrb[0].mxu0 %v5640
        %v5987 = vpop.f32.mrb[0].mxu0
        %v5988 = vadd.f32 0.0, %v5987
        %v5989 = vpop.f32.mrb[0].mxu0
        %5990 = vmatprep.mubr.f32.mxu0 %v5829
        %5991 = vmatmul.mubr.f32.gmra.mrb[0].mxu0 %v5645
        %v5992 = vpop.f32.mrb[0].mxu0
        %v5993 = vadd.f32 0.0, %v5992
        %v5994 = vpop.f32.mrb[0].mxu0
        %5995 = vmatprep.mubr.f32.mxu0 %v5831
        %5996 = vmatmul.mubr.f32.gmra.mrb[0].mxu0 %v5650
        %v5997 = vpop.f32.mrb[0].mxu0
        %v5998 = vadd.f32 0.0, %v5997
        %v5999 = vpop.f32.mrb[0].mxu0
        %6000 = vmatprep.mubr.f32.mxu0 %v5833
        %6001 = vmatmul.mubr.f32.gmra.mrb[0].mxu0 %v5655
        %v6002 = vpop.f32.mrb[0].mxu0
        %v6003 = vadd.f32 0.0, %v6002
        %v6004 = vpop.f32.mrb[0].mxu0
        %6005 = vmatprep.mubr.f32.mxu0 %v5835
        %6006 = vmatmul.mubr.f32.gmra.mrb[0].mxu0 %v5660
        %v6007 = vpop.f32.mrb[0].mxu0
        %v6008 = vadd.f32 0.0, %v6007
        %v6009 = vpop.f32.mrb[0].mxu0
        %6010 = vmatprep.mubr.f32.mxu0 %v5837
        %6011 = vmatmul.mubr.f32.gmra.mrb[0].mxu0 %v5665
        %v6012 = vpop.f32.mrb[0].mxu0
        %v6013 = vadd.f32 0.0, %v6012
        %v6014 = vpop.f32.mrb[0].mxu0
        %6015 = vmatprep.mubr.f32.mxu0 %v5839
        %6016 = vmatmul.mubr.f32.gmra.mrb[0].mxu0 %v5670
        %v6017 = vpop.f32.mrb[0].mxu0
        %v6018 = vadd.f32 0.0, %v6017
        %v6019 = vpop.f32.mrb[0].mxu0
        %6020 = vmatprep.mubr.f32.mxu0 %v5841
        %6021 = vmatmul.mubr.f32.gmra.mrb[0].mxu0 %v5675
        %v6022 = vpop.f32.mrb[0].mxu0
        %v6023 = vadd.f32 0.0, %v6022
        %v6024 = vpop.f32.mrb[0].mxu0
        %6025 = vmatprep.mubr.f32.mxu0 %v5843
        %6026 = vmatmul.mubr.f32.gmra.mrb[0].mxu0 %v5680
        %v6027 = vpop.f32.mrb[0].mxu0
        %v6028 = vadd.f32 0.0, %v6027
        %v6029 = vpop.f32.mrb[0].mxu0
        %6030 = vmatprep.mubr.f32.mxu0 %v5845
        %6031 = vmatmul.mubr.f32.gmra.mrb[0].mxu0 %v5685
        %v6032 = vpop.f32.mrb[0].mxu0
        %v6033 = vadd.f32 0.0, %v6032
        %v6034 = vpop.f32.mrb[0].mxu0
        %6035 = vmatprep.mubr.f32.mxu0 %v5847
        %6036 = vmatmul.mubr.f32.gmra.mrb[0].mxu0 %v5690
        %v6037 = vpop.f32.mrb[0].mxu0
        %v6038 = vadd.f32 0.0, %v6037
        %v6039 = vpop.f32.mrb[0].mxu0
        %6040 = vmatprep.mubr.f32.mxu0 %v5849
        %6041 = vmatmul.mubr.f32.gmra.mrb[0].mxu0 %v5695
        %v6042 = vpop.f32.mrb[0].mxu0
        %v6043 = vadd.f32 0.0, %v6042
        %v6044 = vpop.f32.mrb[0].mxu0
        %6045 = vmatprep.mubr.f32.mxu0 %v5851
        %6046 = vmatmul.mubr.f32.gmra.mrb[0].mxu0 %v5700
        %v6047 = vpop.f32.mrb[0].mxu0
        %v6048 = vadd.f32 0.0, %v6047
        %v6049 = vpop.f32.mrb[0].mxu0
        %6050 = vmatprep.mubr.f32.mxu0 %v5853
        %6051 = vmatmul.mubr.f32.gmra.mrb[0].mxu0 %v5705
        %v6052 = vpop.f32.mrb[0].mxu0
        %v6053 = vadd.f32 0.0, %v6052
        %v6054 = vpop.f32.mrb[0].mxu0
        %6055 = vmatprep.mubr.f32.mxu0 %v5855
        %6056 = vmatmul.mubr.f32.gmra.mrb[0].mxu0 %v5710
        %v6057 = vpop.f32.mrb[0].mxu0
        %v6058 = vadd.f32 0.0, %v6057
        %v6059 = vpop.f32.mrb[0].mxu0
        %6060 = vmatprep.mubr.f32.mxu0 %v5857
        %6061 = vmatmul.mubr.f32.gmra.mrb[0].mxu0 %v5715
        %v6062 = vpop.f32.mrb[0].mxu0
        %v6063 = vadd.f32 0.0, %v6062
        %v6064 = vpop.f32.mrb[0].mxu0
        %6065 = vmatprep.mubr.f32.mxu0 %v5859
        %6066 = vmatmul.mubr.f32.gmra.mrb[0].mxu0 %v5720
        %v6067 = vpop.f32.mrb[0].mxu0
        %v6068 = vadd.f32 0.0, %v6067
        %v6069 = vpop.f32.mrb[0].mxu0
        %6070 = vmatprep.mubr.f32.mxu0 %v5861
        %6071 = vmatmul.mubr.f32.gmra.mrb[0].mxu0 %v5725
        %v6072 = vpop.f32.mrb[0].mxu0
        %v6073 = vadd.f32 0.0, %v6072
        %v6074 = vpop.f32.mrb[0].mxu0
        %6075 = vmatprep.mubr.f32.mxu0 %v5863
        %6076 = vmatmul.mubr.f32.gmra.mrb[0].mxu0 %v5730
        %v6077 = vpop.f32.mrb[0].mxu0
        %v6078 = vadd.f32 0.0, %v6077
        %v6079 = vpop.f32.mrb[0].mxu0
        %6080 = vmatprep.mubr.f32.mxu0 %v5865
        %6081 = vmatmul.mubr.f32.gmra.mrb[0].mxu0 %v5735
        %v6082 = vpop.f32.mrb[0].mxu0
        %v6083 = vadd.f32 0.0, %v6082
        %v6084 = vpop.f32.mrb[0].mxu0
        %6085 = vmatprep.mubr.f32.mxu0 %v5867
        %6086 = vmatmul.mubr.f32.gmra.mrb[0].mxu0 %v5740
        %v6087 = vpop.f32.mrb[0].mxu0
        %v6088 = vadd.f32 0.0, %v6087
        %v6089 = vpop.f32.mrb[0].mxu0
        %6090 = vmatprep.mubr.f32.mxu0 %v5869
        %6091 = vmatmul.mubr.f32.gmra.mrb[0].mxu0 %v5745
        %v6092 = vpop.f32.mrb[0].mxu0
        %v6093 = vadd.f32 0.0, %v6092
        %v6094 = vpop.f32.mrb[0].mxu0
        %6095 = vdwg.mxu0
        %6096 = vrot.lane.b32.xlu0 %v331, 8
        %v6097 = vpop.permute.xlu0 %6096
        %6098 = vrot.lane.b32.xlu0 %v333, 8
        %v6099 = vpop.permute.xlu0 %6098
        %6100 = vrot.lane.b32.xlu0 %v336, 8
        %v6101 = vpop.permute.xlu0 %6100
        %6102 = vrot.lane.b32.xlu0 %v338, 8
        %v6103 = vpop.permute.xlu0 %6102
        %6104 = vrot.lane.b32.xlu0 %v341, 8
        %v6105 = vpop.permute.xlu0 %6104
        %6106 = vrot.lane.b32.xlu0 %v343, 8
        %v6107 = vpop.permute.xlu0 %6106
        %6108 = vrot.lane.b32.xlu0 %v346, 8
        %v6109 = vpop.permute.xlu0 %6108
        %6110 = vrot.lane.b32.xlu0 %v348, 8
        %v6111 = vpop.permute.xlu0 %6110
        %6112 = vrot.lane.b32.xlu0 %v351, 8
        %v6113 = vpop.permute.xlu0 %6112
        %6114 = vrot.lane.b32.xlu0 %v353, 8
        %v6115 = vpop.permute.xlu0 %6114
        %6116 = vrot.lane.b32.xlu0 %v356, 8
        %v6117 = vpop.permute.xlu0 %6116
        %6118 = vrot.lane.b32.xlu0 %v358, 8
        %v6119 = vpop.permute.xlu0 %6118
        %6120 = vrot.lane.b32.xlu0 %v361, 8
        %v6121 = vpop.permute.xlu0 %6120
        %6122 = vrot.lane.b32.xlu0 %v363, 8
        %v6123 = vpop.permute.xlu0 %6122
        %6124 = vrot.lane.b32.xlu0 %v366, 8
        %v6125 = vpop.permute.xlu0 %6124
        %6126 = vrot.lane.b32.xlu0 %v368, 8
        %v6127 = vpop.permute.xlu0 %6126
        %6128 = vrot.lane.b32.xlu0 %v371, 8
        %v6129 = vpop.permute.xlu0 %6128
        %6130 = vrot.lane.b32.xlu0 %v373, 8
        %v6131 = vpop.permute.xlu0 %6130
        %6132 = vrot.lane.b32.xlu0 %v376, 8
        %v6133 = vpop.permute.xlu0 %6132
        %6134 = vrot.lane.b32.xlu0 %v378, 8
        %v6135 = vpop.permute.xlu0 %6134
        %6136 = vrot.lane.b32.xlu0 %v381, 8
        %v6137 = vpop.permute.xlu0 %6136
        %6138 = vrot.lane.b32.xlu0 %v383, 8
        %v6139 = vpop.permute.xlu0 %6138
        %6140 = vrot.lane.b32.xlu0 %v386, 8
        %v6141 = vpop.permute.xlu0 %6140
        %6142 = vrot.lane.b32.xlu0 %v388, 8
        %v6143 = vpop.permute.xlu0 %6142
        %6144 = vrot.lane.b32.xlu0 %v391, 8
        %v6145 = vpop.permute.xlu0 %6144
        %6146 = vrot.lane.b32.xlu0 %v393, 8
        %v6147 = vpop.permute.xlu0 %6146
        %6148 = vrot.lane.b32.xlu0 %v396, 8
        %v6149 = vpop.permute.xlu0 %6148
        %6150 = vrot.lane.b32.xlu0 %v398, 8
        %v6151 = vpop.permute.xlu0 %6150
        %6152 = vrot.lane.b32.xlu0 %v401, 8
        %v6153 = vpop.permute.xlu0 %6152
        %6154 = vrot.lane.b32.xlu0 %v403, 8
        %v6155 = vpop.permute.xlu0 %6154
        %6156 = vrot.lane.b32.xlu0 %v406, 8
        %v6157 = vpop.permute.xlu0 %6156
        %6158 = vrot.lane.b32.xlu0 %v408, 8
        %v6159 = vpop.permute.xlu0 %6158
        %6192 = vrot.lane.b32.xlu0 %v331, 16
        %v6193 = vpop.permute.xlu0 %6192
        %6194 = vrot.lane.b32.xlu0 %v333, 16
        %v6195 = vpop.permute.xlu0 %6194
        %6196 = vrot.lane.b32.xlu0 %v336, 16
        %v6197 = vpop.permute.xlu0 %6196
        %6198 = vrot.lane.b32.xlu0 %v338, 16
        %v6199 = vpop.permute.xlu0 %6198
        %6200 = vrot.lane.b32.xlu0 %v341, 16
        %v6201 = vpop.permute.xlu0 %6200
        %6202 = vrot.lane.b32.xlu0 %v343, 16
        %v6203 = vpop.permute.xlu0 %6202
        %6204 = vrot.lane.b32.xlu0 %v346, 16
        %v6205 = vpop.permute.xlu0 %6204
        %6206 = vrot.lane.b32.xlu0 %v348, 16
        %v6207 = vpop.permute.xlu0 %6206
        %6208 = vrot.lane.b32.xlu0 %v351, 16
        %v6209 = vpop.permute.xlu0 %6208
        %6210 = vrot.lane.b32.xlu0 %v353, 16
        %v6211 = vpop.permute.xlu0 %6210
        %6212 = vrot.lane.b32.xlu0 %v356, 16
        %v6213 = vpop.permute.xlu0 %6212
        %6214 = vrot.lane.b32.xlu0 %v358, 16
        %v6215 = vpop.permute.xlu0 %6214
        %6216 = vrot.lane.b32.xlu0 %v361, 16
        %v6217 = vpop.permute.xlu0 %6216
        %6218 = vrot.lane.b32.xlu0 %v363, 16
        %v6219 = vpop.permute.xlu0 %6218
        %6220 = vrot.lane.b32.xlu0 %v366, 16
        %v6221 = vpop.permute.xlu0 %6220
        %6222 = vrot.lane.b32.xlu0 %v368, 16
        %v6223 = vpop.permute.xlu0 %6222
        %6224 = vrot.lane.b32.xlu0 %v371, 16
        %v6225 = vpop.permute.xlu0 %6224
        %6226 = vrot.lane.b32.xlu0 %v373, 16
        %v6227 = vpop.permute.xlu0 %6226
        %6228 = vrot.lane.b32.xlu0 %v376, 16
        %v6229 = vpop.permute.xlu0 %6228
        %6230 = vrot.lane.b32.xlu0 %v378, 16
        %v6231 = vpop.permute.xlu0 %6230
        %6232 = vrot.lane.b32.xlu0 %v381, 16
        %v6233 = vpop.permute.xlu0 %6232
        %6234 = vrot.lane.b32.xlu0 %v383, 16
        %v6235 = vpop.permute.xlu0 %6234
        %6236 = vrot.lane.b32.xlu0 %v386, 16
        %v6237 = vpop.permute.xlu0 %6236
        %6238 = vrot.lane.b32.xlu0 %v388, 16
        %v6239 = vpop.permute.xlu0 %6238
        %6240 = vrot.lane.b32.xlu0 %v391, 16
        %v6241 = vpop.permute.xlu0 %6240
        %6242 = vrot.lane.b32.xlu0 %v393, 16
        %v6243 = vpop.permute.xlu0 %6242
        %6244 = vrot.lane.b32.xlu0 %v396, 16
        %v6245 = vpop.permute.xlu0 %6244
        %6246 = vrot.lane.b32.xlu0 %v398, 16
        %v6247 = vpop.permute.xlu0 %6246
        %6248 = vrot.lane.b32.xlu0 %v401, 16
        %v6249 = vpop.permute.xlu0 %6248
        %6250 = vrot.lane.b32.xlu0 %v403, 16
        %v6251 = vpop.permute.xlu0 %6250
        %6252 = vrot.lane.b32.xlu0 %v406, 16
        %v6253 = vpop.permute.xlu0 %6252
        %6254 = vrot.lane.b32.xlu0 %v408, 16
        %v6255 = vpop.permute.xlu0 %6254
        %v6288 = vsel %vm2911, %v331, %v6097
        %v6289 = vsel %vm2911, %v333, %v6099
        %v6290 = vsel %vm2911, %v336, %v6101
        %v6291 = vsel %vm2911, %v338, %v6103
        %v6292 = vsel %vm2911, %v341, %v6105
        %v6293 = vsel %vm2911, %v343, %v6107
        %v6294 = vsel %vm2911, %v346, %v6109
        %v6295 = vsel %vm2911, %v348, %v6111
        %v6296 = vsel %vm2911, %v351, %v6113
        %v6297 = vsel %vm2911, %v353, %v6115
        %v6298 = vsel %vm2911, %v356, %v6117
        %v6299 = vsel %vm2911, %v358, %v6119
        %v6300 = vsel %vm2911, %v361, %v6121
        %v6301 = vsel %vm2911, %v363, %v6123
        %v6302 = vsel %vm2911, %v366, %v6125
        %v6303 = vsel %vm2911, %v368, %v6127
        %v6304 = vsel %vm2911, %v371, %v6129
        %v6305 = vsel %vm2911, %v373, %v6131
        %v6306 = vsel %vm2911, %v376, %v6133
        %v6307 = vsel %vm2911, %v378, %v6135
        %v6308 = vsel %vm2911, %v381, %v6137
        %v6309 = vsel %vm2911, %v383, %v6139
        %v6310 = vsel %vm2911, %v386, %v6141
        %v6311 = vsel %vm2911, %v388, %v6143
        %v6312 = vsel %vm2911, %v391, %v6145
        %v6313 = vsel %vm2911, %v393, %v6147
        %v6314 = vsel %vm2911, %v396, %v6149
        %v6315 = vsel %vm2911, %v398, %v6151
        %v6316 = vsel %vm2911, %v401, %v6153
        %v6317 = vsel %vm2911, %v403, %v6155
        %v6318 = vsel %vm2911, %v406, %v6157
        %v6319 = vsel %vm2911, %v408, %v6159
        %v6320 = vsel %vm2960, %v6288, %v6193
        %v6321 = vsel %vm2960, %v6289, %v6195
        %v6322 = vsel %vm2960, %v6290, %v6197
        %v6323 = vsel %vm2960, %v6291, %v6199
        %v6324 = vsel %vm2960, %v6292, %v6201
        %v6325 = vsel %vm2960, %v6293, %v6203
        %v6326 = vsel %vm2960, %v6294, %v6205
        %v6327 = vsel %vm2960, %v6295, %v6207
        %v6328 = vsel %vm2960, %v6296, %v6209
        %v6329 = vsel %vm2960, %v6297, %v6211
        %v6330 = vsel %vm2960, %v6298, %v6213
        %v6331 = vsel %vm2960, %v6299, %v6215
        %v6332 = vsel %vm2960, %v6300, %v6217
        %v6333 = vsel %vm2960, %v6301, %v6219
        %v6334 = vsel %vm2960, %v6302, %v6221
        %v6335 = vsel %vm2960, %v6303, %v6223
        %v6336 = vsel %vm2960, %v6304, %v6225
        %v6337 = vsel %vm2960, %v6305, %v6227
        %v6338 = vsel %vm2960, %v6306, %v6229
        %v6339 = vsel %vm2960, %v6307, %v6231
        %v6340 = vsel %vm2960, %v6308, %v6233
        %v6341 = vsel %vm2960, %v6309, %v6235
        %v6342 = vsel %vm2960, %v6310, %v6237
        %v6343 = vsel %vm2960, %v6311, %v6239
        %v6344 = vsel %vm2960, %v6312, %v6241
        %v6345 = vsel %vm2960, %v6313, %v6243
        %v6346 = vsel %vm2960, %v6314, %v6245
        %v6347 = vsel %vm2960, %v6315, %v6247
        %v6348 = vsel %vm2960, %v6316, %v6249
        %v6349 = vsel %vm2960, %v6317, %v6251
        %v6350 = vsel %vm2960, %v6318, %v6253
        %v6351 = vsel %vm2960, %v6319, %v6255
        %v6352 = vmul.f32 %v6320, %v5938
        %v6353 = vmul.f32 %v6321, %v5943
        %v6354 = vmul.f32 %v6322, %v5948
        %v6355 = vmul.f32 %v6323, %v5953
        %v6356 = vmul.f32 %v6324, %v5958
        %v6357 = vmul.f32 %v6325, %v5963
        %v6358 = vmul.f32 %v6326, %v5968
        %v6359 = vmul.f32 %v6327, %v5973
        %v6360 = vmul.f32 %v6328, %v5978
        %v6361 = vmul.f32 %v6329, %v5983
        %v6362 = vmul.f32 %v6330, %v5988
        %v6363 = vmul.f32 %v6331, %v5993
        %v6364 = vmul.f32 %v6332, %v5998
        %v6365 = vmul.f32 %v6333, %v6003
        %v6366 = vmul.f32 %v6334, %v6008
        %v6367 = vmul.f32 %v6335, %v6013
        %v6368 = vmul.f32 %v6336, %v6018
        %v6369 = vmul.f32 %v6337, %v6023
        %v6370 = vmul.f32 %v6338, %v6028
        %v6371 = vmul.f32 %v6339, %v6033
        %v6372 = vmul.f32 %v6340, %v6038
        %v6373 = vmul.f32 %v6341, %v6043
        %v6374 = vmul.f32 %v6342, %v6048
        %v6375 = vmul.f32 %v6343, %v6053
        %v6376 = vmul.f32 %v6344, %v6058
        %v6377 = vmul.f32 %v6345, %v6063
        %v6378 = vmul.f32 %v6346, %v6068
        %v6379 = vmul.f32 %v6347, %v6073
        %v6380 = vmul.f32 %v6348, %v6078
        %v6381 = vmul.f32 %v6349, %v6083
        %v6382 = vmul.f32 %v6350, %v6088
        %v6383 = vmul.f32 %v6351, %v6093
        %v6384 = vsel %vm3009, %v6352, -inf
        %6385 = vmax.xlane.f32.xlu0 %v6384
        %v6386 = vpop.xlane.xlu0 %6385
        %v6387 = vsel %vm3009, %v6353, -inf
        %6388 = vmax.xlane.f32.xlu0 %v6387
        %v6389 = vpop.xlane.xlu0 %6388
        %v6390 = vsel %vm3009, %v6354, -inf
        %6391 = vmax.xlane.f32.xlu0 %v6390
        %v6392 = vpop.xlane.xlu0 %6391
        %v6393 = vsel %vm3009, %v6355, -inf
        %6394 = vmax.xlane.f32.xlu0 %v6393
        %v6395 = vpop.xlane.xlu0 %6394
        %v6396 = vsel %vm3009, %v6356, -inf
        %6397 = vmax.xlane.f32.xlu0 %v6396
        %v6398 = vpop.xlane.xlu0 %6397
        %v6399 = vsel %vm3009, %v6357, -inf
        %6400 = vmax.xlane.f32.xlu0 %v6399
        %v6401 = vpop.xlane.xlu0 %6400
        %v6402 = vsel %vm3009, %v6358, -inf
        %6403 = vmax.xlane.f32.xlu0 %v6402
        %v6404 = vpop.xlane.xlu0 %6403
        %v6405 = vsel %vm3009, %v6359, -inf
        %6406 = vmax.xlane.f32.xlu0 %v6405
        %v6407 = vpop.xlane.xlu0 %6406
        %v6408 = vsel %vm3009, %v6360, -inf
        %6409 = vmax.xlane.f32.xlu0 %v6408
        %v6410 = vpop.xlane.xlu0 %6409
        %v6411 = vsel %vm3009, %v6361, -inf
        %6412 = vmax.xlane.f32.xlu0 %v6411
        %v6413 = vpop.xlane.xlu0 %6412
        %v6414 = vsel %vm3009, %v6362, -inf
        %6415 = vmax.xlane.f32.xlu0 %v6414
        %v6416 = vpop.xlane.xlu0 %6415
        %v6417 = vsel %vm3009, %v6363, -inf
        %6418 = vmax.xlane.f32.xlu0 %v6417
        %v6419 = vpop.xlane.xlu0 %6418
        %v6420 = vsel %vm3009, %v6364, -inf
        %6421 = vmax.xlane.f32.xlu0 %v6420
        %v6422 = vpop.xlane.xlu0 %6421
        %v6423 = vsel %vm3009, %v6365, -inf
        %6424 = vmax.xlane.f32.xlu0 %v6423
        %v6425 = vpop.xlane.xlu0 %6424
        %v6426 = vsel %vm3009, %v6366, -inf
        %6427 = vmax.xlane.f32.xlu0 %v6426
        %v6428 = vpop.xlane.xlu0 %6427
        %v6429 = vsel %vm3009, %v6367, -inf
        %6430 = vmax.xlane.f32.xlu0 %v6429
        %v6431 = vpop.xlane.xlu0 %6430
        %v6432 = vsel %vm3009, %v6368, -inf
        %6433 = vmax.xlane.f32.xlu0 %v6432
        %v6434 = vpop.xlane.xlu0 %6433
        %v6435 = vsel %vm3009, %v6369, -inf
        %6436 = vmax.xlane.f32.xlu0 %v6435
        %v6437 = vpop.xlane.xlu0 %6436
        %v6438 = vsel %vm3009, %v6370, -inf
        %6439 = vmax.xlane.f32.xlu0 %v6438
        %v6440 = vpop.xlane.xlu0 %6439
        %v6441 = vsel %vm3009, %v6371, -inf
        %6442 = vmax.xlane.f32.xlu0 %v6441
        %v6443 = vpop.xlane.xlu0 %6442
        %v6444 = vsel %vm3009, %v6372, -inf
        %6445 = vmax.xlane.f32.xlu0 %v6444
        %v6446 = vpop.xlane.xlu0 %6445
        %v6447 = vsel %vm3009, %v6373, -inf
        %6448 = vmax.xlane.f32.xlu0 %v6447
        %v6449 = vpop.xlane.xlu0 %6448
        %v6450 = vsel %vm3009, %v6374, -inf
        %6451 = vmax.xlane.f32.xlu0 %v6450
        %v6452 = vpop.xlane.xlu0 %6451
        %v6453 = vsel %vm3009, %v6375, -inf
        %6454 = vmax.xlane.f32.xlu0 %v6453
        %v6455 = vpop.xlane.xlu0 %6454
        %v6456 = vsel %vm3009, %v6376, -inf
        %6457 = vmax.xlane.f32.xlu0 %v6456
        %v6458 = vpop.xlane.xlu0 %6457
        %v6459 = vsel %vm3009, %v6377, -inf
        %6460 = vmax.xlane.f32.xlu0 %v6459
        %v6461 = vpop.xlane.xlu0 %6460
        %v6462 = vsel %vm3009, %v6378, -inf
        %6463 = vmax.xlane.f32.xlu0 %v6462
        %v6464 = vpop.xlane.xlu0 %6463
        %v6465 = vsel %vm3009, %v6379, -inf
        %6466 = vmax.xlane.f32.xlu0 %v6465
        %v6467 = vpop.xlane.xlu0 %6466
        %v6468 = vsel %vm3009, %v6380, -inf
        %6469 = vmax.xlane.f32.xlu0 %v6468
        %v6470 = vpop.xlane.xlu0 %6469
        %v6471 = vsel %vm3009, %v6381, -inf
        %6472 = vmax.xlane.f32.xlu0 %v6471
        %v6473 = vpop.xlane.xlu0 %6472
        %v6474 = vsel %vm3009, %v6382, -inf
        %6475 = vmax.xlane.f32.xlu0 %v6474
        %v6476 = vpop.xlane.xlu0 %6475
        %v6477 = vsel %vm3009, %v6383, -inf
        %6478 = vmax.xlane.f32.xlu0 %v6477
        %v6479 = vpop.xlane.xlu0 %6478
        %v6480 = vsub.f32 %v6352, %v6386
        %v6481 = vsub.f32 %v6353, %v6389
        %v6482 = vsub.f32 %v6354, %v6392
        %v6483 = vsub.f32 %v6355, %v6395
        %v6484 = vsub.f32 %v6356, %v6398
        %v6485 = vsub.f32 %v6357, %v6401
        %v6486 = vsub.f32 %v6358, %v6404
        %v6487 = vsub.f32 %v6359, %v6407
        %v6488 = vsub.f32 %v6360, %v6410
        %v6489 = vsub.f32 %v6361, %v6413
        %v6490 = vsub.f32 %v6362, %v6416
        %v6491 = vsub.f32 %v6363, %v6419
        %v6492 = vsub.f32 %v6364, %v6422
        %v6493 = vsub.f32 %v6365, %v6425
        %v6494 = vsub.f32 %v6366, %v6428
        %v6495 = vsub.f32 %v6367, %v6431
        %v6496 = vsub.f32 %v6368, %v6434
        %v6497 = vsub.f32 %v6369, %v6437
        %v6498 = vsub.f32 %v6370, %v6440
        %v6499 = vsub.f32 %v6371, %v6443
        %v6500 = vsub.f32 %v6372, %v6446
        %v6501 = vsub.f32 %v6373, %v6449
        %v6502 = vsub.f32 %v6374, %v6452
        %v6503 = vsub.f32 %v6375, %v6455
        %v6504 = vsub.f32 %v6376, %v6458
        %v6505 = vsub.f32 %v6377, %v6461
        %v6506 = vsub.f32 %v6378, %v6464
        %v6507 = vsub.f32 %v6379, %v6467
        %v6508 = vsub.f32 %v6380, %v6470
        %v6509 = vsub.f32 %v6381, %v6473
        %v6510 = vsub.f32 %v6382, %v6476
        %v6511 = vsub.f32 %v6383, %v6479
        %v6512 = vmul.f32 %v6480, 1.442695
        %v6513 = vpow.pop %v6512
        %v6514 = vmul.f32 %v6481, 1.442695
        %v6515 = vpow.pop %v6514
        %v6516 = vmul.f32 %v6482, 1.442695
        %v6517 = vpow.pop %v6516
        %v6518 = vmul.f32 %v6483, 1.442695
        %v6519 = vpow.pop %v6518
        %v6520 = vmul.f32 %v6484, 1.442695
        %v6521 = vpow.pop %v6520
        %v6522 = vmul.f32 %v6485, 1.442695
        %v6523 = vpow.pop %v6522
        %v6524 = vmul.f32 %v6486, 1.442695
        %v6525 = vpow.pop %v6524
        %v6526 = vmul.f32 %v6487, 1.442695
        %v6527 = vpow.pop %v6526
        %v6528 = vmul.f32 %v6488, 1.442695
        %v6529 = vpow.pop %v6528
        %v6530 = vmul.f32 %v6489, 1.442695
        %v6531 = vpow.pop %v6530
        %v6532 = vmul.f32 %v6490, 1.442695
        %v6533 = vpow.pop %v6532
        %v6534 = vmul.f32 %v6491, 1.442695
        %v6535 = vpow.pop %v6534
        %v6536 = vmul.f32 %v6492, 1.442695
        %v6537 = vpow.pop %v6536
        %v6538 = vmul.f32 %v6493, 1.442695
        %v6539 = vpow.pop %v6538
        %v6540 = vmul.f32 %v6494, 1.442695
        %v6541 = vpow.pop %v6540
        %v6542 = vmul.f32 %v6495, 1.442695
        %v6543 = vpow.pop %v6542
        %v6544 = vmul.f32 %v6496, 1.442695
        %v6545 = vpow.pop %v6544
        %v6546 = vmul.f32 %v6497, 1.442695
        %v6547 = vpow.pop %v6546
        %v6548 = vmul.f32 %v6498, 1.442695
        %v6549 = vpow.pop %v6548
        %v6550 = vmul.f32 %v6499, 1.442695
        %v6551 = vpow.pop %v6550
        %v6552 = vmul.f32 %v6500, 1.442695
        %v6553 = vpow.pop %v6552
        %v6554 = vmul.f32 %v6501, 1.442695
        %v6555 = vpow.pop %v6554
        %v6556 = vmul.f32 %v6502, 1.442695
        %v6557 = vpow.pop %v6556
        %v6558 = vmul.f32 %v6503, 1.442695
        %v6559 = vpow.pop %v6558
        %v6560 = vmul.f32 %v6504, 1.442695
        %v6561 = vpow.pop %v6560
        %v6562 = vmul.f32 %v6505, 1.442695
        %v6563 = vpow.pop %v6562
        %v6564 = vmul.f32 %v6506, 1.442695
        %v6565 = vpow.pop %v6564
        %v6566 = vmul.f32 %v6507, 1.442695
        %v6567 = vpow.pop %v6566
        %v6568 = vmul.f32 %v6508, 1.442695
        %v6569 = vpow.pop %v6568
        %v6570 = vmul.f32 %v6509, 1.442695
        %v6571 = vpow.pop %v6570
        %v6572 = vmul.f32 %v6510, 1.442695
        %v6573 = vpow.pop %v6572
        %v6574 = vmul.f32 %v6511, 1.442695
        %v6575 = vpow.pop %v6574
        %v6576 = vsel %vm3009, %v6513, 0.0
        %6577 = vadd.xlane.f32.xlu0 %v6576
        %v6578 = vpop.xlane.xlu0 %6577
        %v6579 = vsel %vm3009, %v6515, 0.0
        %6580 = vadd.xlane.f32.xlu0 %v6579
        %v6581 = vpop.xlane.xlu0 %6580
        %v6582 = vsel %vm3009, %v6517, 0.0
        %6583 = vadd.xlane.f32.xlu0 %v6582
        %v6584 = vpop.xlane.xlu0 %6583
        %v6585 = vsel %vm3009, %v6519, 0.0
        %6586 = vadd.xlane.f32.xlu0 %v6585
        %v6587 = vpop.xlane.xlu0 %6586
        %v6588 = vsel %vm3009, %v6521, 0.0
        %6589 = vadd.xlane.f32.xlu0 %v6588
        %v6590 = vpop.xlane.xlu0 %6589
        %v6591 = vsel %vm3009, %v6523, 0.0
        %6592 = vadd.xlane.f32.xlu0 %v6591
        %v6593 = vpop.xlane.xlu0 %6592
        %v6594 = vsel %vm3009, %v6525, 0.0
        %6595 = vadd.xlane.f32.xlu0 %v6594
        %v6596 = vpop.xlane.xlu0 %6595
        %v6597 = vsel %vm3009, %v6527, 0.0
        %6598 = vadd.xlane.f32.xlu0 %v6597
        %v6599 = vpop.xlane.xlu0 %6598
        %v6600 = vsel %vm3009, %v6529, 0.0
        %6601 = vadd.xlane.f32.xlu0 %v6600
        %v6602 = vpop.xlane.xlu0 %6601
        %v6603 = vsel %vm3009, %v6531, 0.0
        %6604 = vadd.xlane.f32.xlu0 %v6603
        %v6605 = vpop.xlane.xlu0 %6604
        %v6606 = vsel %vm3009, %v6533, 0.0
        %6607 = vadd.xlane.f32.xlu0 %v6606
        %v6608 = vpop.xlane.xlu0 %6607
        %v6609 = vsel %vm3009, %v6535, 0.0
        %6610 = vadd.xlane.f32.xlu0 %v6609
        %v6611 = vpop.xlane.xlu0 %6610
        %v6612 = vsel %vm3009, %v6537, 0.0
        %6613 = vadd.xlane.f32.xlu0 %v6612
        %v6614 = vpop.xlane.xlu0 %6613
        %v6615 = vsel %vm3009, %v6539, 0.0
        %6616 = vadd.xlane.f32.xlu0 %v6615
        %v6617 = vpop.xlane.xlu0 %6616
        %v6618 = vsel %vm3009, %v6541, 0.0
        %6619 = vadd.xlane.f32.xlu0 %v6618
        %v6620 = vpop.xlane.xlu0 %6619
        %v6621 = vsel %vm3009, %v6543, 0.0
        %6622 = vadd.xlane.f32.xlu0 %v6621
        %v6623 = vpop.xlane.xlu0 %6622
        %v6624 = vsel %vm3009, %v6545, 0.0
        %6625 = vadd.xlane.f32.xlu0 %v6624
        %v6626 = vpop.xlane.xlu0 %6625
        %v6627 = vsel %vm3009, %v6547, 0.0
        %6628 = vadd.xlane.f32.xlu0 %v6627
        %v6629 = vpop.xlane.xlu0 %6628
        %v6630 = vsel %vm3009, %v6549, 0.0
        %6631 = vadd.xlane.f32.xlu0 %v6630
        %v6632 = vpop.xlane.xlu0 %6631
        %v6633 = vsel %vm3009, %v6551, 0.0
        %6634 = vadd.xlane.f32.xlu0 %v6633
        %v6635 = vpop.xlane.xlu0 %6634
        %v6636 = vsel %vm3009, %v6553, 0.0
        %6637 = vadd.xlane.f32.xlu0 %v6636
        %v6638 = vpop.xlane.xlu0 %6637
        %v6639 = vsel %vm3009, %v6555, 0.0
        %6640 = vadd.xlane.f32.xlu0 %v6639
        %v6641 = vpop.xlane.xlu0 %6640
        %v6642 = vsel %vm3009, %v6557, 0.0
        %6643 = vadd.xlane.f32.xlu0 %v6642
        %v6644 = vpop.xlane.xlu0 %6643
        %v6645 = vsel %vm3009, %v6559, 0.0
        %6646 = vadd.xlane.f32.xlu0 %v6645
        %v6647 = vpop.xlane.xlu0 %6646
        %v6648 = vsel %vm3009, %v6561, 0.0
        %6649 = vadd.xlane.f32.xlu0 %v6648
        %v6650 = vpop.xlane.xlu0 %6649
        %v6651 = vsel %vm3009, %v6563, 0.0
        %6652 = vadd.xlane.f32.xlu0 %v6651
        %v6653 = vpop.xlane.xlu0 %6652
        %v6654 = vsel %vm3009, %v6565, 0.0
        %6655 = vadd.xlane.f32.xlu0 %v6654
        %v6656 = vpop.xlane.xlu0 %6655
        %v6657 = vsel %vm3009, %v6567, 0.0
        %6658 = vadd.xlane.f32.xlu0 %v6657
        %v6659 = vpop.xlane.xlu0 %6658
        %v6660 = vsel %vm3009, %v6569, 0.0
        %6661 = vadd.xlane.f32.xlu0 %v6660
        %v6662 = vpop.xlane.xlu0 %6661
        %v6663 = vsel %vm3009, %v6571, 0.0
        %6664 = vadd.xlane.f32.xlu0 %v6663
        %v6665 = vpop.xlane.xlu0 %6664
        %v6666 = vsel %vm3009, %v6573, 0.0
        %6667 = vadd.xlane.f32.xlu0 %v6666
        %v6668 = vpop.xlane.xlu0 %6667
        %v6669 = vsel %vm3009, %v6575, 0.0
        %6670 = vadd.xlane.f32.xlu0 %v6669
        %v6671 = vpop.xlane.xlu0 %6670
        %v6672 = vrcp.pop %v6578
        %v6673 = vrcp.pop %v6581
        %v6674 = vrcp.pop %v6584
        %v6675 = vrcp.pop %v6587
        %v6676 = vrcp.pop %v6590
        %v6677 = vrcp.pop %v6593
        %v6678 = vrcp.pop %v6596
        %v6679 = vrcp.pop %v6599
        %v6680 = vrcp.pop %v6602
        %v6681 = vrcp.pop %v6605
        %v6682 = vrcp.pop %v6608
        %v6683 = vrcp.pop %v6611
        %v6684 = vrcp.pop %v6614
        %v6685 = vrcp.pop %v6617
        %v6686 = vrcp.pop %v6620
        %v6687 = vrcp.pop %v6623
        %v6688 = vrcp.pop %v6626
        %v6689 = vrcp.pop %v6629
        %v6690 = vrcp.pop %v6632
        %v6691 = vrcp.pop %v6635
        %v6692 = vrcp.pop %v6638
        %v6693 = vrcp.pop %v6641
        %v6694 = vrcp.pop %v6644
        %v6695 = vrcp.pop %v6647
        %v6696 = vrcp.pop %v6650
        %v6697 = vrcp.pop %v6653
        %v6698 = vrcp.pop %v6656
        %v6699 = vrcp.pop %v6659
        %v6700 = vrcp.pop %v6662
        %v6701 = vrcp.pop %v6665
        %v6702 = vrcp.pop %v6668
        %v6703 = vrcp.pop %v6671
        %v6704 = vmul.f32 %v6513, %v6672
        %v6705 = vmul.f32 %v6515, %v6673
        %v6706 = vmul.f32 %v6517, %v6674
        %v6707 = vmul.f32 %v6519, %v6675
        %v6708 = vmul.f32 %v6521, %v6676
        %v6709 = vmul.f32 %v6523, %v6677
        %v6710 = vmul.f32 %v6525, %v6678
        %v6711 = vmul.f32 %v6527, %v6679
        %v6712 = vmul.f32 %v6529, %v6680
        %v6713 = vmul.f32 %v6531, %v6681
        %v6714 = vmul.f32 %v6533, %v6682
        %v6715 = vmul.f32 %v6535, %v6683
        %v6716 = vmul.f32 %v6537, %v6684
        %v6717 = vmul.f32 %v6539, %v6685
        %v6718 = vmul.f32 %v6541, %v6686
        %v6719 = vmul.f32 %v6543, %v6687
        %v6720 = vmul.f32 %v6545, %v6688
        %v6721 = vmul.f32 %v6547, %v6689
        %v6722 = vmul.f32 %v6549, %v6690
        %v6723 = vmul.f32 %v6551, %v6691
        %v6724 = vmul.f32 %v6553, %v6692
        %v6725 = vmul.f32 %v6555, %v6693
        %v6726 = vmul.f32 %v6557, %v6694
        %v6727 = vmul.f32 %v6559, %v6695
        %v6728 = vmul.f32 %v6561, %v6696
        %v6729 = vmul.f32 %v6563, %v6697
        %v6730 = vmul.f32 %v6565, %v6698
        %v6731 = vmul.f32 %v6567, %v6699
        %v6732 = vmul.f32 %v6569, %v6700
        %v6733 = vmul.f32 %v6571, %v6701
        %v6734 = vmul.f32 %v6573, %v6702
        %v6735 = vmul.f32 %v6575, %v6703
        %v6736 = vmul.f32 %v5938, %v6704
        %v6737 = vmul.f32 %v5943, %v6705
        %v6738 = vmul.f32 %v5948, %v6706
        %v6739 = vmul.f32 %v5953, %v6707
        %v6740 = vmul.f32 %v5958, %v6708
        %v6741 = vmul.f32 %v5963, %v6709
        %v6742 = vmul.f32 %v5968, %v6710
        %v6743 = vmul.f32 %v5973, %v6711
        %v6744 = vmul.f32 %v5978, %v6712
        %v6745 = vmul.f32 %v5983, %v6713
        %v6746 = vmul.f32 %v5988, %v6714
        %v6747 = vmul.f32 %v5993, %v6715
        %v6748 = vmul.f32 %v5998, %v6716
        %v6749 = vmul.f32 %v6003, %v6717
        %v6750 = vmul.f32 %v6008, %v6718
        %v6751 = vmul.f32 %v6013, %v6719
        %v6752 = vmul.f32 %v6018, %v6720
        %v6753 = vmul.f32 %v6023, %v6721
        %v6754 = vmul.f32 %v6028, %v6722
        %v6755 = vmul.f32 %v6033, %v6723
        %v6756 = vmul.f32 %v6038, %v6724
        %v6757 = vmul.f32 %v6043, %v6725
        %v6758 = vmul.f32 %v6048, %v6726
        %v6759 = vmul.f32 %v6053, %v6727
        %v6760 = vmul.f32 %v6058, %v6728
        %v6761 = vmul.f32 %v6063, %v6729
        %v6762 = vmul.f32 %v6068, %v6730
        %v6763 = vmul.f32 %v6073, %v6731
        %v6764 = vmul.f32 %v6078, %v6732
        %v6765 = vmul.f32 %v6083, %v6733
        %v6766 = vmul.f32 %v6088, %v6734
        %v6767 = vmul.f32 %v6093, %v6735
        %6768 = vrot.lane.b32.xlu0 %v331, 24
        %v6769 = vpop.permute.xlu0 %6768
        %6770 = vrot.lane.b32.xlu0 %v333, 24
        %v6771 = vpop.permute.xlu0 %6770
        %6772 = vrot.lane.b32.xlu0 %v336, 24
        %v6773 = vpop.permute.xlu0 %6772
        %6774 = vrot.lane.b32.xlu0 %v338, 24
        %v6775 = vpop.permute.xlu0 %6774
        %6776 = vrot.lane.b32.xlu0 %v341, 24
        %v6777 = vpop.permute.xlu0 %6776
        %6778 = vrot.lane.b32.xlu0 %v343, 24
        %v6779 = vpop.permute.xlu0 %6778
        %6780 = vrot.lane.b32.xlu0 %v346, 24
        %v6781 = vpop.permute.xlu0 %6780
        %6782 = vrot.lane.b32.xlu0 %v348, 24
        %v6783 = vpop.permute.xlu0 %6782
        %6784 = vrot.lane.b32.xlu0 %v351, 24
        %v6785 = vpop.permute.xlu0 %6784
        %6786 = vrot.lane.b32.xlu0 %v353, 24
        %v6787 = vpop.permute.xlu0 %6786
        %6788 = vrot.lane.b32.xlu0 %v356, 24
        %v6789 = vpop.permute.xlu0 %6788
        %6790 = vrot.lane.b32.xlu0 %v358, 24
        %v6791 = vpop.permute.xlu0 %6790
        %6792 = vrot.lane.b32.xlu0 %v361, 24
        %v6793 = vpop.permute.xlu0 %6792
        %6794 = vrot.lane.b32.xlu0 %v363, 24
        %v6795 = vpop.permute.xlu0 %6794
        %6796 = vrot.lane.b32.xlu0 %v366, 24
        %v6797 = vpop.permute.xlu0 %6796
        %6798 = vrot.lane.b32.xlu0 %v368, 24
        %v6799 = vpop.permute.xlu0 %6798
        %6800 = vrot.lane.b32.xlu0 %v371, 24
        %v6801 = vpop.permute.xlu0 %6800
        %6802 = vrot.lane.b32.xlu0 %v373, 24
        %v6803 = vpop.permute.xlu0 %6802
        %6804 = vrot.lane.b32.xlu0 %v376, 24
        %v6805 = vpop.permute.xlu0 %6804
        %6806 = vrot.lane.b32.xlu0 %v378, 24
        %v6807 = vpop.permute.xlu0 %6806
        %6808 = vrot.lane.b32.xlu0 %v381, 24
        %v6809 = vpop.permute.xlu0 %6808
        %6810 = vrot.lane.b32.xlu0 %v383, 24
        %v6811 = vpop.permute.xlu0 %6810
        %6812 = vrot.lane.b32.xlu0 %v386, 24
        %v6813 = vpop.permute.xlu0 %6812
        %6814 = vrot.lane.b32.xlu0 %v388, 24
        %v6815 = vpop.permute.xlu0 %6814
        %6816 = vrot.lane.b32.xlu0 %v391, 24
        %v6817 = vpop.permute.xlu0 %6816
        %6818 = vrot.lane.b32.xlu0 %v393, 24
        %v6819 = vpop.permute.xlu0 %6818
        %6820 = vrot.lane.b32.xlu0 %v396, 24
        %v6821 = vpop.permute.xlu0 %6820
        %6822 = vrot.lane.b32.xlu0 %v398, 24
        %v6823 = vpop.permute.xlu0 %6822
        %6824 = vrot.lane.b32.xlu0 %v401, 24
        %v6825 = vpop.permute.xlu0 %6824
        %6826 = vrot.lane.b32.xlu0 %v403, 24
        %v6827 = vpop.permute.xlu0 %6826
        %6828 = vrot.lane.b32.xlu0 %v406, 24
        %v6829 = vpop.permute.xlu0 %6828
        %6830 = vrot.lane.b32.xlu0 %v408, 24
        %v6831 = vpop.permute.xlu0 %6830
        %v6864 = vsel %vm3009, %v6736, %v6769
        %v6865 = vsel %vm3009, %v6737, %v6771
        %v6866 = vsel %vm3009, %v6738, %v6773
        %v6867 = vsel %vm3009, %v6739, %v6775
        %v6868 = vsel %vm3009, %v6740, %v6777
        %v6869 = vsel %vm3009, %v6741, %v6779
        %v6870 = vsel %vm3009, %v6742, %v6781
        %v6871 = vsel %vm3009, %v6743, %v6783
        %v6872 = vsel %vm3009, %v6744, %v6785
        %v6873 = vsel %vm3009, %v6745, %v6787
        %v6874 = vsel %vm3009, %v6746, %v6789
        %v6875 = vsel %vm3009, %v6747, %v6791
        %v6876 = vsel %vm3009, %v6748, %v6793
        %v6877 = vsel %vm3009, %v6749, %v6795
        %v6878 = vsel %vm3009, %v6750, %v6797
        %v6879 = vsel %vm3009, %v6751, %v6799
        %v6880 = vsel %vm3009, %v6752, %v6801
        %v6881 = vsel %vm3009, %v6753, %v6803
        %v6882 = vsel %vm3009, %v6754, %v6805
        %v6883 = vsel %vm3009, %v6755, %v6807
        %v6884 = vsel %vm3009, %v6756, %v6809
        %v6885 = vsel %vm3009, %v6757, %v6811
        %v6886 = vsel %vm3009, %v6758, %v6813
        %v6887 = vsel %vm3009, %v6759, %v6815
        %v6888 = vsel %vm3009, %v6760, %v6817
        %v6889 = vsel %vm3009, %v6761, %v6819
        %v6890 = vsel %vm3009, %v6762, %v6821
        %v6891 = vsel %vm3009, %v6763, %v6823
        %v6892 = vsel %vm3009, %v6764, %v6825
        %v6893 = vsel %vm3009, %v6765, %v6827
        %v6894 = vsel %vm3009, %v6766, %v6829
        %v6895 = vsel %vm3009, %v6767, %v6831
        %v6896 = vld [vmem:[%s2] sm:$0xff]
        %v6897 = vld [vmem:[%s2 + $0x8] sm:$0xff]
        %v6898 = vld [vmem:[%s2 + $0x10] sm:$0xff]
        %v6899 = vld [vmem:[%s2 + $0x18] sm:$0xff]
        %v6900 = vld [vmem:[%s3] sm:$0x1]
        %v6902 = vlaneseq
        %v6903 = vshrl.u32 %v6902, 7
        %v6904 = vsub.s32 0, %v6903
        %v6905 = vrot.slane %v6900, %v6904
        %v6908 = vsel %vm3058, %v6864, 0
        %v6911 = vsel %vm3058, %v6865, 0
        %v6914 = vsel %vm3058, %v6866, 0
        %v6917 = vsel %vm3058, %v6867, 0
        %v6920 = vsel %vm3058, %v6868, 0
        %v6923 = vsel %vm3058, %v6869, 0
        %v6926 = vsel %vm3058, %v6870, 0
        %v6929 = vsel %vm3058, %v6871, 0
        %v6932 = vsel %vm3058, %v6872, 0
        %v6935 = vsel %vm3058, %v6873, 0
        %v6938 = vsel %vm3058, %v6874, 0
        %v6941 = vsel %vm3058, %v6875, 0
        %v6944 = vsel %vm3058, %v6876, 0
        %v6947 = vsel %vm3058, %v6877, 0
        %v6950 = vsel %vm3058, %v6878, 0
        %v6953 = vsel %vm3058, %v6879, 0
        %v6956 = vsel %vm3058, %v6880, 0
        %v6959 = vsel %vm3058, %v6881, 0
        %v6962 = vsel %vm3058, %v6882, 0
        %v6965 = vsel %vm3058, %v6883, 0
        %v6968 = vsel %vm3058, %v6884, 0
        %v6971 = vsel %vm3058, %v6885, 0
        %v6974 = vsel %vm3058, %v6886, 0
        %v6977 = vsel %vm3058, %v6887, 0
        %v6980 = vsel %vm3058, %v6888, 0
        %v6983 = vsel %vm3058, %v6889, 0
        %v6986 = vsel %vm3058, %v6890, 0
        %v6989 = vsel %vm3058, %v6891, 0
        %v6992 = vsel %vm3058, %v6892, 0
        %v6995 = vsel %vm3058, %v6893, 0
        %v6998 = vsel %vm3058, %v6894, 0
        %v7001 = vsel %vm3058, %v6895, 0
        %7003 = vmatprep.subr.mxu0 0.0
        %7004 = vmatpush1.msra.mxu0 %v6896
        %7005 = vmatprep.subr.mxu0 0.0
        %7006 = vmatpush1.msra.mxu0 %v6897
        %7007 = vmatprep.subr.mxu0 0.0
        %7008 = vmatpush1.msra.mxu0 %v6898
        %7009 = vmatprep.subr.mxu0 0.0
        %7010 = vmatpush1.msra.mxu0 %v6899
        %7011 = vmatprep.subr.mxu0 0.0
        %7012 = vmatpush1.msra.mxu0 0.0
        %7013 = vmatprep.subr.mxu0 0.0
        %7014 = vmatpush1.msra.mxu0 0.0
        %7015 = vmatprep.subr.mxu0 0.0
        %7016 = vmatpush1.msra.mxu0 0.0
        %7017 = vmatprep.subr.mxu0 0.0
        %7018 = vmatpush1.msra.mxu0 0.0
        %7019 = vmatprep.subr.mxu0 0.0
        %7020 = vmatpush1.msra.mxu0 0.0
        %7021 = vmatprep.subr.mxu0 0.0
        %7022 = vmatpush1.msra.mxu0 0.0
        %7023 = vmatprep.subr.mxu0 0.0
        %7024 = vmatpush1.msra.mxu0 0.0
        %7025 = vmatprep.subr.mxu0 0.0
        %7026 = vmatpush1.msra.mxu0 0.0
        %7027 = vmatprep.subr.mxu0 0.0
        %7028 = vmatpush1.msra.mxu0 0.0
        %7029 = vmatprep.subr.mxu0 0.0
        %7030 = vmatpush1.msra.mxu0 0.0
        %7031 = vmatprep.subr.mxu0 0.0
        %7032 = vmatpush1.msra.mxu0 0.0
        %7033 = vmatprep.subr.mxu0 0.0
        %7034 = vmatpush1.msra.mxu0 0.0
        %7035 = vmatprep.subr.mxu0 0.0
        %7036 = vmatpush1.msra.mxu0 0.0
        %7037 = vmatprep.subr.mxu0 0.0
        %7038 = vmatpush1.msra.mxu0 0.0
        %7039 = vmatprep.subr.mxu0 0.0
        %7040 = vmatpush1.msra.mxu0 0.0
        %7041 = vmatprep.subr.mxu0 0.0
        %7042 = vmatpush1.msra.mxu0 0.0
        %7043 = vmatprep.subr.mxu0 0.0
        %7044 = vmatpush1.msra.mxu0 0.0
        %7045 = vmatprep.subr.mxu0 0.0
        %7046 = vmatpush1.msra.mxu0 0.0
        %7047 = vmatprep.subr.mxu0 0.0
        %7048 = vmatpush1.msra.mxu0 0.0
        %7049 = vmatprep.subr.mxu0 0.0
        %7050 = vmatpush1.msra.mxu0 0.0
        %7051 = vmatprep.subr.mxu0 0.0
        %7052 = vmatpush1.msra.mxu0 0.0
        %7053 = vmatprep.subr.mxu0 0.0
        %7054 = vmatpush1.msra.mxu0 0.0
        %7055 = vmatprep.subr.mxu0 0.0
        %7056 = vmatpush1.msra.mxu0 0.0
        %7057 = vmatprep.subr.mxu0 0.0
        %7058 = vmatpush1.msra.mxu0 0.0
        %7059 = vmatprep.subr.mxu0 0.0
        %7060 = vmatpush1.msra.mxu0 0.0
        %7061 = vmatprep.subr.mxu0 0.0
        %7062 = vmatpush1.msra.mxu0 0.0
        %7063 = vmatprep.subr.mxu0 0.0
        %7064 = vmatpush1.msra.mxu0 0.0
        %7065 = vmatprep.subr.mxu0 0.0
        %7066 = vmatpush1.msra.mxu0 0.0
        %7067 = vmatprep.mubr.f32.mxu0 0.0
        %7068 = vmatmul.mubr.f32.gmra.mrb[0].mxu0 %v6908
        %v7069 = vpop.f32.mrb[0].mxu0
        %v7070 = vadd.f32 %v6905, %v7069
        %v7071 = vpop.f32.mrb[0].mxu0
        %7072 = vmatprep.mubr.f32.mxu0 0.0
        %7073 = vmatmul.mubr.f32.gmra.mrb[0].mxu0 %v6911
        %v7074 = vpop.f32.mrb[0].mxu0
        %v7075 = vadd.f32 %v6905, %v7074
        %v7076 = vpop.f32.mrb[0].mxu0
        %7077 = vmatprep.mubr.f32.mxu0 0.0
        %7078 = vmatmul.mubr.f32.gmra.mrb[0].mxu0 %v6914
        %v7079 = vpop.f32.mrb[0].mxu0
        %v7080 = vadd.f32 %v6905, %v7079
        %v7081 = vpop.f32.mrb[0].mxu0
        %7082 = vmatprep.mubr.f32.mxu0 0.0
        %7083 = vmatmul.mubr.f32.gmra.mrb[0].mxu0 %v6917
        %v7084 = vpop.f32.mrb[0].mxu0
        %v7085 = vadd.f32 %v6905, %v7084
        %v7086 = vpop.f32.mrb[0].mxu0
        %7087 = vmatprep.mubr.f32.mxu0 0.0
        %7088 = vmatmul.mubr.f32.gmra.mrb[0].mxu0 %v6920
        %v7089 = vpop.f32.mrb[0].mxu0
        %v7090 = vadd.f32 %v6905, %v7089
        %v7091 = vpop.f32.mrb[0].mxu0
        %7092 = vmatprep.mubr.f32.mxu0 0.0
        %7093 = vmatmul.mubr.f32.gmra.mrb[0].mxu0 %v6923
        %v7094 = vpop.f32.mrb[0].mxu0
        %v7095 = vadd.f32 %v6905, %v7094
        %v7096 = vpop.f32.mrb[0].mxu0
        %7097 = vmatprep.mubr.f32.mxu0 0.0
        %7098 = vmatmul.mubr.f32.gmra.mrb[0].mxu0 %v6926
        %v7099 = vpop.f32.mrb[0].mxu0
        %v7100 = vadd.f32 %v6905, %v7099
        %v7101 = vpop.f32.mrb[0].mxu0
        %7102 = vmatprep.mubr.f32.mxu0 0.0
        %7103 = vmatmul.mubr.f32.gmra.mrb[0].mxu0 %v6929
        %v7104 = vpop.f32.mrb[0].mxu0
        %v7105 = vadd.f32 %v6905, %v7104
        %v7106 = vpop.f32.mrb[0].mxu0
        %7107 = vmatprep.mubr.f32.mxu0 0.0
        %7108 = vmatmul.mubr.f32.gmra.mrb[0].mxu0 %v6932
        %v7109 = vpop.f32.mrb[0].mxu0
        %v7110 = vadd.f32 %v6905, %v7109
        %v7111 = vpop.f32.mrb[0].mxu0
        %7112 = vmatprep.mubr.f32.mxu0 0.0
        %7113 = vmatmul.mubr.f32.gmra.mrb[0].mxu0 %v6935
        %v7114 = vpop.f32.mrb[0].mxu0
        %v7115 = vadd.f32 %v6905, %v7114
        %v7116 = vpop.f32.mrb[0].mxu0
        %7117 = vmatprep.mubr.f32.mxu0 0.0
        %7118 = vmatmul.mubr.f32.gmra.mrb[0].mxu0 %v6938
        %v7119 = vpop.f32.mrb[0].mxu0
        %v7120 = vadd.f32 %v6905, %v7119
        %v7121 = vpop.f32.mrb[0].mxu0
        %7122 = vmatprep.mubr.f32.mxu0 0.0
        %7123 = vmatmul.mubr.f32.gmra.mrb[0].mxu0 %v6941
        %v7124 = vpop.f32.mrb[0].mxu0
        %v7125 = vadd.f32 %v6905, %v7124
        %v7126 = vpop.f32.mrb[0].mxu0
        %7127 = vmatprep.mubr.f32.mxu0 0.0
        %7128 = vmatmul.mubr.f32.gmra.mrb[0].mxu0 %v6944
        %v7129 = vpop.f32.mrb[0].mxu0
        %v7130 = vadd.f32 %v6905, %v7129
        %v7131 = vpop.f32.mrb[0].mxu0
        %7132 = vmatprep.mubr.f32.mxu0 0.0
        %7133 = vmatmul.mubr.f32.gmra.mrb[0].mxu0 %v6947
        %v7134 = vpop.f32.mrb[0].mxu0
        %v7135 = vadd.f32 %v6905, %v7134
        %v7136 = vpop.f32.mrb[0].mxu0
        %7137 = vmatprep.mubr.f32.mxu0 0.0
        %7138 = vmatmul.mubr.f32.gmra.mrb[0].mxu0 %v6950
        %v7139 = vpop.f32.mrb[0].mxu0
        %v7140 = vadd.f32 %v6905, %v7139
        %v7141 = vpop.f32.mrb[0].mxu0
        %7142 = vmatprep.mubr.f32.mxu0 0.0
        %7143 = vmatmul.mubr.f32.gmra.mrb[0].mxu0 %v6953
        %v7144 = vpop.f32.mrb[0].mxu0
        %v7145 = vadd.f32 %v6905, %v7144
        %v7146 = vpop.f32.mrb[0].mxu0
        %7147 = vmatprep.mubr.f32.mxu0 0.0
        %7148 = vmatmul.mubr.f32.gmra.mrb[0].mxu0 %v6956
        %v7149 = vpop.f32.mrb[0].mxu0
        %v7150 = vadd.f32 %v6905, %v7149
        %v7151 = vpop.f32.mrb[0].mxu0
        %7152 = vmatprep.mubr.f32.mxu0 0.0
        %7153 = vmatmul.mubr.f32.gmra.mrb[0].mxu0 %v6959
        %v7154 = vpop.f32.mrb[0].mxu0
        %v7155 = vadd.f32 %v6905, %v7154
        %v7156 = vpop.f32.mrb[0].mxu0
        %7157 = vmatprep.mubr.f32.mxu0 0.0
        %7158 = vmatmul.mubr.f32.gmra.mrb[0].mxu0 %v6962
        %v7159 = vpop.f32.mrb[0].mxu0
        %v7160 = vadd.f32 %v6905, %v7159
        %v7161 = vpop.f32.mrb[0].mxu0
        %7162 = vmatprep.mubr.f32.mxu0 0.0
        %7163 = vmatmul.mubr.f32.gmra.mrb[0].mxu0 %v6965
        %v7164 = vpop.f32.mrb[0].mxu0
        %v7165 = vadd.f32 %v6905, %v7164
        %v7166 = vpop.f32.mrb[0].mxu0
        %7167 = vmatprep.mubr.f32.mxu0 0.0
        %7168 = vmatmul.mubr.f32.gmra.mrb[0].mxu0 %v6968
        %v7169 = vpop.f32.mrb[0].mxu0
        %v7170 = vadd.f32 %v6905, %v7169
        %v7171 = vpop.f32.mrb[0].mxu0
        %7172 = vmatprep.mubr.f32.mxu0 0.0
        %7173 = vmatmul.mubr.f32.gmra.mrb[0].mxu0 %v6971
        %v7174 = vpop.f32.mrb[0].mxu0
        %v7175 = vadd.f32 %v6905, %v7174
        %v7176 = vpop.f32.mrb[0].mxu0
        %7177 = vmatprep.mubr.f32.mxu0 0.0
        %7178 = vmatmul.mubr.f32.gmra.mrb[0].mxu0 %v6974
        %v7179 = vpop.f32.mrb[0].mxu0
        %v7180 = vadd.f32 %v6905, %v7179
        %v7181 = vpop.f32.mrb[0].mxu0
        %7182 = vmatprep.mubr.f32.mxu0 0.0
        %7183 = vmatmul.mubr.f32.gmra.mrb[0].mxu0 %v6977
        %v7184 = vpop.f32.mrb[0].mxu0
        %v7185 = vadd.f32 %v6905, %v7184
        %v7186 = vpop.f32.mrb[0].mxu0
        %7187 = vmatprep.mubr.f32.mxu0 0.0
        %7188 = vmatmul.mubr.f32.gmra.mrb[0].mxu0 %v6980
        %v7189 = vpop.f32.mrb[0].mxu0
        %v7190 = vadd.f32 %v6905, %v7189
        %v7191 = vpop.f32.mrb[0].mxu0
        %7192 = vmatprep.mubr.f32.mxu0 0.0
        %7193 = vmatmul.mubr.f32.gmra.mrb[0].mxu0 %v6983
        %v7194 = vpop.f32.mrb[0].mxu0
        %v7195 = vadd.f32 %v6905, %v7194
        %v7196 = vpop.f32.mrb[0].mxu0
        %7197 = vmatprep.mubr.f32.mxu0 0.0
        %7198 = vmatmul.mubr.f32.gmra.mrb[0].mxu0 %v6986
        %v7199 = vpop.f32.mrb[0].mxu0
        %v7200 = vadd.f32 %v6905, %v7199
        %v7201 = vpop.f32.mrb[0].mxu0
        %7202 = vmatprep.mubr.f32.mxu0 0.0
        %7203 = vmatmul.mubr.f32.gmra.mrb[0].mxu0 %v6989
        %v7204 = vpop.f32.mrb[0].mxu0
        %v7205 = vadd.f32 %v6905, %v7204
        %v7206 = vpop.f32.mrb[0].mxu0
        %7207 = vmatprep.mubr.f32.mxu0 0.0
        %7208 = vmatmul.mubr.f32.gmra.mrb[0].mxu0 %v6992
        %v7209 = vpop.f32.mrb[0].mxu0
        %v7210 = vadd.f32 %v6905, %v7209
        %v7211 = vpop.f32.mrb[0].mxu0
        %7212 = vmatprep.mubr.f32.mxu0 0.0
        %7213 = vmatmul.mubr.f32.gmra.mrb[0].mxu0 %v6995
        %v7214 = vpop.f32.mrb[0].mxu0
        %v7215 = vadd.f32 %v6905, %v7214
        %v7216 = vpop.f32.mrb[0].mxu0
        %7217 = vmatprep.mubr.f32.mxu0 0.0
        %7218 = vmatmul.mubr.f32.gmra.mrb[0].mxu0 %v6998
        %v7219 = vpop.f32.mrb[0].mxu0
        %v7220 = vadd.f32 %v6905, %v7219
        %v7221 = vpop.f32.mrb[0].mxu0
        %7222 = vmatprep.mubr.f32.mxu0 0.0
        %7223 = vmatmul.mubr.f32.gmra.mrb[0].mxu0 %v7001
        %v7224 = vpop.f32.mrb[0].mxu0
        %v7225 = vadd.f32 %v6905, %v7224
        %v7226 = vpop.f32.mrb[0].mxu0
        %7227 = vdwg.mxu0
        %v7228 = vmax.f32 %v7070, 0.0
        %v7229 = vmax.f32 %v7075, 0.0
        %v7230 = vmax.f32 %v7080, 0.0
        %v7231 = vmax.f32 %v7085, 0.0
        %v7232 = vmax.f32 %v7090, 0.0
        %v7233 = vmax.f32 %v7095, 0.0
        %v7234 = vmax.f32 %v7100, 0.0
        %v7235 = vmax.f32 %v7105, 0.0
        %v7236 = vmax.f32 %v7110, 0.0
        %v7237 = vmax.f32 %v7115, 0.0
        %v7238 = vmax.f32 %v7120, 0.0
        %v7239 = vmax.f32 %v7125, 0.0
        %v7240 = vmax.f32 %v7130, 0.0
        %v7241 = vmax.f32 %v7135, 0.0
        %v7242 = vmax.f32 %v7140, 0.0
        %v7243 = vmax.f32 %v7145, 0.0
        %v7244 = vmax.f32 %v7150, 0.0
        %v7245 = vmax.f32 %v7155, 0.0
        %v7246 = vmax.f32 %v7160, 0.0
        %v7247 = vmax.f32 %v7165, 0.0
        %v7248 = vmax.f32 %v7170, 0.0
        %v7249 = vmax.f32 %v7175, 0.0
        %v7250 = vmax.f32 %v7180, 0.0
        %v7251 = vmax.f32 %v7185, 0.0
        %v7252 = vmax.f32 %v7190, 0.0
        %v7253 = vmax.f32 %v7195, 0.0
        %v7254 = vmax.f32 %v7200, 0.0
        %v7255 = vmax.f32 %v7205, 0.0
        %v7256 = vmax.f32 %v7210, 0.0
        %v7257 = vmax.f32 %v7215, 0.0
        %v7258 = vmax.f32 %v7220, 0.0
        %v7259 = vmax.f32 %v7225, 0.0
        %7260 = vst [vmem:[%s204] sm:$0xff] %v7228
        %7261 = vst [vmem:[%s204 + $0x8] sm:$0xff] %v7229
        %7262 = vst [vmem:[%s204 + $0x10] sm:$0xff] %v7230
        %7263 = vst [vmem:[%s204 + $0x18] sm:$0xff] %v7231
        %7264 = vst [vmem:[%s204 + $0x20] sm:$0xff] %v7232
        %7265 = vst [vmem:[%s204 + $0x28] sm:$0xff] %v7233
        %7266 = vst [vmem:[%s204 + $0x30] sm:$0xff] %v7234
        %7267 = vst [vmem:[%s204 + $0x38] sm:$0xff] %v7235
        %7268 = vst [vmem:[%s204 + $0x40] sm:$0xff] %v7236
        %7269 = vst [vmem:[%s204 + $0x48] sm:$0xff] %v7237
        %7270 = vst [vmem:[%s204 + $0x50] sm:$0xff] %v7238
        %7271 = vst [vmem:[%s204 + $0x58] sm:$0xff] %v7239
        %7272 = vst [vmem:[%s204 + $0x60] sm:$0xff] %v7240
        %7273 = vst [vmem:[%s204 + $0x68] sm:$0xff] %v7241
        %7274 = vst [vmem:[%s204 + $0x70] sm:$0xff] %v7242
        %7275 = vst [vmem:[%s204 + $0x78] sm:$0xff] %v7243
        %7276 = vst [vmem:[%s204 + $0x80] sm:$0xff] %v7244
        %7277 = vst [vmem:[%s204 + $0x88] sm:$0xff] %v7245
        %7278 = vst [vmem:[%s204 + $0x90] sm:$0xff] %v7246
        %7279 = vst [vmem:[%s204 + $0x98] sm:$0xff] %v7247
        %7280 = vst [vmem:[%s204 + $0xa0] sm:$0xff] %v7248
        %7281 = vst [vmem:[%s204 + $0xa8] sm:$0xff] %v7249
        %7282 = vst [vmem:[%s204 + $0xb0] sm:$0xff] %v7250
        %7283 = vst [vmem:[%s204 + $0xb8] sm:$0xff] %v7251
        %7284 = vst [vmem:[%s204 + $0xc0] sm:$0xff] %v7252
        %7285 = vst [vmem:[%s204 + $0xc8] sm:$0xff] %v7253
        %7286 = vst [vmem:[%s204 + $0xd0] sm:$0xff] %v7254
        %7287 = vst [vmem:[%s204 + $0xd8] sm:$0xff] %v7255
        %7288 = vst [vmem:[%s204 + $0xe0] sm:$0xff] %v7256
        %7289 = vst [vmem:[%s204 + $0xe8] sm:$0xff] %v7257
        %7290 = vst [vmem:[%s204 + $0xf0] sm:$0xff] %v7258
        %7291 = vst [vmem:[%s204 + $0xf8] sm:$0xff] %v7259
        %s7292 = sand.u32 %s129, 1
        %s7293 = scalar_lea.sflag [#allocation3], %s7292
        %s7294 = sand.u32 %s129, 1
        %s7295 = smul.addr %s7294, 256
        %s7296 = scalar_lea.vmem [#allocation2], %s7295
        // Predicated region
        $region37: #{tpu_custom_call.1} parent=35 // pred_check
          %p7297 = pneg %p139
        $region38: #{tpu_custom_call.1} parent=35 // pred_check_branch
          %7299 = sbr.rel (%p7297) target = $region40
        $region39: #{tpu_custom_call.1} parent=35 // pred_region
          %s7300 = smul.u32 32, %s23
          %s7302 = ssub.s32 4096, 4096
          %7303 = vsyncadd %s7293, %s7302
          %s7304 = smul.addr %s22, 32
          %s7305 = sadd.s32 %s7300, %s7304
          %s7306 = smul.addr %s7305, 128
          %s7307 = scalar_lea.hbm %s4, %s7306
          %s7308 = sshll.u32 %s7296, 4
          %s7309 = int_to_ptr.vmem [resolvable:$true] %s7308
          %7314 = dma.vmem_to_hbm [thread:$0]  %s7309, 4096, %s7307, %s7293, 128, 128, 8
        $region40: #{tpu_custom_call.1} parent=35 // pred_fallthru
          _
      $region36: #{tpu_custom_call.1} parent=5 // pred_fallthru
        _
      %p7315 = scmp.le.s32.totalorder 2, %s13
      // Predicated region
      $region41: #{tpu_custom_call.1} parent=5 // pred_check
        %p7316 = pneg %p7315
      $region42: #{tpu_custom_call.1} parent=5 // pred_check_branch
        %7318 = sbr.rel (%p7316) target = $region44
      $region43: #{tpu_custom_call.1} parent=5 // pred_region
        %s7319 = ssub.s32 %s13, 2
        // Predicated region
        $region45: #{tpu_custom_call.1} parent=43 // pred_check
          %p7320 = pneg %p145
        $region46: #{tpu_custom_call.1} parent=43 // pred_check_branch
          %7322 = sbr.rel (%p7320) target = $region48
        $region47: #{tpu_custom_call.1} parent=43 // pred_region
          %s7323 = sand.u32 %s130, 1
          %s7324 = scalar_lea.sflag [#allocation3], %s7323
          %s7325 = sand.u32 %s130, 1
          %s7326 = smul.addr %s7325, 256
          %s7327 = scalar_lea.vmem [#allocation2], %s7326
          %7328 = dma.done %s7324, 4096
        $region48: #{tpu_custom_call.1} parent=43 // pred_fallthru
          _
      $region44: #{tpu_custom_call.1} parent=5 // pred_fallthru
        _
    $region6: #{tpu_custom_call.1} parent=1 // loop_footer
      %s17 = sadd.s32 1, %s13
    $region7: #{tpu_custom_call.1} parent=1 // loop_footer_branch
      %12 = sbr.rel target = $region3
    $region8: #{tpu_custom_call.1} parent=1 // loop_exit
      _
    %7329 = vsyncpa [#allocation3], 1
    %s7330 = scalar_lea.sflag [#allocation3], 1
    %7331 = vsyncpa %s7330, 1

</llo_original>
